<compile_context>
chip_gen: v7x
topology: tpu7x:2x2x1
jax: 0.10.0
libtpu: 0.0.40
codegen_flags: <defaults>
</compile_context>

<pallas_src>
import jax
import jax.numpy as jnp
from jax.experimental import pallas as pl
from jax.experimental.pallas import tpu as pltpu

D = 32        # d_model
H = 4         # heads
DK = D // H   # per-head dim
DFF = 64      # feed-forward hidden dim
LN_EPS = 1e-5
NEG_INF = -1e9

_SLAB_ROWS = 2 * D + DFF   # 128: Wo_self | Wo_cross | W2 stacked on rows
_SLAB_W = 128
_VEC_ROWS = 16             # packed small-parameter operand, padded to (16, 128)
_VEC_W = 128


# ---------------------------- Pallas kernel ----------------------------

def _kernel_layer_norm(h, g, b):
    mu = jnp.mean(h, axis=-1, keepdims=True)
    var = jnp.mean((h - mu) ** 2, axis=-1, keepdims=True)
    return (h - mu) * jax.lax.rsqrt(var + LN_EPS) * g + b


def decoder_block_kernel(x_ref, enc_ref, sbias_ref, cbias_ref, wslab_ref, vec_ref,
                         o_ref, ctx_ref):
    f32 = jnp.float32

    x = x_ref[...]        # (bps*S, D)   flattened batch rows for this step
    enc = enc_ref[...]    # (bps*Se, D)

    # ---- unpack the packed weight slab / bias block (static slices) ----
    wo_sa   = wslab_ref[0:D, 0:D]                 # (D, D)
    wo_ca   = wslab_ref[D:2 * D, 0:D]             # (D, D)
    w2      = wslab_ref[2 * D:2 * D + DFF, 0:D]   # (DFF, D)
    wqkv_sa = wslab_ref[0:D, D:D + 3 * D]         # (D, 3D) fused Q|K|V (self)
    wqkv_ca = wslab_ref[D:2 * D, D:D + 3 * D]     # (D, 3D) fused Q|K|V (cross)
    w1      = wslab_ref[2 * D:3 * D, D:D + DFF]   # (D, DFF)

    bqkv_sa = vec_ref[0:1, 0:3 * D]
    bo_sa   = vec_ref[1:2, 0:D]
    bqkv_ca = vec_ref[2:3, 0:3 * D]
    bo_ca   = vec_ref[3:4, 0:D]
    b1      = vec_ref[4:5, 0:DFF]
    b2      = vec_ref[5:6, 0:D]
    ln_g    = vec_ref[6:9, 0:D]
    ln_b    = vec_ref[9:12, 0:D]

    # Block-diagonal additive attention biases (0 = attend, -1e9 = masked or
    # cross-batch), pre-built in the wrapper and shipped as bf16.
    sbias = sbias_ref[...].astype(f32)    # (bps*S, bps*S)
    cbias = cbias_ref[...].astype(f32)    # (bps*S, bps*Se)

    scale = 1.0 / (DK ** 0.5)
    dn_qkT = (((1,), (1,)), ((), ()))     # contract last dims: q @ k^T

    def mha(q_rows, kv_rows, wqkv, bqkv, wo, bo, bias, self_attn):
        # Fused QKV projection: one (rows, D) @ (D, 3D) matmul.
        qp = jnp.dot(q_rows, wqkv, preferred_element_type=f32) + bqkv         # (Rq, 3D)
        if self_attn:
            kvp = qp
        else:
            # K/V from encoder rows.  At 3D = 96 lanes the unused Q columns are
            # free on the MXU; split this if 3D ever exceeds one MXU tile width.
            kvp = jnp.dot(kv_rows, wqkv, preferred_element_type=f32) + bqkv   # (Rk, 3D)
        q = qp[:, 0:D]
        k = kvp[:, D:2 * D]
        v = kvp[:, 2 * D:3 * D]

        # Per-head attention over ALL rows at once; the block-diagonal bias
        # makes cross-batch columns contribute exactly zero after softmax.
        for h in range(H):
            qh = q[:, h * DK:(h + 1) * DK]
            kh = k[:, h * DK:(h + 1) * DK]
            vh = v[:, h * DK:(h + 1) * DK]
            s = jax.lax.dot_general(qh, kh, dn_qkT, preferred_element_type=f32)
            s = s * scale + bias                                   # (Rq, Rk)
            m = jnp.max(s, axis=-1, keepdims=True)
            e = jnp.exp(s - m)
            p = e / jnp.sum(e, axis=-1, keepdims=True)             # exact divide
            ctx_ref[:, h * DK:(h + 1) * DK] = jnp.dot(
                p, vh, preferred_element_type=f32)                 # lane-offset store
        # ONE output projection with K = D instead of H tiny K = DK matmuls.
        return jnp.dot(ctx_ref[...], wo, preferred_element_type=f32) + bo

    # residual 1: self-attention, query = key = value = LN(x)
    n0 = _kernel_layer_norm(x, ln_g[0:1], ln_b[0:1])
    h1 = x + mha(n0, n0, wqkv_sa, bqkv_sa, wo_sa, bo_sa, sbias, True)

    # residual 2: cross-attention, key/value = raw encoder_out
    n1 = _kernel_layer_norm(h1, ln_g[1:2], ln_b[1:2])
    h2 = h1 + mha(n1, enc, wqkv_ca, bqkv_ca, wo_ca, bo_ca, cbias, False)

    # residual 3: position-wise feed-forward (Linear -> ReLU -> Linear)
    n2 = _kernel_layer_norm(h2, ln_g[2:3], ln_b[2:3])
    ff = jnp.maximum(jnp.dot(n2, w1, preferred_element_type=f32) + b1, 0.0)
    ff = jnp.dot(ff, w2, preferred_element_type=f32) + b2

    o_ref[...] = (h2 + ff).astype(o_ref.dtype)   # single full-block store


# ------------------------- wrapper / param packing -------------------------

def _pack_params(params):
    sa_w, sa_b, ca_w, ca_b, w1, b1, w2, b2, ln_g, ln_b = params
    f32 = jnp.float32
    slab = jnp.zeros((_SLAB_ROWS, _SLAB_W), f32)
    slab = slab.at[0:D, 0:D].set(sa_w[3])                        # Wo self
    slab = slab.at[D:2 * D, 0:D].set(ca_w[3])                    # Wo cross
    slab = slab.at[2 * D:2 * D + DFF, 0:D].set(w2)               # FF W2
    slab = slab.at[0:D, D:D + 3 * D].set(
        jnp.concatenate([sa_w[0], sa_w[1], sa_w[2]], axis=1))    # fused QKV self
    slab = slab.at[D:2 * D, D:D + 3 * D].set(
        jnp.concatenate([ca_w[0], ca_w[1], ca_w[2]], axis=1))    # fused QKV cross
    slab = slab.at[2 * D:3 * D, D:D + DFF].set(w1)               # FF W1

    vec = jnp.zeros((_VEC_ROWS, _VEC_W), f32)
    vec = vec.at[0, 0:3 * D].set(jnp.concatenate([sa_b[0], sa_b[1], sa_b[2]]))
    vec = vec.at[1, 0:D].set(sa_b[3])
    vec = vec.at[2, 0:3 * D].set(jnp.concatenate([ca_b[0], ca_b[1], ca_b[2]]))
    vec = vec.at[3, 0:D].set(ca_b[3])
    vec = vec.at[4, 0:DFF].set(jnp.reshape(b1, (DFF,)))
    vec = vec.at[5, 0:D].set(jnp.reshape(b2, (D,)))
    vec = vec.at[6:9, 0:D].set(ln_g)
    vec = vec.at[9:12, 0:D].set(ln_b)
    return slab, vec


def _block_diag_bias(mask, nsteps, bps):
    """(B, Sq, Sk) 0/nonzero mask -> (B*Sq, bps*Sk) block-diagonal additive bias."""
    B, Sq, Sk = mask.shape
    bias = jnp.where(mask == 0, NEG_INF, 0.0).astype(jnp.float32)       # (B, Sq, Sk)
    bias = bias.reshape(nsteps, bps, Sq, Sk)
    same = jnp.arange(bps)[:, None] == jnp.arange(bps)[None, :]         # (bps, bps)
    blk = jnp.where(same, 0.0, NEG_INF).astype(jnp.float32)
    full = bias[:, :, :, None, :] + blk[None, :, None, :, None]         # (ns,bps,Sq,bps,Sk)
    return full.reshape(nsteps * bps * Sq, bps * Sk)


def _default_bps(B):
    # Prefer >= 2 grid steps whenever possible: enables BlockSpec pipelining on
    # all generations and keeps both v7x TensorCores busy via "parallel".
    if B <= 1:
        return 1
    for cand in range(B // 2, 0, -1):
        if B % cand == 0:
            return cand
    return 1


def decoder_block(x, enc, self_mask, cross_mask, params, *, batch_per_step=None):
    B, S, d_model = x.shape
    Se = enc.shape[1]
    assert d_model == D
    bps = _default_bps(B) if batch_per_step is None else batch_per_step
    assert B % bps == 0
    nsteps = B // bps
    assert (bps * S) % 8 == 0 and (bps * Se) % 8 == 0, "rows per step must be 8-aligned"

    x2 = x.reshape(B * S, D).astype(jnp.float32)
    enc2 = enc.reshape(B * Se, D).astype(jnp.float32)

    # Masks shipped as bf16 additive biases (half the HBM bytes of f32 masks);
    # bf16 needs 16-row-aligned blocks, otherwise fall back to f32.
    mask_dtype = jnp.bfloat16 if (bps * S) % 16 == 0 else jnp.float32
    sbias = _block_diag_bias(self_mask, nsteps, bps).astype(mask_dtype)   # (B*S, bps*S)
    cbias = _block_diag_bias(cross_mask, nsteps, bps).astype(mask_dtype)  # (B*S, bps*Se)

    wslab, vec = _pack_params(params)

    grid_spec = pltpu.PrefetchScalarGridSpec(
        num_scalar_prefetch=0,
        grid=(nsteps,),
        in_specs=[
            pl.BlockSpec((bps * S, D), lambda i: (i, 0)),             # x (flattened)
            pl.BlockSpec((bps * Se, D), lambda i: (i, 0)),            # encoder_out
            pl.BlockSpec((bps * S, bps * S), lambda i: (i, 0)),       # self-attn bias
            pl.BlockSpec((bps * S, bps * Se), lambda i: (i, 0)),      # cross-attn bias
            pl.BlockSpec((_SLAB_ROWS, _SLAB_W), lambda i: (0, 0)),    # packed weight slab
            pl.BlockSpec((_VEC_ROWS, _VEC_W), lambda i: (0, 0)),      # packed biases / LN
        ],
        out_specs=pl.BlockSpec((bps * S, D), lambda i: (i, 0)),
        scratch_shapes=[pltpu.VMEM((bps * S, D), jnp.float32)],       # per-head ctx slab
    )
    out2 = pl.pallas_call(
        decoder_block_kernel,
        out_shape=jax.ShapeDtypeStruct((B * S, D), x.dtype),
        grid_spec=grid_spec,
        compiler_params=pltpu.CompilerParams(dimension_semantics=("parallel",)),
    )(x2, enc2, sbias, cbias, wslab, vec)
    return out2.reshape(B, S, D)


# ---------------- pure-JAX reference (original math, per-batch) ----------------

def _ref_layer_norm(h, g, b):
    mu = jnp.mean(h, axis=-1, keepdims=True)
    var = jnp.mean((h - mu) ** 2, axis=-1, keepdims=True)
    return (h - mu) * jax.lax.rsqrt(var + LN_EPS) * g + b


def _ref_mha(q_in, kv_in, w, b, mask):
    q = q_in @ w[0] + b[0:1]
    k = kv_in @ w[1] + b[1:2]
    v = kv_in @ w[2] + b[2:3]
    scale = 1.0 / (DK ** 0.5)
    heads = []
    for h in range(H):
        qh = q[:, h * DK:(h + 1) * DK]
        kh = k[:, h * DK:(h + 1) * DK]
        vh = v[:, h * DK:(h + 1) * DK]
        s = (qh @ kh.T) * scale
        s = jnp.where(mask == 0, -1e9, s)
        m = jnp.max(s, axis=-1, keepdims=True)
        e = jnp.exp(s - m)
        p = e / jnp.sum(e, axis=-1, keepdims=True)
        heads.append(p @ vh)
    ctx = jnp.concatenate(heads, axis=-1)
    return ctx @ w[3] + b[3:4]


def reference(x, enc, smask, cmask, params):
    sa_w, sa_b, ca_w, ca_b, w1, b1, w2, b2, ln_g, ln_b = params
    outs = []
    for bi in range(x.shape[0]):
        xb, encb, sm, cm = x[bi], enc[bi], smask[bi], cmask[bi]
        n0 = _ref_layer_norm(xb, ln_g[0:1], ln_b[0:1])
        h1 = xb + _ref_mha(n0, n0, sa_w, sa_b, sm)
        n1 = _ref_layer_norm(h1, ln_g[1:2], ln_b[1:2])
        h2 = h1 + _ref_mha(n1, encb, ca_w, ca_b, cm)
        n2 = _ref_layer_norm(h2, ln_g[2:3], ln_b[2:3])
        ff = jnp.maximum(n2 @ w1 + b1, 0.0) @ w2 + b2
        outs.append(h2 + ff)
    return jnp.stack(outs, axis=0)


if __name__ == "__main__":
    key = jax.random.PRNGKey(0)
    ks = jax.random.split(key, 12)

    # B=4 so the default tiling gives 2 grid steps of 2 batches each, exercising
    # both the pipelined/parallel grid and the in-step block-diagonal attention.
    B, S, Se = 4, 8, 16
    x = jax.random.normal(ks[0], (B, S, D), jnp.float32)
    enc = jax.random.normal(ks[1], (B, Se, D), jnp.float32)
    # causal self mask; cross mask with per-batch encoder padding (nonzero = attend)
    self_mask = jnp.broadcast_to(jnp.tril(jnp.ones((S, S), jnp.float32)), (B, S, S))
    lens = jnp.array([Se, Se - 3, Se - 5, Se - 1])
    cross_mask = (jnp.arange(Se)[None, None, :] < lens[:, None, None]).astype(jnp.float32)
    cross_mask = jnp.broadcast_to(cross_mask, (B, S, Se))

    def init(k, shape, scale=0.1):
        return scale * jax.random.normal(k, shape, jnp.float32)

    sa_w = init(ks[2], (4, D, D));  sa_b = init(ks[3], (4, D))
    ca_w = init(ks[4], (4, D, D));  ca_b = init(ks[5], (4, D))
    w1 = init(ks[6], (D, DFF));     b1 = init(ks[7], (1, DFF))
    w2 = init(ks[8], (DFF, D));     b2 = init(ks[9], (1, D))
    ln_g = 1.0 + init(ks[10], (3, D))
    ln_b = init(ks[11], (3, D))
    params = (sa_w, sa_b, ca_w, ca_b, w1, b1, w2, b2, ln_g, ln_b)

    out = jax.block_until_ready(decoder_block(x, enc, self_mask, cross_mask, params))
    ref = reference(x, enc, self_mask, cross_mask, params)

    assert out.shape == (B, S, D)
    # Exact-divide softmax + f32 matmuls: only matmul reassociation noise remains.
    err = float(jnp.max(jnp.abs(out - ref)))
    assert bool(jnp.allclose(out, ref, atol=5e-4, rtol=5e-4)), f"max abs err {err}"
    print("KERNEL_OK")
</pallas_src>

<mosaic_0001>
module attributes {stable_mosaic.version = 11 : i64} {
  func.func @decoder_block_kernel(%arg0: i32, %arg1: memref<16x32xf32, #tpu.memory_space<vmem>>, %arg2: memref<32x32xf32, #tpu.memory_space<vmem>>, %arg3: memref<16x16xbf16, #tpu.memory_space<vmem>>, %arg4: memref<16x32xbf16, #tpu.memory_space<vmem>>, %arg5: memref<128x128xf32, #tpu.memory_space<vmem>>, %arg6: memref<16x128xf32, #tpu.memory_space<vmem>>, %arg7: memref<16x32xf32, #tpu.memory_space<vmem>>, %arg8: memref<16x32xf32, #tpu.memory_space<vmem>>) attributes {dimension_semantics = [#tpu.dimension_semantics<parallel>], iteration_bounds = array<i64: 2>, scalar_prefetch = 0 : i64, scratch_operands = 1 : i64, tpu.core_type = #tpu.core_type<tc>, window_params = [{transform_indices = @transform_0, window_bounds = array<i64: 16, 32>}, {transform_indices = @transform_1, window_bounds = array<i64: 32, 32>}, {transform_indices = @transform_2, window_bounds = array<i64: 16, 16>}, {transform_indices = @transform_3, window_bounds = array<i64: 16, 32>}, {pipeline_mode = #tpu.pipeline_mode<synchronous>, transform_indices = @transform_4, window_bounds = array<i64: 128, 128>}, {pipeline_mode = #tpu.pipeline_mode<synchronous>, transform_indices = @transform_5, window_bounds = array<i64: 16, 128>}, {transform_indices = @transform_6, window_bounds = array<i64: 16, 32>}]} {
    %c0 = arith.constant 0 : index
    %c0_0 = arith.constant 0 : index
    %0 = vector.load %arg1[%c0, %c0_0] : memref<16x32xf32, #tpu.memory_space<vmem>>, vector<16x32xf32>
    %c0_1 = arith.constant 0 : index
    %c0_2 = arith.constant 0 : index
    %1 = vector.load %arg2[%c0_1, %c0_2] : memref<32x32xf32, #tpu.memory_space<vmem>>, vector<32x32xf32>
    %c0_3 = arith.constant 0 : index
    %c0_4 = arith.constant 0 : index
    %2 = vector.load %arg5[%c0_3, %c0_4] : memref<128x128xf32, #tpu.memory_space<vmem>>, vector<32x32xf32>
    %c32 = arith.constant 32 : index
    %c0_5 = arith.constant 0 : index
    %3 = vector.load %arg5[%c32, %c0_5] : memref<128x128xf32, #tpu.memory_space<vmem>>, vector<32x32xf32>
    %c64 = arith.constant 64 : index
    %c0_6 = arith.constant 0 : index
    %4 = vector.load %arg5[%c64, %c0_6] : memref<128x128xf32, #tpu.memory_space<vmem>>, vector<64x32xf32>
    %c0_7 = arith.constant 0 : index
    %c32_8 = arith.constant 32 : index
    %5 = vector.load %arg5[%c0_7, %c32_8] : memref<128x128xf32, #tpu.memory_space<vmem>>, vector<32x96xf32>
    %c32_9 = arith.constant 32 : index
    %c32_10 = arith.constant 32 : index
    %6 = vector.load %arg5[%c32_9, %c32_10] : memref<128x128xf32, #tpu.memory_space<vmem>>, vector<32x96xf32>
    %c64_11 = arith.constant 64 : index
    %c32_12 = arith.constant 32 : index
    %7 = vector.load %arg5[%c64_11, %c32_12] : memref<128x128xf32, #tpu.memory_space<vmem>>, vector<32x64xf32>
    %c0_13 = arith.constant 0 : index
    %c0_14 = arith.constant 0 : index
    %8 = vector.load %arg6[%c0_13, %c0_14] : memref<16x128xf32, #tpu.memory_space<vmem>>, vector<1x96xf32>
    %c1 = arith.constant 1 : index
    %c0_15 = arith.constant 0 : index
    %9 = vector.load %arg6[%c1, %c0_15] : memref<16x128xf32, #tpu.memory_space<vmem>>, vector<1x32xf32>
    %c2 = arith.constant 2 : index
    %c0_16 = arith.constant 0 : index
    %10 = vector.load %arg6[%c2, %c0_16] : memref<16x128xf32, #tpu.memory_space<vmem>>, vector<1x96xf32>
    %c3 = arith.constant 3 : index
    %c0_17 = arith.constant 0 : index
    %11 = vector.load %arg6[%c3, %c0_17] : memref<16x128xf32, #tpu.memory_space<vmem>>, vector<1x32xf32>
    %c4 = arith.constant 4 : index
    %c0_18 = arith.constant 0 : index
    %12 = vector.load %arg6[%c4, %c0_18] : memref<16x128xf32, #tpu.memory_space<vmem>>, vector<1x64xf32>
    %c5 = arith.constant 5 : index
    %c0_19 = arith.constant 0 : index
    %13 = vector.load %arg6[%c5, %c0_19] : memref<16x128xf32, #tpu.memory_space<vmem>>, vector<1x32xf32>
    %c6 = arith.constant 6 : index
    %c0_20 = arith.constant 0 : index
    %14 = vector.load %arg6[%c6, %c0_20] : memref<16x128xf32, #tpu.memory_space<vmem>>, vector<3x32xf32>
    %c9 = arith.constant 9 : index
    %c0_21 = arith.constant 0 : index
    %15 = vector.load %arg6[%c9, %c0_21] : memref<16x128xf32, #tpu.memory_space<vmem>>, vector<3x32xf32>
    %c0_22 = arith.constant 0 : index
    %c0_23 = arith.constant 0 : index
    %16 = vector.load %arg3[%c0_22, %c0_23] : memref<16x16xbf16, #tpu.memory_space<vmem>>, vector<16x16xbf16>
    %17 = arith.extf %16 : vector<16x16xbf16> to vector<16x16xf32>
    %c0_24 = arith.constant 0 : index
    %c0_25 = arith.constant 0 : index
    %18 = vector.load %arg4[%c0_24, %c0_25] : memref<16x32xbf16, #tpu.memory_space<vmem>>, vector<16x32xbf16>
    %19 = arith.extf %18 : vector<16x32xbf16> to vector<16x32xf32>
    %20 = vector.extract_strided_slice %14 {offsets = [0, 0], sizes = [1, 32], strides = [1, 1]} : vector<3x32xf32> to vector<1x32xf32>
    %21 = vector.extract_strided_slice %15 {offsets = [0, 0], sizes = [1, 32], strides = [1, 1]} : vector<3x32xf32> to vector<1x32xf32>
    %cst = arith.constant dense<0.000000e+00> : vector<16xf32>
    %22 = vector.multi_reduction <add>, %0, %cst [1] : vector<16x32xf32> to vector<16xf32>
    %23 = vector.shape_cast %22 : vector<16xf32> to vector<16x1xf32>
    %cst_26 = arith.constant 3.200000e+01 : f32
    %24 = vector.broadcast %cst_26 : f32 to vector<16x1xf32>
    %25 = arith.divf %23, %24 : vector<16x1xf32>
    %26 = vector.broadcast %25 : vector<16x1xf32> to vector<16x32xf32>
    %27 = arith.subf %0, %26 : vector<16x32xf32>
    %28 = arith.mulf %27, %27 : vector<16x32xf32>
    %cst_27 = arith.constant dense<0.000000e+00> : vector<16xf32>
    %29 = vector.multi_reduction <add>, %28, %cst_27 [1] : vector<16x32xf32> to vector<16xf32>
    %30 = vector.shape_cast %29 : vector<16xf32> to vector<16x1xf32>
    %cst_28 = arith.constant 3.200000e+01 : f32
    %31 = vector.broadcast %cst_28 : f32 to vector<16x1xf32>
    %32 = arith.divf %30, %31 : vector<16x1xf32>
    %33 = vector.broadcast %25 : vector<16x1xf32> to vector<16x32xf32>
    %34 = arith.subf %0, %33 : vector<16x32xf32>
    %cst_29 = arith.constant 9.99999974E-6 : f32
    %35 = vector.broadcast %cst_29 : f32 to vector<16x1xf32>
    %36 = arith.addf %32, %35 : vector<16x1xf32>
    %37 = math.rsqrt %36 : vector<16x1xf32>
    %38 = vector.broadcast %37 : vector<16x1xf32> to vector<16x32xf32>
    %39 = arith.mulf %34, %38 : vector<16x32xf32>
    %40 = vector.broadcast %20 : vector<1x32xf32> to vector<16x32xf32>
    %41 = arith.mulf %39, %40 : vector<16x32xf32>
    %42 = vector.broadcast %21 : vector<1x32xf32> to vector<16x32xf32>
    %43 = arith.addf %41, %42 : vector<16x32xf32>
    %cst_30 = arith.constant dense<0.000000e+00> : vector<16x96xf32>
    %44 = tpu.matmul %43, %5, %cst_30 {dimension_numbers = #tpu.dot_dimension_numbers<[1], [0], [0], [1], [0, 0, 1, 1], [], []>} : vector<16x32xf32>, vector<32x96xf32>, vector<16x96xf32> -> vector<16x96xf32>
    %45 = vector.broadcast %8 : vector<1x96xf32> to vector<16x96xf32>
    %46 = arith.addf %44, %45 : vector<16x96xf32>
    %47 = vector.extract_strided_slice %46 {offsets = [0, 0], sizes = [16, 32], strides = [1, 1]} : vector<16x96xf32> to vector<16x32xf32>
    %48 = vector.extract_strided_slice %46 {offsets = [0, 32], sizes = [16, 32], strides = [1, 1]} : vector<16x96xf32> to vector<16x32xf32>
    %49 = vector.extract_strided_slice %46 {offsets = [0, 64], sizes = [16, 32], strides = [1, 1]} : vector<16x96xf32> to vector<16x32xf32>
    %50 = vector.extract_strided_slice %47 {offsets = [0, 0], sizes = [16, 8], strides = [1, 1]} : vector<16x32xf32> to vector<16x8xf32>
    %51 = vector.extract_strided_slice %48 {offsets = [0, 0], sizes = [16, 8], strides = [1, 1]} : vector<16x32xf32> to vector<16x8xf32>
    %52 = vector.extract_strided_slice %49 {offsets = [0, 0], sizes = [16, 8], strides = [1, 1]} : vector<16x32xf32> to vector<16x8xf32>
    %cst_31 = arith.constant dense<0.000000e+00> : vector<16x16xf32>
    %53 = tpu.matmul %50, %51, %cst_31 {dimension_numbers = #tpu.dot_dimension_numbers<[1], [1], [0], [0], [0, 0, 1, 0], [], []>} : vector<16x8xf32>, vector<16x8xf32>, vector<16x16xf32> -> vector<16x16xf32>
    %cst_32 = arith.constant 0.353553385 : f32
    %54 = vector.broadcast %cst_32 : f32 to vector<16x16xf32>
    %55 = arith.mulf %53, %54 : vector<16x16xf32>
    %56 = arith.addf %55, %17 : vector<16x16xf32>
    %cst_33 = arith.constant dense<0xFF800000> : vector<16xf32>
    %57 = vector.multi_reduction <maximumf>, %56, %cst_33 [1] : vector<16x16xf32> to vector<16xf32>
    %58 = vector.shape_cast %57 : vector<16xf32> to vector<16x1xf32>
    %59 = vector.broadcast %58 : vector<16x1xf32> to vector<16x16xf32>
    %60 = arith.subf %56, %59 : vector<16x16xf32>
    %61 = math.exp %60 : vector<16x16xf32>
    %cst_34 = arith.constant dense<0.000000e+00> : vector<16xf32>
    %62 = vector.multi_reduction <add>, %61, %cst_34 [1] : vector<16x16xf32> to vector<16xf32>
    %63 = vector.shape_cast %62 : vector<16xf32> to vector<16x1xf32>
    %64 = vector.broadcast %63 : vector<16x1xf32> to vector<16x16xf32>
    %65 = arith.divf %61, %64 : vector<16x16xf32>
    %cst_35 = arith.constant dense<0.000000e+00> : vector<16x8xf32>
    %66 = tpu.matmul %65, %52, %cst_35 {dimension_numbers = #tpu.dot_dimension_numbers<[1], [0], [0], [1], [0, 0, 1, 1], [], []>} : vector<16x16xf32>, vector<16x8xf32>, vector<16x8xf32> -> vector<16x8xf32>
    %c0_36 = arith.constant 0 : index
    %c0_37 = arith.constant 0 : index
    %67 = vector.load %arg8[%c0_36, %c0_37] : memref<16x32xf32, #tpu.memory_space<vmem>>, vector<16x8xf32>
    tpu.vector_store %arg8[%c0_36, %c0_37], %66 {strides = array<i32>} : memref<16x32xf32, #tpu.memory_space<vmem>>, vector<16x8xf32>,
    %68 = vector.extract_strided_slice %47 {offsets = [0, 8], sizes = [16, 8], strides = [1, 1]} : vector<16x32xf32> to vector<16x8xf32>
    %69 = vector.extract_strided_slice %48 {offsets = [0, 8], sizes = [16, 8], strides = [1, 1]} : vector<16x32xf32> to vector<16x8xf32>
    %70 = vector.extract_strided_slice %49 {offsets = [0, 8], sizes = [16, 8], strides = [1, 1]} : vector<16x32xf32> to vector<16x8xf32>
    %cst_38 = arith.constant dense<0.000000e+00> : vector<16x16xf32>
    %71 = tpu.matmul %68, %69, %cst_38 {dimension_numbers = #tpu.dot_dimension_numbers<[1], [1], [0], [0], [0, 0, 1, 0], [], []>} : vector<16x8xf32>, vector<16x8xf32>, vector<16x16xf32> -> vector<16x16xf32>
    %cst_39 = arith.constant 0.353553385 : f32
    %72 = vector.broadcast %cst_39 : f32 to vector<16x16xf32>
    %73 = arith.mulf %71, %72 : vector<16x16xf32>
    %74 = arith.addf %73, %17 : vector<16x16xf32>
    %cst_40 = arith.constant dense<0xFF800000> : vector<16xf32>
    %75 = vector.multi_reduction <maximumf>, %74, %cst_40 [1] : vector<16x16xf32> to vector<16xf32>
    %76 = vector.shape_cast %75 : vector<16xf32> to vector<16x1xf32>
    %77 = vector.broadcast %76 : vector<16x1xf32> to vector<16x16xf32>
    %78 = arith.subf %74, %77 : vector<16x16xf32>
    %79 = math.exp %78 : vector<16x16xf32>
    %cst_41 = arith.constant dense<0.000000e+00> : vector<16xf32>
    %80 = vector.multi_reduction <add>, %79, %cst_41 [1] : vector<16x16xf32> to vector<16xf32>
    %81 = vector.shape_cast %80 : vector<16xf32> to vector<16x1xf32>
    %82 = vector.broadcast %81 : vector<16x1xf32> to vector<16x16xf32>
    %83 = arith.divf %79, %82 : vector<16x16xf32>
    %cst_42 = arith.constant dense<0.000000e+00> : vector<16x8xf32>
    %84 = tpu.matmul %83, %70, %cst_42 {dimension_numbers = #tpu.dot_dimension_numbers<[1], [0], [0], [1], [0, 0, 1, 1], [], []>} : vector<16x16xf32>, vector<16x8xf32>, vector<16x8xf32> -> vector<16x8xf32>
    %c0_43 = arith.constant 0 : index
    %c8 = arith.constant 8 : index
    %85 = vector.load %arg8[%c0_43, %c8] : memref<16x32xf32, #tpu.memory_space<vmem>>, vector<16x8xf32>
    tpu.vector_store %arg8[%c0_43, %c8], %84 {strides = array<i32>} : memref<16x32xf32, #tpu.memory_space<vmem>>, vector<16x8xf32>,
    %86 = vector.extract_strided_slice %47 {offsets = [0, 16], sizes = [16, 8], strides = [1, 1]} : vector<16x32xf32> to vector<16x8xf32>
    %87 = vector.extract_strided_slice %48 {offsets = [0, 16], sizes = [16, 8], strides = [1, 1]} : vector<16x32xf32> to vector<16x8xf32>
    %88 = vector.extract_strided_slice %49 {offsets = [0, 16], sizes = [16, 8], strides = [1, 1]} : vector<16x32xf32> to vector<16x8xf32>
    %cst_44 = arith.constant dense<0.000000e+00> : vector<16x16xf32>
    %89 = tpu.matmul %86, %87, %cst_44 {dimension_numbers = #tpu.dot_dimension_numbers<[1], [1], [0], [0], [0, 0, 1, 0], [], []>} : vector<16x8xf32>, vector<16x8xf32>, vector<16x16xf32> -> vector<16x16xf32>
    %cst_45 = arith.constant 0.353553385 : f32
    %90 = vector.broadcast %cst_45 : f32 to vector<16x16xf32>
    %91 = arith.mulf %89, %90 : vector<16x16xf32>
    %92 = arith.addf %91, %17 : vector<16x16xf32>
    %cst_46 = arith.constant dense<0xFF800000> : vector<16xf32>
    %93 = vector.multi_reduction <maximumf>, %92, %cst_46 [1] : vector<16x16xf32> to vector<16xf32>
    %94 = vector.shape_cast %93 : vector<16xf32> to vector<16x1xf32>
    %95 = vector.broadcast %94 : vector<16x1xf32> to vector<16x16xf32>
    %96 = arith.subf %92, %95 : vector<16x16xf32>
    %97 = math.exp %96 : vector<16x16xf32>
    %cst_47 = arith.constant dense<0.000000e+00> : vector<16xf32>
    %98 = vector.multi_reduction <add>, %97, %cst_47 [1] : vector<16x16xf32> to vector<16xf32>
    %99 = vector.shape_cast %98 : vector<16xf32> to vector<16x1xf32>
    %100 = vector.broadcast %99 : vector<16x1xf32> to vector<16x16xf32>
    %101 = arith.divf %97, %100 : vector<16x16xf32>
    %cst_48 = arith.constant dense<0.000000e+00> : vector<16x8xf32>
    %102 = tpu.matmul %101, %88, %cst_48 {dimension_numbers = #tpu.dot_dimension_numbers<[1], [0], [0], [1], [0, 0, 1, 1], [], []>} : vector<16x16xf32>, vector<16x8xf32>, vector<16x8xf32> -> vector<16x8xf32>
    %c0_49 = arith.constant 0 : index
    %c16 = arith.constant 16 : index
    %103 = vector.load %arg8[%c0_49, %c16] : memref<16x32xf32, #tpu.memory_space<vmem>>, vector<16x8xf32>
    tpu.vector_store %arg8[%c0_49, %c16], %102 {strides = array<i32>} : memref<16x32xf32, #tpu.memory_space<vmem>>, vector<16x8xf32>,
    %104 = vector.extract_strided_slice %47 {offsets = [0, 24], sizes = [16, 8], strides = [1, 1]} : vector<16x32xf32> to vector<16x8xf32>
    %105 = vector.extract_strided_slice %48 {offsets = [0, 24], sizes = [16, 8], strides = [1, 1]} : vector<16x32xf32> to vector<16x8xf32>
    %106 = vector.extract_strided_slice %49 {offsets = [0, 24], sizes = [16, 8], strides = [1, 1]} : vector<16x32xf32> to vector<16x8xf32>
    %cst_50 = arith.constant dense<0.000000e+00> : vector<16x16xf32>
    %107 = tpu.matmul %104, %105, %cst_50 {dimension_numbers = #tpu.dot_dimension_numbers<[1], [1], [0], [0], [0, 0, 1, 0], [], []>} : vector<16x8xf32>, vector<16x8xf32>, vector<16x16xf32> -> vector<16x16xf32>
    %cst_51 = arith.constant 0.353553385 : f32
    %108 = vector.broadcast %cst_51 : f32 to vector<16x16xf32>
    %109 = arith.mulf %107, %108 : vector<16x16xf32>
    %110 = arith.addf %109, %17 : vector<16x16xf32>
    %cst_52 = arith.constant dense<0xFF800000> : vector<16xf32>
    %111 = vector.multi_reduction <maximumf>, %110, %cst_52 [1] : vector<16x16xf32> to vector<16xf32>
    %112 = vector.shape_cast %111 : vector<16xf32> to vector<16x1xf32>
    %113 = vector.broadcast %112 : vector<16x1xf32> to vector<16x16xf32>
    %114 = arith.subf %110, %113 : vector<16x16xf32>
    %115 = math.exp %114 : vector<16x16xf32>
    %cst_53 = arith.constant dense<0.000000e+00> : vector<16xf32>
    %116 = vector.multi_reduction <add>, %115, %cst_53 [1] : vector<16x16xf32> to vector<16xf32>
    %117 = vector.shape_cast %116 : vector<16xf32> to vector<16x1xf32>
    %118 = vector.broadcast %117 : vector<16x1xf32> to vector<16x16xf32>
    %119 = arith.divf %115, %118 : vector<16x16xf32>
    %cst_54 = arith.constant dense<0.000000e+00> : vector<16x8xf32>
    %120 = tpu.matmul %119, %106, %cst_54 {dimension_numbers = #tpu.dot_dimension_numbers<[1], [0], [0], [1], [0, 0, 1, 1], [], []>} : vector<16x16xf32>, vector<16x8xf32>, vector<16x8xf32> -> vector<16x8xf32>
    %c0_55 = arith.constant 0 : index
    %c24 = arith.constant 24 : index
    %121 = vector.load %arg8[%c0_55, %c24] : memref<16x32xf32, #tpu.memory_space<vmem>>, vector<16x8xf32>
    tpu.vector_store %arg8[%c0_55, %c24], %120 {strides = array<i32>} : memref<16x32xf32, #tpu.memory_space<vmem>>, vector<16x8xf32>,
    %c0_56 = arith.constant 0 : index
    %c0_57 = arith.constant 0 : index
    %122 = vector.load %arg8[%c0_56, %c0_57] : memref<16x32xf32, #tpu.memory_space<vmem>>, vector<16x32xf32>
    %cst_58 = arith.constant dense<0.000000e+00> : vector<16x32xf32>
    %123 = tpu.matmul %122, %2, %cst_58 {dimension_numbers = #tpu.dot_dimension_numbers<[1], [0], [0], [1], [0, 0, 1, 1], [], []>} : vector<16x32xf32>, vector<32x32xf32>, vector<16x32xf32> -> vector<16x32xf32>
    %124 = vector.broadcast %9 : vector<1x32xf32> to vector<16x32xf32>
    %125 = arith.addf %123, %124 : vector<16x32xf32>
    %126 = arith.addf %0, %125 : vector<16x32xf32>
    %127 = vector.extract_strided_slice %14 {offsets = [1, 0], sizes = [1, 32], strides = [1, 1]} : vector<3x32xf32> to vector<1x32xf32>
    %128 = vector.extract_strided_slice %15 {offsets = [1, 0], sizes = [1, 32], strides = [1, 1]} : vector<3x32xf32> to vector<1x32xf32>
    %cst_59 = arith.constant dense<0.000000e+00> : vector<16xf32>
    %129 = vector.multi_reduction <add>, %126, %cst_59 [1] : vector<16x32xf32> to vector<16xf32>
    %130 = vector.shape_cast %129 : vector<16xf32> to vector<16x1xf32>
    %cst_60 = arith.constant 3.200000e+01 : f32
    %131 = vector.broadcast %cst_60 : f32 to vector<16x1xf32>
    %132 = arith.divf %130, %131 : vector<16x1xf32>
    %133 = vector.broadcast %132 : vector<16x1xf32> to vector<16x32xf32>
    %134 = arith.subf %126, %133 : vector<16x32xf32>
    %135 = arith.mulf %134, %134 : vector<16x32xf32>
    %cst_61 = arith.constant dense<0.000000e+00> : vector<16xf32>
    %136 = vector.multi_reduction <add>, %135, %cst_61 [1] : vector<16x32xf32> to vector<16xf32>
    %137 = vector.shape_cast %136 : vector<16xf32> to vector<16x1xf32>
    %cst_62 = arith.constant 3.200000e+01 : f32
    %138 = vector.broadcast %cst_62 : f32 to vector<16x1xf32>
    %139 = arith.divf %137, %138 : vector<16x1xf32>
    %140 = vector.broadcast %132 : vector<16x1xf32> to vector<16x32xf32>
    %141 = arith.subf %126, %140 : vector<16x32xf32>
    %cst_63 = arith.constant 9.99999974E-6 : f32
    %142 = vector.broadcast %cst_63 : f32 to vector<16x1xf32>
    %143 = arith.addf %139, %142 : vector<16x1xf32>
    %144 = math.rsqrt %143 : vector<16x1xf32>
    %145 = vector.broadcast %144 : vector<16x1xf32> to vector<16x32xf32>
    %146 = arith.mulf %141, %145 : vector<16x32xf32>
    %147 = vector.broadcast %127 : vector<1x32xf32> to vector<16x32xf32>
    %148 = arith.mulf %146, %147 : vector<16x32xf32>
    %149 = vector.broadcast %128 : vector<1x32xf32> to vector<16x32xf32>
    %150 = arith.addf %148, %149 : vector<16x32xf32>
    %cst_64 = arith.constant dense<0.000000e+00> : vector<16x96xf32>
    %151 = tpu.matmul %150, %6, %cst_64 {dimension_numbers = #tpu.dot_dimension_numbers<[1], [0], [0], [1], [0, 0, 1, 1], [], []>} : vector<16x32xf32>, vector<32x96xf32>, vector<16x96xf32> -> vector<16x96xf32>
    %152 = vector.broadcast %10 : vector<1x96xf32> to vector<16x96xf32>
    %153 = arith.addf %151, %152 : vector<16x96xf32>
    %cst_65 = arith.constant dense<0.000000e+00> : vector<32x96xf32>
    %154 = tpu.matmul %1, %6, %cst_65 {dimension_numbers = #tpu.dot_dimension_numbers<[1], [0], [0], [1], [0, 0, 1, 1], [], []>} : vector<32x32xf32>, vector<32x96xf32>, vector<32x96xf32> -> vector<32x96xf32>
    %155 = vector.broadcast %10 : vector<1x96xf32> to vector<32x96xf32>
    %156 = arith.addf %154, %155 : vector<32x96xf32>
    %157 = vector.extract_strided_slice %153 {offsets = [0, 0], sizes = [16, 32], strides = [1, 1]} : vector<16x96xf32> to vector<16x32xf32>
    %158 = vector.extract_strided_slice %156 {offsets = [0, 32], sizes = [32, 32], strides = [1, 1]} : vector<32x96xf32> to vector<32x32xf32>
    %159 = vector.extract_strided_slice %156 {offsets = [0, 64], sizes = [32, 32], strides = [1, 1]} : vector<32x96xf32> to vector<32x32xf32>
    %160 = vector.extract_strided_slice %157 {offsets = [0, 0], sizes = [16, 8], strides = [1, 1]} : vector<16x32xf32> to vector<16x8xf32>
    %161 = vector.extract_strided_slice %158 {offsets = [0, 0], sizes = [32, 8], strides = [1, 1]} : vector<32x32xf32> to vector<32x8xf32>
    %162 = vector.extract_strided_slice %159 {offsets = [0, 0], sizes = [32, 8], strides = [1, 1]} : vector<32x32xf32> to vector<32x8xf32>
    %cst_66 = arith.constant dense<0.000000e+00> : vector<16x32xf32>
    %163 = tpu.matmul %160, %161, %cst_66 {dimension_numbers = #tpu.dot_dimension_numbers<[1], [1], [0], [0], [0, 0, 1, 0], [], []>} : vector<16x8xf32>, vector<32x8xf32>, vector<16x32xf32> -> vector<16x32xf32>
    %cst_67 = arith.constant 0.353553385 : f32
    %164 = vector.broadcast %cst_67 : f32 to vector<16x32xf32>
    %165 = arith.mulf %163, %164 : vector<16x32xf32>
    %166 = arith.addf %165, %19 : vector<16x32xf32>
    %cst_68 = arith.constant dense<0xFF800000> : vector<16xf32>
    %167 = vector.multi_reduction <maximumf>, %166, %cst_68 [1] : vector<16x32xf32> to vector<16xf32>
    %168 = vector.shape_cast %167 : vector<16xf32> to vector<16x1xf32>
    %169 = vector.broadcast %168 : vector<16x1xf32> to vector<16x32xf32>
    %170 = arith.subf %166, %169 : vector<16x32xf32>
    %171 = math.exp %170 : vector<16x32xf32>
    %cst_69 = arith.constant dense<0.000000e+00> : vector<16xf32>
    %172 = vector.multi_reduction <add>, %171, %cst_69 [1] : vector<16x32xf32> to vector<16xf32>
    %173 = vector.shape_cast %172 : vector<16xf32> to vector<16x1xf32>
    %174 = vector.broadcast %173 : vector<16x1xf32> to vector<16x32xf32>
    %175 = arith.divf %171, %174 : vector<16x32xf32>
    %cst_70 = arith.constant dense<0.000000e+00> : vector<16x8xf32>
    %176 = tpu.matmul %175, %162, %cst_70 {dimension_numbers = #tpu.dot_dimension_numbers<[1], [0], [0], [1], [0, 0, 1, 1], [], []>} : vector<16x32xf32>, vector<32x8xf32>, vector<16x8xf32> -> vector<16x8xf32>
    %c0_71 = arith.constant 0 : index
    %c0_72 = arith.constant 0 : index
    %177 = vector.load %arg8[%c0_71, %c0_72] : memref<16x32xf32, #tpu.memory_space<vmem>>, vector<16x8xf32>
    tpu.vector_store %arg8[%c0_71, %c0_72], %176 {strides = array<i32>} : memref<16x32xf32, #tpu.memory_space<vmem>>, vector<16x8xf32>,
    %178 = vector.extract_strided_slice %157 {offsets = [0, 8], sizes = [16, 8], strides = [1, 1]} : vector<16x32xf32> to vector<16x8xf32>
    %179 = vector.extract_strided_slice %158 {offsets = [0, 8], sizes = [32, 8], strides = [1, 1]} : vector<32x32xf32> to vector<32x8xf32>
    %180 = vector.extract_strided_slice %159 {offsets = [0, 8], sizes = [32, 8], strides = [1, 1]} : vector<32x32xf32> to vector<32x8xf32>
    %cst_73 = arith.constant dense<0.000000e+00> : vector<16x32xf32>
    %181 = tpu.matmul %178, %179, %cst_73 {dimension_numbers = #tpu.dot_dimension_numbers<[1], [1], [0], [0], [0, 0, 1, 0], [], []>} : vector<16x8xf32>, vector<32x8xf32>, vector<16x32xf32> -> vector<16x32xf32>
    %cst_74 = arith.constant 0.353553385 : f32
    %182 = vector.broadcast %cst_74 : f32 to vector<16x32xf32>
    %183 = arith.mulf %181, %182 : vector<16x32xf32>
    %184 = arith.addf %183, %19 : vector<16x32xf32>
    %cst_75 = arith.constant dense<0xFF800000> : vector<16xf32>
    %185 = vector.multi_reduction <maximumf>, %184, %cst_75 [1] : vector<16x32xf32> to vector<16xf32>
    %186 = vector.shape_cast %185 : vector<16xf32> to vector<16x1xf32>
    %187 = vector.broadcast %186 : vector<16x1xf32> to vector<16x32xf32>
    %188 = arith.subf %184, %187 : vector<16x32xf32>
    %189 = math.exp %188 : vector<16x32xf32>
    %cst_76 = arith.constant dense<0.000000e+00> : vector<16xf32>
    %190 = vector.multi_reduction <add>, %189, %cst_76 [1] : vector<16x32xf32> to vector<16xf32>
    %191 = vector.shape_cast %190 : vector<16xf32> to vector<16x1xf32>
    %192 = vector.broadcast %191 : vector<16x1xf32> to vector<16x32xf32>
    %193 = arith.divf %189, %192 : vector<16x32xf32>
    %cst_77 = arith.constant dense<0.000000e+00> : vector<16x8xf32>
    %194 = tpu.matmul %193, %180, %cst_77 {dimension_numbers = #tpu.dot_dimension_numbers<[1], [0], [0], [1], [0, 0, 1, 1], [], []>} : vector<16x32xf32>, vector<32x8xf32>, vector<16x8xf32> -> vector<16x8xf32>
    %c0_78 = arith.constant 0 : index
    %c8_79 = arith.constant 8 : index
    %195 = vector.load %arg8[%c0_78, %c8_79] : memref<16x32xf32, #tpu.memory_space<vmem>>, vector<16x8xf32>
    tpu.vector_store %arg8[%c0_78, %c8_79], %194 {strides = array<i32>} : memref<16x32xf32, #tpu.memory_space<vmem>>, vector<16x8xf32>,
    %196 = vector.extract_strided_slice %157 {offsets = [0, 16], sizes = [16, 8], strides = [1, 1]} : vector<16x32xf32> to vector<16x8xf32>
    %197 = vector.extract_strided_slice %158 {offsets = [0, 16], sizes = [32, 8], strides = [1, 1]} : vector<32x32xf32> to vector<32x8xf32>
    %198 = vector.extract_strided_slice %159 {offsets = [0, 16], sizes = [32, 8], strides = [1, 1]} : vector<32x32xf32> to vector<32x8xf32>
    %cst_80 = arith.constant dense<0.000000e+00> : vector<16x32xf32>
    %199 = tpu.matmul %196, %197, %cst_80 {dimension_numbers = #tpu.dot_dimension_numbers<[1], [1], [0], [0], [0, 0, 1, 0], [], []>} : vector<16x8xf32>, vector<32x8xf32>, vector<16x32xf32> -> vector<16x32xf32>
    %cst_81 = arith.constant 0.353553385 : f32
    %200 = vector.broadcast %cst_81 : f32 to vector<16x32xf32>
    %201 = arith.mulf %199, %200 : vector<16x32xf32>
    %202 = arith.addf %201, %19 : vector<16x32xf32>
    %cst_82 = arith.constant dense<0xFF800000> : vector<16xf32>
    %203 = vector.multi_reduction <maximumf>, %202, %cst_82 [1] : vector<16x32xf32> to vector<16xf32>
    %204 = vector.shape_cast %203 : vector<16xf32> to vector<16x1xf32>
    %205 = vector.broadcast %204 : vector<16x1xf32> to vector<16x32xf32>
    %206 = arith.subf %202, %205 : vector<16x32xf32>
    %207 = math.exp %206 : vector<16x32xf32>
    %cst_83 = arith.constant dense<0.000000e+00> : vector<16xf32>
    %208 = vector.multi_reduction <add>, %207, %cst_83 [1] : vector<16x32xf32> to vector<16xf32>
    %209 = vector.shape_cast %208 : vector<16xf32> to vector<16x1xf32>
    %210 = vector.broadcast %209 : vector<16x1xf32> to vector<16x32xf32>
    %211 = arith.divf %207, %210 : vector<16x32xf32>
    %cst_84 = arith.constant dense<0.000000e+00> : vector<16x8xf32>
    %212 = tpu.matmul %211, %198, %cst_84 {dimension_numbers = #tpu.dot_dimension_numbers<[1], [0], [0], [1], [0, 0, 1, 1], [], []>} : vector<16x32xf32>, vector<32x8xf32>, vector<16x8xf32> -> vector<16x8xf32>
    %c0_85 = arith.constant 0 : index
    %c16_86 = arith.constant 16 : index
    %213 = vector.load %arg8[%c0_85, %c16_86] : memref<16x32xf32, #tpu.memory_space<vmem>>, vector<16x8xf32>
    tpu.vector_store %arg8[%c0_85, %c16_86], %212 {strides = array<i32>} : memref<16x32xf32, #tpu.memory_space<vmem>>, vector<16x8xf32>,
    %214 = vector.extract_strided_slice %157 {offsets = [0, 24], sizes = [16, 8], strides = [1, 1]} : vector<16x32xf32> to vector<16x8xf32>
    %215 = vector.extract_strided_slice %158 {offsets = [0, 24], sizes = [32, 8], strides = [1, 1]} : vector<32x32xf32> to vector<32x8xf32>
    %216 = vector.extract_strided_slice %159 {offsets = [0, 24], sizes = [32, 8], strides = [1, 1]} : vector<32x32xf32> to vector<32x8xf32>
    %cst_87 = arith.constant dense<0.000000e+00> : vector<16x32xf32>
    %217 = tpu.matmul %214, %215, %cst_87 {dimension_numbers = #tpu.dot_dimension_numbers<[1], [1], [0], [0], [0, 0, 1, 0], [], []>} : vector<16x8xf32>, vector<32x8xf32>, vector<16x32xf32> -> vector<16x32xf32>
    %cst_88 = arith.constant 0.353553385 : f32
    %218 = vector.broadcast %cst_88 : f32 to vector<16x32xf32>
    %219 = arith.mulf %217, %218 : vector<16x32xf32>
    %220 = arith.addf %219, %19 : vector<16x32xf32>
    %cst_89 = arith.constant dense<0xFF800000> : vector<16xf32>
    %221 = vector.multi_reduction <maximumf>, %220, %cst_89 [1] : vector<16x32xf32> to vector<16xf32>
    %222 = vector.shape_cast %221 : vector<16xf32> to vector<16x1xf32>
    %223 = vector.broadcast %222 : vector<16x1xf32> to vector<16x32xf32>
    %224 = arith.subf %220, %223 : vector<16x32xf32>
    %225 = math.exp %224 : vector<16x32xf32>
    %cst_90 = arith.constant dense<0.000000e+00> : vector<16xf32>
    %226 = vector.multi_reduction <add>, %225, %cst_90 [1] : vector<16x32xf32> to vector<16xf32>
    %227 = vector.shape_cast %226 : vector<16xf32> to vector<16x1xf32>
    %228 = vector.broadcast %227 : vector<16x1xf32> to vector<16x32xf32>
    %229 = arith.divf %225, %228 : vector<16x32xf32>
    %cst_91 = arith.constant dense<0.000000e+00> : vector<16x8xf32>
    %230 = tpu.matmul %229, %216, %cst_91 {dimension_numbers = #tpu.dot_dimension_numbers<[1], [0], [0], [1], [0, 0, 1, 1], [], []>} : vector<16x32xf32>, vector<32x8xf32>, vector<16x8xf32> -> vector<16x8xf32>
    %c0_92 = arith.constant 0 : index
    %c24_93 = arith.constant 24 : index
    %231 = vector.load %arg8[%c0_92, %c24_93] : memref<16x32xf32, #tpu.memory_space<vmem>>, vector<16x8xf32>
    tpu.vector_store %arg8[%c0_92, %c24_93], %230 {strides = array<i32>} : memref<16x32xf32, #tpu.memory_space<vmem>>, vector<16x8xf32>,
    %c0_94 = arith.constant 0 : index
    %c0_95 = arith.constant 0 : index
    %232 = vector.load %arg8[%c0_94, %c0_95] : memref<16x32xf32, #tpu.memory_space<vmem>>, vector<16x32xf32>
    %cst_96 = arith.constant dense<0.000000e+00> : vector<16x32xf32>
    %233 = tpu.matmul %232, %3, %cst_96 {dimension_numbers = #tpu.dot_dimension_numbers<[1], [0], [0], [1], [0, 0, 1, 1], [], []>} : vector<16x32xf32>, vector<32x32xf32>, vector<16x32xf32> -> vector<16x32xf32>
    %234 = vector.broadcast %11 : vector<1x32xf32> to vector<16x32xf32>
    %235 = arith.addf %233, %234 : vector<16x32xf32>
    %236 = arith.addf %126, %235 : vector<16x32xf32>
    %237 = vector.extract_strided_slice %14 {offsets = [2, 0], sizes = [1, 32], strides = [1, 1]} : vector<3x32xf32> to vector<1x32xf32>
    %238 = vector.extract_strided_slice %15 {offsets = [2, 0], sizes = [1, 32], strides = [1, 1]} : vector<3x32xf32> to vector<1x32xf32>
    %cst_97 = arith.constant dense<0.000000e+00> : vector<16xf32>
    %239 = vector.multi_reduction <add>, %236, %cst_97 [1] : vector<16x32xf32> to vector<16xf32>
    %240 = vector.shape_cast %239 : vector<16xf32> to vector<16x1xf32>
    %cst_98 = arith.constant 3.200000e+01 : f32
    %241 = vector.broadcast %cst_98 : f32 to vector<16x1xf32>
    %242 = arith.divf %240, %241 : vector<16x1xf32>
    %243 = vector.broadcast %242 : vector<16x1xf32> to vector<16x32xf32>
    %244 = arith.subf %236, %243 : vector<16x32xf32>
    %245 = arith.mulf %244, %244 : vector<16x32xf32>
    %cst_99 = arith.constant dense<0.000000e+00> : vector<16xf32>
    %246 = vector.multi_reduction <add>, %245, %cst_99 [1] : vector<16x32xf32> to vector<16xf32>
    %247 = vector.shape_cast %246 : vector<16xf32> to vector<16x1xf32>
    %cst_100 = arith.constant 3.200000e+01 : f32
    %248 = vector.broadcast %cst_100 : f32 to vector<16x1xf32>
    %249 = arith.divf %247, %248 : vector<16x1xf32>
    %250 = vector.broadcast %242 : vector<16x1xf32> to vector<16x32xf32>
    %251 = arith.subf %236, %250 : vector<16x32xf32>
    %cst_101 = arith.constant 9.99999974E-6 : f32
    %252 = vector.broadcast %cst_101 : f32 to vector<16x1xf32>
    %253 = arith.addf %249, %252 : vector<16x1xf32>
    %254 = math.rsqrt %253 : vector<16x1xf32>
    %255 = vector.broadcast %254 : vector<16x1xf32> to vector<16x32xf32>
    %256 = arith.mulf %251, %255 : vector<16x32xf32>
    %257 = vector.broadcast %237 : vector<1x32xf32> to vector<16x32xf32>
    %258 = arith.mulf %256, %257 : vector<16x32xf32>
    %259 = vector.broadcast %238 : vector<1x32xf32> to vector<16x32xf32>
    %260 = arith.addf %258, %259 : vector<16x32xf32>
    %cst_102 = arith.constant dense<0.000000e+00> : vector<16x64xf32>
    %261 = tpu.matmul %260, %7, %cst_102 {dimension_numbers = #tpu.dot_dimension_numbers<[1], [0], [0], [1], [0, 0, 1, 1], [], []>} : vector<16x32xf32>, vector<32x64xf32>, vector<16x64xf32> -> vector<16x64xf32>
    %262 = vector.broadcast %12 : vector<1x64xf32> to vector<16x64xf32>
    %263 = arith.addf %261, %262 : vector<16x64xf32>
    %cst_103 = arith.constant 0.000000e+00 : f32
    %264 = vector.broadcast %cst_103 : f32 to vector<16x64xf32>
    %265 = arith.maximumf %263, %264 : vector<16x64xf32>
    %cst_104 = arith.constant dense<0.000000e+00> : vector<16x32xf32>
    %266 = tpu.matmul %265, %4, %cst_104 {dimension_numbers = #tpu.dot_dimension_numbers<[1], [0], [0], [1], [0, 0, 1, 1], [], []>} : vector<16x64xf32>, vector<64x32xf32>, vector<16x32xf32> -> vector<16x32xf32>
    %267 = vector.broadcast %13 : vector<1x32xf32> to vector<16x32xf32>
    %268 = arith.addf %266, %267 : vector<16x32xf32>
    %269 = arith.addf %236, %268 : vector<16x32xf32>
    %c0_105 = arith.constant 0 : index
    %c0_106 = arith.constant 0 : index
    %270 = vector.load %arg7[%c0_105, %c0_106] : memref<16x32xf32, #tpu.memory_space<vmem>>, vector<16x32xf32>
    tpu.vector_store %arg7[%c0_105, %c0_106], %269 {strides = array<i32>} : memref<16x32xf32, #tpu.memory_space<vmem>>, vector<16x32xf32>,
    return
  }
  func.func @transform_0(%arg0: i32) -> (i32, i32) {
    %c0_i32 = arith.constant 0 : i32
    %c0_i32_0 = arith.constant 0 : i32
    return %arg0, %c0_i32 : i32, i32
  }
  func.func @transform_1(%arg0: i32) -> (i32, i32) {
    %c0_i32 = arith.constant 0 : i32
    %c0_i32_0 = arith.constant 0 : i32
    return %arg0, %c0_i32 : i32, i32
  }
  func.func @transform_2(%arg0: i32) -> (i32, i32) {
    %c0_i32 = arith.constant 0 : i32
    %c0_i32_0 = arith.constant 0 : i32
    return %arg0, %c0_i32 : i32, i32
  }
  func.func @transform_3(%arg0: i32) -> (i32, i32) {
    %c0_i32 = arith.constant 0 : i32
    %c0_i32_0 = arith.constant 0 : i32
    return %arg0, %c0_i32 : i32, i32
  }
  func.func @transform_4(%arg0: i32) -> (i32, i32) {
    %c0_i32 = arith.constant 0 : i32
    %c0_i32_0 = arith.constant 0 : i32
    %c0_i32_1 = arith.constant 0 : i32
    return %c0_i32, %c0_i32_0 : i32, i32
  }
  func.func @transform_5(%arg0: i32) -> (i32, i32) {
    %c0_i32 = arith.constant 0 : i32
    %c0_i32_0 = arith.constant 0 : i32
    %c0_i32_1 = arith.constant 0 : i32
    return %c0_i32, %c0_i32_0 : i32, i32
  }
  func.func @transform_6(%arg0: i32) -> (i32, i32) {
    %c0_i32 = arith.constant 0 : i32
    %c0_i32_0 = arith.constant 0 : i32
    return %arg0, %c0_i32 : i32, i32
  }
}

</mosaic_0001>

<llo_original>
// kernel: tpu_custom_call.1
$region0: #{tpu_custom_call.1}
  #allocation0 [shape = 'u32[]', space=smem, size = 0x4, offset = 0x4, fixed_abs, tag = 'smem constant byte address 0x4 - core index']
  #allocation1 [shape = 'u32[144,128]{1,0:T(1,128)}', space=vmem, size = 0x12000, scoped, tag = 'internal scratch']
  #allocation2 [shape = 'f32[16,32]{1,0:T(8,128)}', space=vmem, size = 0x2000, scoped, tag = 'scratch operand']
  %s0 = inlined_call_operand.hbm [shape: f32[32,32], index: 0, kind: input, shape index: {}]
  %s1 = inlined_call_operand.vmem [shape: f32[64,32], index: 1, kind: input, shape index: {}]
  %s2 = inlined_call_operand.vmem [shape: bf16[32,16], index: 2, kind: input, shape index: {}]
  %s3 = inlined_call_operand.hbm [shape: bf16[32,32], index: 3, kind: input, shape index: {}]
  %s4 = inlined_call_operand.vmem [shape: f32[128,128], index: 4, kind: input, shape index: {}]
  %s5 = inlined_call_operand.hbm [shape: f32[16,128], index: 5, kind: input, shape index: {}]
  %s6 = inlined_call_operand.hbm [shape: f32[32,32], index: 6, kind: output, shape index: {}]
  %s7 = sld [smem:[#allocation0]]
  $region69: #{tpu_custom_call.1} parent=0
    _
  %s9 = ssub.s32 1, %s7
  %s10 = scalar_select 0, %s9, %s7
  $region1: #{tpu_custom_call.1} parent=0
    #allocation3 [shape = 'u8[16384]{0}', space=vmem, size = 0x4000, scoped, tag = 'input window, operand 0']
    #allocation4 [shape = 's32[2]{0}', space=sflag, size = 0x8, scoped, tag = 'scoped memory for tpu_custom_call.1']
    #allocation5 [shape = 's32[2]{0}', space=sflag, size = 0x8, scoped, tag = 'scoped memory for tpu_custom_call.1']
    #allocation6 [shape = 'u8[8192]{0}', space=vmem, size = 0x2000, scoped, tag = 'input window, operand 3']
    #allocation7 [shape = 's32[2]{0}', space=sflag, size = 0x8, scoped, tag = 'scoped memory for tpu_custom_call.1']
    #allocation8 [shape = 'u8[8192]{0}', space=vmem, size = 0x2000, scoped, tag = 'input window, operand 5, single buffered']
    #allocation9 [shape = 'u8[16384]{0}', space=vmem, size = 0x4000, scoped, tag = 'output window, operand 0']
    %11 = vsyncpa [#allocation4], 0
    %s12 = scalar_lea.sflag [#allocation4], 1
    %13 = vsyncpa %s12, 0
    %14 = vsyncpa [#allocation7], 0
    %s15 = scalar_lea.sflag [#allocation7], 1
    %16 = vsyncpa %s15, 0
    %17 = vsyncpa [#allocation5], 0
    %s18 = scalar_lea.sflag [#allocation5], 1
    %19 = vsyncpa %s18, 0
    loop: start=0, step=1, limit=4
    $region2: #{tpu_custom_call.1} parent=1 // loop_pre_header
      _
    $region3: #{tpu_custom_call.1} parent=1 // loop_header
      %s21 = sphi 0, %s25
      %p22 = scmp.ge.s32.totalorder %s21, 4
      %s31 = sphi 0, %s33
      %s34 = sphi 0, %s31
      %s35 = sphi 0, %s34
      %s51 = sphi 0, %s35
      %s57 = sphi 0, %s59
      %s60 = sphi 0, %s57
      %s61 = sphi 0, %s60
      %s77 = sphi 0, %s61
      %s83 = sphi 0, %s85
      %s86 = sphi 0, %s83
      %s87 = sphi 0, %s86
      %s103 = sphi 0, %s87
      %s109 = sphi 0, %s111
      %s112 = sphi 0, %s109
      %s113 = sphi 0, %s112
      %s129 = sphi 0, %s113
      %s133 = sphi 0, %s133
      %s135 = sphi 0, %s133
      %s136 = sphi 0, %s135
      %s150 = sphi 0, %s136
      %s154 = sphi 0, %s154
      %s156 = sphi 0, %s154
      %s157 = sphi 0, %s156
      %s171 = sphi 0, %s157
      %s177 = sphi 0, %s179
      %s180 = sphi 0, %s177
      %s181 = sphi 0, %s180
      %s197 = sphi 0, %s181
    $region4: #{tpu_custom_call.1} parent=1 // loop_header_branch
      %24 = sbr.rel (%p22) target = $region8
    $region5: #{tpu_custom_call.1} parent=1 // loop_body
      %s26 = ssub.s32 %s21, 1
      %s27 = ssub.s32 %s21, 2
      %s28 = sadd.s32 %s21, 1
      %s29 = ssub.s32 %s21, %s28
      %p30 = scmp.eq.s32.totalorder %s29, 0
      %s32 = sadd.s32 %s31, 1
      %s33 = scalar_select %p30, %s31, %s32
      %p36 = pneg %p30
      %p37 = scmp.eq.s32.totalorder %s21, 1
      %p38 = por %p36, %p37
      %p39 = scmp.ne.s32.totalorder %s31, %s34
      %p40 = scmp.eq.s32.totalorder %s21, 0
      %p41 = por %p39, %p40
      %p42 = scmp.ne.s32.totalorder %s31, %s34
      %p43 = scmp.eq.s32.totalorder %s26, 1
      %p44 = por %p42, %p43
      %p45 = scmp.ne.s32.totalorder %s34, %s35
      %p46 = scmp.eq.s32.totalorder %s26, 0
      %p47 = por %p45, %p46
      %p48 = scmp.ne.s32.totalorder %s34, %s35
      %p49 = scmp.eq.s32.totalorder %s27, 1
      %p50 = por %p48, %p49
      %p52 = scmp.ne.s32.totalorder %s35, %s51
      %p53 = scmp.eq.s32.totalorder %s27, 0
      %p54 = por %p52, %p53
      %s55 = ssub.s32 %s21, %s28
      %p56 = scmp.eq.s32.totalorder %s55, 0
      %s58 = sadd.s32 %s57, 1
      %s59 = scalar_select %p56, %s57, %s58
      %p62 = pneg %p56
      %p63 = scmp.eq.s32.totalorder %s21, 1
      %p64 = por %p62, %p63
      %p65 = scmp.ne.s32.totalorder %s57, %s60
      %p66 = scmp.eq.s32.totalorder %s21, 0
      %p67 = por %p65, %p66
      %p68 = scmp.ne.s32.totalorder %s57, %s60
      %p69 = scmp.eq.s32.totalorder %s26, 1
      %p70 = por %p68, %p69
      %p71 = scmp.ne.s32.totalorder %s60, %s61
      %p72 = scmp.eq.s32.totalorder %s26, 0
      %p73 = por %p71, %p72
      %p74 = scmp.ne.s32.totalorder %s60, %s61
      %p75 = scmp.eq.s32.totalorder %s27, 1
      %p76 = por %p74, %p75
      %p78 = scmp.ne.s32.totalorder %s61, %s77
      %p79 = scmp.eq.s32.totalorder %s27, 0
      %p80 = por %p78, %p79
      %s81 = ssub.s32 %s21, %s28
      %p82 = scmp.eq.s32.totalorder %s81, 0
      %s84 = sadd.s32 %s83, 1
      %s85 = scalar_select %p82, %s83, %s84
      %p88 = pneg %p82
      %p89 = scmp.eq.s32.totalorder %s21, 1
      %p90 = por %p88, %p89
      %p91 = scmp.ne.s32.totalorder %s83, %s86
      %p92 = scmp.eq.s32.totalorder %s21, 0
      %p93 = por %p91, %p92
      %p94 = scmp.ne.s32.totalorder %s83, %s86
      %p95 = scmp.eq.s32.totalorder %s26, 1
      %p96 = por %p94, %p95
      %p97 = scmp.ne.s32.totalorder %s86, %s87
      %p98 = scmp.eq.s32.totalorder %s26, 0
      %p99 = por %p97, %p98
      %p100 = scmp.ne.s32.totalorder %s86, %s87
      %p101 = scmp.eq.s32.totalorder %s27, 1
      %p102 = por %p100, %p101
      %p104 = scmp.ne.s32.totalorder %s87, %s103
      %p105 = scmp.eq.s32.totalorder %s27, 0
      %p106 = por %p104, %p105
      %s107 = ssub.s32 %s21, %s28
      %p108 = scmp.eq.s32.totalorder %s107, 0
      %s110 = sadd.s32 %s109, 1
      %s111 = scalar_select %p108, %s109, %s110
      %p114 = pneg %p108
      %p115 = scmp.eq.s32.totalorder %s21, 1
      %p116 = por %p114, %p115
      %p117 = scmp.ne.s32.totalorder %s109, %s112
      %p118 = scmp.eq.s32.totalorder %s21, 0
      %p119 = por %p117, %p118
      %p120 = scmp.ne.s32.totalorder %s109, %s112
      %p121 = scmp.eq.s32.totalorder %s26, 1
      %p122 = por %p120, %p121
      %p123 = scmp.ne.s32.totalorder %s112, %s113
      %p124 = scmp.eq.s32.totalorder %s26, 0
      %p125 = por %p123, %p124
      %p126 = scmp.ne.s32.totalorder %s112, %s113
      %p127 = scmp.eq.s32.totalorder %s27, 1
      %p128 = por %p126, %p127
      %p130 = scmp.ne.s32.totalorder %s113, %s129
      %p131 = scmp.eq.s32.totalorder %s27, 0
      %p132 = por %p130, %p131
      %s134 = sadd.s32 %s133, 1
      %p137 = scmp.eq.s32.totalorder %s21, 1
      %p138 = scmp.ne.s32.totalorder %s133, %s135
      %p139 = scmp.eq.s32.totalorder %s21, 0
      %p140 = por %p138, %p139
      %p141 = scmp.ne.s32.totalorder %s133, %s135
      %p142 = scmp.eq.s32.totalorder %s26, 1
      %p143 = por %p141, %p142
      %p144 = scmp.ne.s32.totalorder %s135, %s136
      %p145 = scmp.eq.s32.totalorder %s26, 0
      %p146 = por %p144, %p145
      %p147 = scmp.ne.s32.totalorder %s135, %s136
      %p148 = scmp.eq.s32.totalorder %s27, 1
      %p149 = por %p147, %p148
      %p151 = scmp.ne.s32.totalorder %s136, %s150
      %p152 = scmp.eq.s32.totalorder %s27, 0
      %p153 = por %p151, %p152
      %s155 = sadd.s32 %s154, 1
      %p158 = scmp.eq.s32.totalorder %s21, 1
      %p159 = scmp.ne.s32.totalorder %s154, %s156
      %p160 = scmp.eq.s32.totalorder %s21, 0
      %p161 = por %p159, %p160
      %p162 = scmp.ne.s32.totalorder %s154, %s156
      %p163 = scmp.eq.s32.totalorder %s26, 1
      %p164 = por %p162, %p163
      %p165 = scmp.ne.s32.totalorder %s156, %s157
      %p166 = scmp.eq.s32.totalorder %s26, 0
      %p167 = por %p165, %p166
      %p168 = scmp.ne.s32.totalorder %s156, %s157
      %p169 = scmp.eq.s32.totalorder %s27, 1
      %p170 = por %p168, %p169
      %p172 = scmp.ne.s32.totalorder %s157, %s171
      %p173 = scmp.eq.s32.totalorder %s27, 0
      %p174 = por %p172, %p173
      %s175 = ssub.s32 %s21, %s28
      %p176 = scmp.eq.s32.totalorder %s175, 0
      %s178 = sadd.s32 %s177, 1
      %s179 = scalar_select %p176, %s177, %s178
      %p182 = pneg %p176
      %p183 = scmp.eq.s32.totalorder %s21, 1
      %p184 = por %p182, %p183
      %p185 = scmp.ne.s32.totalorder %s177, %s180
      %p186 = scmp.eq.s32.totalorder %s21, 0
      %p187 = por %p185, %p186
      %p188 = scmp.ne.s32.totalorder %s177, %s180
      %p189 = scmp.eq.s32.totalorder %s26, 1
      %p190 = por %p188, %p189
      %p191 = scmp.ne.s32.totalorder %s180, %s181
      %p192 = scmp.eq.s32.totalorder %s26, 0
      %p193 = por %p191, %p192
      %p194 = scmp.ne.s32.totalorder %s180, %s181
      %p195 = scmp.eq.s32.totalorder %s27, 1
      %p196 = por %p194, %p195
      %p198 = scmp.ne.s32.totalorder %s181, %s197
      %p199 = scmp.eq.s32.totalorder %s27, 0
      %p200 = por %p198, %p199
      %p201 = scmp.le.s32.totalorder 1, %s21
      %p202 = scmp.lt.s32.totalorder %s21, 3
      %p203 = pnand %p201, %p202
      %p204 = pneg %p203
      // Predicated region
      $region9: #{tpu_custom_call.1} parent=5 // pred_check
        _
      $region10: #{tpu_custom_call.1} parent=5 // pred_check_branch
        %206 = sbr.rel (%p203) target = $region12
      $region11: #{tpu_custom_call.1} parent=5 // pred_region
        %s207 = ssub.s32 %s21, 1
        // Predicated region
        $region13: #{tpu_custom_call.1} parent=11 // pred_check
          %p208 = pneg %p146
        $region14: #{tpu_custom_call.1} parent=11 // pred_check_branch
          %210 = sbr.rel (%p208) target = $region16
        $region15: #{tpu_custom_call.1} parent=11 // pred_region
          _
        $region16: #{tpu_custom_call.1} parent=11 // pred_fallthru
          _
        // Predicated region
        $region17: #{tpu_custom_call.1} parent=11 // pred_check
          %p211 = pneg %p167
        $region18: #{tpu_custom_call.1} parent=11 // pred_check_branch
          %213 = sbr.rel (%p211) target = $region20
        $region19: #{tpu_custom_call.1} parent=11 // pred_region
          %s215 = ssub.s32 256, 256
          %216 = vsyncadd [#allocation7], %s215
          %s217 = sshll.u32 [#allocation8], 4
          %s218 = int_to_ptr.vmem [resolvable:$true] %s217
          %223 = dma.hbm_to_vmem [thread:$0]  %s5, 256, %s218, [#allocation7], 128, 128, 8
        $region20: #{tpu_custom_call.1} parent=11 // pred_fallthru
          _
      $region12: #{tpu_custom_call.1} parent=5 // pred_fallthru
        _
      %p224 = scmp.lt.s32.totalorder %s21, 2
      // Predicated region
      $region21: #{tpu_custom_call.1} parent=5 // pred_check
        %p225 = pneg %p224
      $region22: #{tpu_custom_call.1} parent=5 // pred_check_branch
        %227 = sbr.rel (%p225) target = $region24
      $region23: #{tpu_custom_call.1} parent=5 // pred_region
        // Predicated region
        $region25: #{tpu_custom_call.1} parent=23 // pred_check
          %p228 = pneg %p41
        $region26: #{tpu_custom_call.1} parent=23 // pred_check_branch
          %230 = sbr.rel (%p228) target = $region28
        $region27: #{tpu_custom_call.1} parent=23 // pred_region
          %s231 = sand.u32 %s31, 1
          %s232 = scalar_lea.sflag [#allocation4], %s231
          %s233 = sand.u32 %s31, 1
          %s234 = smul.addr %s233, 16
          %s235 = scalar_lea.vmem [#allocation3], %s234
          %s236 = smul.u32 2, %s21
          %s238 = ssub.s32 256, 256
          %239 = vsyncadd %s232, %s238
          %s240 = smul.addr %s236, 128
          %s241 = scalar_lea.hbm %s0, %s240
          %s242 = sshll.u32 %s235, 4
          %s243 = int_to_ptr.vmem [resolvable:$true] %s242
          %248 = dma.hbm_to_vmem [thread:$0]  %s241, 256, %s243, %s232, 128, 128, 8
        $region28: #{tpu_custom_call.1} parent=23 // pred_fallthru
          _
        // Predicated region
        $region29: #{tpu_custom_call.1} parent=23 // pred_check
          %p249 = pneg %p67
        $region30: #{tpu_custom_call.1} parent=23 // pred_check_branch
          %251 = sbr.rel (%p249) target = $region32
        $region31: #{tpu_custom_call.1} parent=23 // pred_region
          %s252 = smul.u32 4, %s21
          %p253 = scmp.lt.s32.totalorder %s252, 7
          %s254 = scalar_select %p253, %s252, 7
          %s255 = smul.addr %s254, 8
          %s256 = scalar_lea.vmem %s1, %s255
          %s257 = smul.u32 4, %s21
        $region32: #{tpu_custom_call.1} parent=23 // pred_fallthru
          _
        // Predicated region
        $region33: #{tpu_custom_call.1} parent=23 // pred_check
          %p258 = pneg %p93
        $region34: #{tpu_custom_call.1} parent=23 // pred_check_branch
          %260 = sbr.rel (%p258) target = $region36
        $region35: #{tpu_custom_call.1} parent=23 // pred_region
          %s261 = smul.u32 2, %s21
          %p262 = scmp.lt.s32.totalorder %s261, 3
          %s263 = scalar_select %p262, %s261, 3
          %s264 = smul.addr %s263, 4
          %s265 = scalar_lea.vmem %s2, %s264
          %s266 = smul.u32 2, %s21
        $region36: #{tpu_custom_call.1} parent=23 // pred_fallthru
          _
        // Predicated region
        $region37: #{tpu_custom_call.1} parent=23 // pred_check
          %p267 = pneg %p119
        $region38: #{tpu_custom_call.1} parent=23 // pred_check_branch
          %269 = sbr.rel (%p267) target = $region40
        $region39: #{tpu_custom_call.1} parent=23 // pred_region
          %s270 = sand.u32 %s21, 1
          %s271 = scalar_lea.sflag [#allocation7], %s270
          %s272 = sand.u32 %s109, 1
          %s273 = smul.addr %s272, 8
          %s274 = scalar_lea.vmem [#allocation6], %s273
          %s275 = smul.u32 2, %s21
          %s277 = ssub.s32 128, 128
          %278 = vsyncadd %s271, %s277
          %s279 = smul.addr %s275, 64
          %s280 = scalar_lea.hbm %s3, %s279
          %s281 = sshll.u32 %s274, 4
          %s282 = int_to_ptr.vmem [resolvable:$true] %s281
          %287 = dma.hbm_to_vmem [thread:$0]  %s280, 128, %s282, %s271, 64, 64, 4
        $region40: #{tpu_custom_call.1} parent=23 // pred_fallthru
          _
      $region24: #{tpu_custom_call.1} parent=5 // pred_fallthru
        _
      %p288 = scmp.le.s32.totalorder 1, %s21
      %p289 = scmp.lt.s32.totalorder %s21, 3
      %p290 = pnand %p288, %p289
      %p291 = pneg %p290
      // Predicated region
      $region41: #{tpu_custom_call.1} parent=5 // pred_check
        _
      $region42: #{tpu_custom_call.1} parent=5 // pred_check_branch
        %293 = sbr.rel (%p290) target = $region44
      $region43: #{tpu_custom_call.1} parent=5 // pred_region
        %s294 = ssub.s32 %s21, 1
        %s295 = sand.u32 %s34, 1
        %s296 = scalar_lea.sflag [#allocation4], %s295
        %s297 = sand.u32 %s34, 1
        %s298 = smul.addr %s297, 16
        %s299 = scalar_lea.vmem [#allocation3], %s298
        // Predicated region
        $region45: #{tpu_custom_call.1} parent=43 // pred_check
          %p300 = pneg %p47
        $region46: #{tpu_custom_call.1} parent=43 // pred_check_branch
          %302 = sbr.rel (%p300) target = $region48
        $region47: #{tpu_custom_call.1} parent=43 // pred_region
          %303 = dma.done %s296, 256
        $region48: #{tpu_custom_call.1} parent=43 // pred_fallthru
          _
        %s304 = sand.u32 %s26, 1
        %s305 = scalar_lea.sflag [#allocation7], %s304
        %s306 = sand.u32 %s112, 1
        %s307 = smul.addr %s306, 8
        %s308 = scalar_lea.vmem [#allocation6], %s307
        // Predicated region
        $region49: #{tpu_custom_call.1} parent=43 // pred_check
          %p309 = pneg %p125
        $region50: #{tpu_custom_call.1} parent=43 // pred_check_branch
          %311 = sbr.rel (%p309) target = $region52
        $region51: #{tpu_custom_call.1} parent=43 // pred_region
          %312 = dma.done %s305, 128
        $region52: #{tpu_custom_call.1} parent=43 // pred_fallthru
          _
        // Predicated region
        $region53: #{tpu_custom_call.1} parent=43 // pred_check
          %p313 = pneg %p167
        $region54: #{tpu_custom_call.1} parent=43 // pred_check_branch
          %315 = sbr.rel (%p313) target = $region56
        $region55: #{tpu_custom_call.1} parent=43 // pred_region
          %316 = dma.done [#allocation7], 256
        $region56: #{tpu_custom_call.1} parent=43 // pred_fallthru
          _
        %s317 = sand.u32 %s34, 1
        %s318 = scalar_lea.sflag [#allocation4], %s317
        %s319 = sand.u32 %s34, 1
        %s320 = smul.addr %s319, 16
        %s321 = scalar_lea.vmem [#allocation3], %s320
        %p322 = pneg %p47
        %p323 = pneg %p44
        %s324 = smul.u32 4, %s26
        %p325 = scmp.lt.s32.totalorder %s324, 7
        %s326 = scalar_select %p325, %s324, 7
        %s327 = smul.addr %s326, 8
        %s328 = scalar_lea.vmem %s1, %s327
        %p329 = pneg %p73
        %p330 = pneg %p70
        %s331 = smul.u32 2, %s26
        %p332 = scmp.lt.s32.totalorder %s331, 3
        %s333 = scalar_select %p332, %s331, 3
        %s334 = smul.addr %s333, 4
        %s335 = scalar_lea.vmem %s2, %s334
        %p336 = pneg %p99
        %p337 = pneg %p96
        %s338 = sand.u32 %s26, 1
        %s339 = scalar_lea.sflag [#allocation7], %s338
        %s340 = sand.u32 %s112, 1
        %s341 = smul.addr %s340, 8
        %s342 = scalar_lea.vmem [#allocation6], %s341
        %p343 = pneg %p125
        %p344 = pneg %p122
        %p345 = pneg %p146
        %p346 = pneg %p143
        %p347 = pneg %p167
        %p348 = pneg %p164
        %p349 = pneg %p193
        %p350 = pneg %p190
        %s351 = sand.u32 %s180, 1
        %s352 = scalar_lea.sflag [#allocation5], %s351
        %s353 = sand.u32 %s180, 1
        %s354 = smul.addr %s353, 16
        %s355 = scalar_lea.vmem [#allocation9], %s354
        %s356 = smul.u32 2, %s26
        %s357 = smul.u32 4, %s26
        %p358 = scmp.lt.s32.totalorder %s357, 7
        %s359 = scalar_select %p358, %s357, 7
        %s360 = smul.addr %s359, 8
        %s361 = scalar_lea.vmem %s1, %s360
        %s362 = smul.u32 4, %s26
        %s363 = smul.u32 2, %s26
        %p364 = scmp.lt.s32.totalorder %s363, 3
        %s365 = scalar_select %p364, %s363, 3
        %s366 = smul.addr %s365, 4
        %s367 = scalar_lea.vmem %s2, %s366
        %s368 = smul.u32 2, %s26
        %s369 = smul.u32 2, %s26
        %s370 = smul.u32 2, %s26
        %v371 = vld [vmem:[%s299] sm:$0xff]
        %v372 = vld [vmem:[%s299 + $0x8] sm:$0xff]
        %v373 = vld [vmem:[%s361] sm:$0xff]
        %v374 = vld [vmem:[%s361 + $0x8] sm:$0xff]
        %v375 = vld [vmem:[%s361 + $0x10] sm:$0xff]
        %v376 = vld [vmem:[%s361 + $0x18] sm:$0xff]
        %v377 = vld [vmem:[%s4] sm:$0xff]
        %v378 = vld [vmem:[%s4 + $0x8] sm:$0xff]
        %v379 = vld [vmem:[%s4 + $0x10] sm:$0xff]
        %v380 = vld [vmem:[%s4 + $0x18] sm:$0xff]
        %v381 = vld [vmem:[%s4 + $0x20] sm:$0xff]
        %v382 = vld [vmem:[%s4 + $0x28] sm:$0xff]
        %v383 = vld [vmem:[%s4 + $0x30] sm:$0xff]
        %v384 = vld [vmem:[%s4 + $0x38] sm:$0xff]
        %v385 = vld [vmem:[%s4 + $0x40] sm:$0xff]
        %v386 = vld [vmem:[%s4 + $0x48] sm:$0xff]
        %v387 = vld [vmem:[%s4 + $0x50] sm:$0xff]
        %v388 = vld [vmem:[%s4 + $0x58] sm:$0xff]
        %v389 = vld [vmem:[%s4 + $0x60] sm:$0xff]
        %v390 = vld [vmem:[%s4 + $0x68] sm:$0xff]
        %v391 = vld [vmem:[%s4 + $0x70] sm:$0xff]
        %v392 = vld [vmem:[%s4 + $0x78] sm:$0xff]
        %v393 = vld [vmem:[%s4 + $0x40] sm:$0xff]
        %v394 = vld [vmem:[%s4 + $0x48] sm:$0xff]
        %v395 = vld [vmem:[%s4 + $0x50] sm:$0xff]
        %v396 = vld [vmem:[%s4 + $0x58] sm:$0xff]
        %v397 = vld [vmem:[#allocation8] sm:$0x1]
        %v398 = vld [vmem:[#allocation8 + $0x1] sm:$0x1]
        %v399 = vld [vmem:[#allocation8 + $0x2] sm:$0x1]
        %v400 = vld [vmem:[#allocation8 + $0x3] sm:$0x1]
        %v401 = vld [vmem:[#allocation8 + $0x4] sm:$0x1]
        %v402 = vld [vmem:[#allocation8 + $0x5] sm:$0x1]
        %v403 = vld [vmem:[#allocation8 + $0x6] sm:$0x7]
        %v404 = vld [vmem:[#allocation8 + $0x9] sm:$0x7]
        %v405 = vld [vmem:[%s367] sm:$0xf]
        %v406 = vld [vmem:[%s367 + $0x4] sm:$0xf]
        %v407 = vunpack.c.l.bf16 %v405
        %v408 = vunpack.c.l.bf16 %v406
        %v409 = vld [vmem:[%s308] sm:$0xf]
        %v410 = vld [vmem:[%s308 + $0x4] sm:$0xf]
        %v411 = vunpack.c.l.bf16 %v409
        %v412 = vunpack.c.l.bf16 %v410
        %vm413 = vcmask 261120
        %v414 = vsel %vm413, %v371, 0.0
        %415 = vadd.xlane.f32.xlu0 %v414
        %v416 = vpop.xlane.xlu0 %415
        %v417 = vsel %vm413, %v372, 0.0
        %418 = vadd.xlane.f32.xlu0 %v417
        %v419 = vpop.xlane.xlu0 %418
        %v420 = vrcp.pop 32.0
        %v421 = vmul.f32 %v416, %v420
        %v422 = vmul.f32 %v419, %v420
        %v423 = vsub.f32 %v371, %v421
        %v424 = vsub.f32 %v372, %v422
        %v425 = vmul.f32 %v423, %v423
        %v426 = vmul.f32 %v424, %v424
        %v427 = vsel %vm413, %v425, 0.0
        %428 = vadd.xlane.f32.xlu0 %v427
        %v429 = vpop.xlane.xlu0 %428
        %v430 = vsel %vm413, %v426, 0.0
        %431 = vadd.xlane.f32.xlu0 %v430
        %v432 = vpop.xlane.xlu0 %431
        %v433 = vmul.f32 %v429, %v420
        %v434 = vmul.f32 %v432, %v420
        %v435 = vadd.f32 %v433, 1e-05
        %v436 = vadd.f32 %v434, 1e-05
        %v437 = vrsqrt.pop %v435
        %v438 = vrsqrt.pop %v436
        %v439 = vmul.f32 %v423, %v437
        %v440 = vmul.f32 %v424, %v438
        %v441 = vlaneseq
        %v442 = vshrl.u32 %v441, 7
        %v443 = vsub.s32 0, %v442
        %v444 = vrot.slane %v403, %v443
        %v445 = vmul.f32 %v439, %v444
        %v446 = vmul.f32 %v440, %v444
        %v447 = vlaneseq
        %v448 = vshrl.u32 %v447, 7
        %v449 = vsub.s32 0, %v448
        %v450 = vrot.slane %v404, %v449
        %v451 = vadd.f32 %v445, %v450
        %v452 = vadd.f32 %v446, %v450
        %v453 = vlaneseq
        %v454 = vshrl.u32 %v453, 7
        %v455 = vsub.s32 0, %v454
        %v456 = vrot.slane %v397, %v455
        %461 = vrot.lane.b32.xlu0 %v377, 96
        %v462 = vpop.permute.xlu0 %461
        %463 = vrot.lane.b32.xlu0 %v378, 96
        %v464 = vpop.permute.xlu0 %463
        %465 = vrot.lane.b32.xlu0 %v379, 96
        %v466 = vpop.permute.xlu0 %465
        %467 = vrot.lane.b32.xlu0 %v380, 96
        %v468 = vpop.permute.xlu0 %467
        %v474 = vsel %vm413, %v451, 0
        %v477 = vsel %vm413, %v452, 0
        %479 = vmatprep.subr.mxu0 0.0
        %480 = vmatpush1.msra.mxu0 %v462
        %481 = vmatprep.subr.mxu0 0.0
        %482 = vmatpush1.msra.mxu0 %v464
        %483 = vmatprep.subr.mxu0 0.0
        %484 = vmatpush1.msra.mxu0 %v466
        %485 = vmatprep.subr.mxu0 0.0
        %486 = vmatpush1.msra.mxu0 %v468
        %487 = vmatprep.subr.mxu0 0.0
        %488 = vmatpush1.msra.mxu0 0.0
        %489 = vmatprep.subr.mxu0 0.0
        %490 = vmatpush1.msra.mxu0 0.0
        %491 = vmatprep.subr.mxu0 0.0
        %492 = vmatpush1.msra.mxu0 0.0
        %493 = vmatprep.subr.mxu0 0.0
        %494 = vmatpush1.msra.mxu0 0.0
        %495 = vmatprep.subr.mxu0 0.0
        %496 = vmatpush1.msra.mxu0 0.0
        %497 = vmatprep.subr.mxu0 0.0
        %498 = vmatpush1.msra.mxu0 0.0
        %499 = vmatprep.subr.mxu0 0.0
        %500 = vmatpush1.msra.mxu0 0.0
        %501 = vmatprep.subr.mxu0 0.0
        %502 = vmatpush1.msra.mxu0 0.0
        %503 = vmatprep.subr.mxu0 0.0
        %504 = vmatpush1.msra.mxu0 0.0
        %505 = vmatprep.subr.mxu0 0.0
        %506 = vmatpush1.msra.mxu0 0.0
        %507 = vmatprep.subr.mxu0 0.0
        %508 = vmatpush1.msra.mxu0 0.0
        %509 = vmatprep.subr.mxu0 0.0
        %510 = vmatpush1.msra.mxu0 0.0
        %511 = vmatprep.subr.mxu0 0.0
        %512 = vmatpush1.msra.mxu0 0.0
        %513 = vmatprep.subr.mxu0 0.0
        %514 = vmatpush1.msra.mxu0 0.0
        %515 = vmatprep.subr.mxu0 0.0
        %516 = vmatpush1.msra.mxu0 0.0
        %517 = vmatprep.subr.mxu0 0.0
        %518 = vmatpush1.msra.mxu0 0.0
        %519 = vmatprep.subr.mxu0 0.0
        %520 = vmatpush1.msra.mxu0 0.0
        %521 = vmatprep.subr.mxu0 0.0
        %522 = vmatpush1.msra.mxu0 0.0
        %523 = vmatprep.subr.mxu0 0.0
        %524 = vmatpush1.msra.mxu0 0.0
        %525 = vmatprep.subr.mxu0 0.0
        %526 = vmatpush1.msra.mxu0 0.0
        %527 = vmatprep.subr.mxu0 0.0
        %528 = vmatpush1.msra.mxu0 0.0
        %529 = vmatprep.subr.mxu0 0.0
        %530 = vmatpush1.msra.mxu0 0.0
        %531 = vmatprep.subr.mxu0 0.0
        %532 = vmatpush1.msra.mxu0 0.0
        %533 = vmatprep.subr.mxu0 0.0
        %534 = vmatpush1.msra.mxu0 0.0
        %535 = vmatprep.subr.mxu0 0.0
        %536 = vmatpush1.msra.mxu0 0.0
        %537 = vmatprep.subr.mxu0 0.0
        %538 = vmatpush1.msra.mxu0 0.0
        %539 = vmatprep.subr.mxu0 0.0
        %540 = vmatpush1.msra.mxu0 0.0
        %541 = vmatprep.subr.mxu0 0.0
        %542 = vmatpush1.msra.mxu0 0.0
        %543 = vmatprep.mubr.f32.mxu0 0.0
        %544 = vmatmul.mubr.f32.gmra.mrb[0].mxu0 %v474
        %v545 = vpop.f32.mrb[0].mxu0
        %v546 = vadd.f32 %v456, %v545
        %v547 = vpop.f32.mrb[0].mxu0
        %548 = vmatprep.mubr.f32.mxu0 0.0
        %549 = vmatmul.mubr.f32.gmra.mrb[0].mxu0 %v477
        %v550 = vpop.f32.mrb[0].mxu0
        %v551 = vadd.f32 %v456, %v550
        %v552 = vpop.f32.mrb[0].mxu0
        %553 = vdwg.mxu0
        %556 = vrot.lane.b32.xlu0 %v546, 96
        %v557 = vpop.permute.xlu0 %556
        %558 = vrot.lane.b32.xlu0 %v551, 96
        %v559 = vpop.permute.xlu0 %558
        %vm560 = vcmask 64512
        %v561 = vsel %vm560, %v546, 0
        %v563 = vsel %vm560, %v551, 0
        %v565 = vsel %vm560, %v557, 0
        %v567 = vsel %vm560, %v559, 0
        %569 = vmatprep.subr.mxu0 0.0
        %570 = vmatpush1.xpose.msra.mxu0 %v565
        %571 = vmatprep.subr.mxu0 0.0
        %572 = vmatpush1.xpose.msra.mxu0 %v567
        %573 = vmatprep.subr.mxu0 0.0
        %574 = vmatpush1.xpose.msra.mxu0 0.0
        %575 = vmatprep.subr.mxu0 0.0
        %576 = vmatpush1.xpose.msra.mxu0 0.0
        %577 = vmatprep.subr.mxu0 0.0
        %578 = vmatpush1.xpose.msra.mxu0 0.0
        %579 = vmatprep.subr.mxu0 0.0
        %580 = vmatpush1.xpose.msra.mxu0 0.0
        %581 = vmatprep.subr.mxu0 0.0
        %582 = vmatpush1.xpose.msra.mxu0 0.0
        %583 = vmatprep.subr.mxu0 0.0
        %584 = vmatpush1.xpose.msra.mxu0 0.0
        %585 = vmatprep.subr.mxu0 0.0
        %586 = vmatpush1.xpose.msra.mxu0 0.0
        %587 = vmatprep.subr.mxu0 0.0
        %588 = vmatpush1.xpose.msra.mxu0 0.0
        %589 = vmatprep.subr.mxu0 0.0
        %590 = vmatpush1.xpose.msra.mxu0 0.0
        %591 = vmatprep.subr.mxu0 0.0
        %592 = vmatpush1.xpose.msra.mxu0 0.0
        %593 = vmatprep.subr.mxu0 0.0
        %594 = vmatpush1.xpose.msra.mxu0 0.0
        %595 = vmatprep.subr.mxu0 0.0
        %596 = vmatpush1.xpose.msra.mxu0 0.0
        %597 = vmatprep.subr.mxu0 0.0
        %598 = vmatpush1.xpose.msra.mxu0 0.0
        %599 = vmatprep.subr.mxu0 0.0
        %600 = vmatpush1.xpose.msra.mxu0 0.0
        %601 = vmatprep.subr.mxu0 0.0
        %602 = vmatpush1.xpose.msra.mxu0 0.0
        %603 = vmatprep.subr.mxu0 0.0
        %604 = vmatpush1.xpose.msra.mxu0 0.0
        %605 = vmatprep.subr.mxu0 0.0
        %606 = vmatpush1.xpose.msra.mxu0 0.0
        %607 = vmatprep.subr.mxu0 0.0
        %608 = vmatpush1.xpose.msra.mxu0 0.0
        %609 = vmatprep.subr.mxu0 0.0
        %610 = vmatpush1.xpose.msra.mxu0 0.0
        %611 = vmatprep.subr.mxu0 0.0
        %612 = vmatpush1.xpose.msra.mxu0 0.0
        %613 = vmatprep.subr.mxu0 0.0
        %614 = vmatpush1.xpose.msra.mxu0 0.0
        %615 = vmatprep.subr.mxu0 0.0
        %616 = vmatpush1.xpose.msra.mxu0 0.0
        %617 = vmatprep.subr.mxu0 0.0
        %618 = vmatpush1.xpose.msra.mxu0 0.0
        %619 = vmatprep.subr.mxu0 0.0
        %620 = vmatpush1.xpose.msra.mxu0 0.0
        %621 = vmatprep.subr.mxu0 0.0
        %622 = vmatpush1.xpose.msra.mxu0 0.0
        %623 = vmatprep.subr.mxu0 0.0
        %624 = vmatpush1.xpose.msra.mxu0 0.0
        %625 = vmatprep.subr.mxu0 0.0
        %626 = vmatpush1.xpose.msra.mxu0 0.0
        %627 = vmatprep.subr.mxu0 0.0
        %628 = vmatpush1.xpose.msra.mxu0 0.0
        %629 = vmatprep.subr.mxu0 0.0
        %630 = vmatpush1.xpose.msra.mxu0 0.0
        %631 = vmatprep.subr.mxu0 0.0
        %632 = vmatpush1.xpose.msra.mxu0 0.0
        %633 = vmatprep.mubr.f32.mxu0 0.0
        %634 = vmatmul.mubr.f32.gmra.mrb[0].mxu0 %v561
        %v635 = vpop.f32.mrb[0].mxu0
        %v636 = vadd.f32 0.0, %v635
        %v637 = vpop.f32.mrb[0].mxu0
        %638 = vmatprep.mubr.f32.mxu0 0.0
        %639 = vmatmul.mubr.f32.gmra.mrb[0].mxu0 %v563
        %v640 = vpop.f32.mrb[0].mxu0
        %v641 = vadd.f32 0.0, %v640
        %v642 = vpop.f32.mrb[0].mxu0
        %643 = vdwg.mxu0
        %v644 = vmul.f32 %v636, 0.35355338
        %v645 = vmul.f32 %v641, 0.35355338
        %v646 = vadd.f32 %v644, %v407
        %v647 = vadd.f32 %v645, %v408
        %vm648 = vcmask 130048
        %v649 = vsel %vm648, %v646, -inf
        %650 = vmax.xlane.f32.xlu0 %v649
        %v651 = vpop.xlane.xlu0 %650
        %v652 = vsel %vm648, %v647, -inf
        %653 = vmax.xlane.f32.xlu0 %v652
        %v654 = vpop.xlane.xlu0 %653
        %v655 = vsub.f32 %v646, %v651
        %v656 = vsub.f32 %v647, %v654
        %v657 = vmul.f32 %v655, 1.442695
        %v658 = vpow.pop %v657
        %v659 = vmul.f32 %v656, 1.442695
        %v660 = vpow.pop %v659
        %v661 = vsel %vm648, %v658, 0.0
        %662 = vadd.xlane.f32.xlu0 %v661
        %v663 = vpop.xlane.xlu0 %662
        %v664 = vsel %vm648, %v660, 0.0
        %665 = vadd.xlane.f32.xlu0 %v664
        %v666 = vpop.xlane.xlu0 %665
        %v667 = vrcp.pop %v663
        %v668 = vmul.f32 %v658, %v667
        %v669 = vrcp.pop %v666
        %v670 = vmul.f32 %v660, %v669
        %671 = vrot.lane.b32.xlu0 %v546, 64
        %v672 = vpop.permute.xlu0 %671
        %673 = vrot.lane.b32.xlu0 %v551, 64
        %v674 = vpop.permute.xlu0 %673
        %v678 = vsel %vm648, %v668, 0
        %v681 = vsel %vm648, %v670, 0
        %683 = vmatprep.subr.mxu0 0.0
        %684 = vmatpush1.msra.mxu0 %v672
        %685 = vmatprep.subr.mxu0 0.0
        %686 = vmatpush1.msra.mxu0 %v674
        %687 = vmatprep.subr.mxu0 0.0
        %688 = vmatpush1.msra.mxu0 0.0
        %689 = vmatprep.subr.mxu0 0.0
        %690 = vmatpush1.msra.mxu0 0.0
        %691 = vmatprep.subr.mxu0 0.0
        %692 = vmatpush1.msra.mxu0 0.0
        %693 = vmatprep.subr.mxu0 0.0
        %694 = vmatpush1.msra.mxu0 0.0
        %695 = vmatprep.subr.mxu0 0.0
        %696 = vmatpush1.msra.mxu0 0.0
        %697 = vmatprep.subr.mxu0 0.0
        %698 = vmatpush1.msra.mxu0 0.0
        %699 = vmatprep.subr.mxu0 0.0
        %700 = vmatpush1.msra.mxu0 0.0
        %701 = vmatprep.subr.mxu0 0.0
        %702 = vmatpush1.msra.mxu0 0.0
        %703 = vmatprep.subr.mxu0 0.0
        %704 = vmatpush1.msra.mxu0 0.0
        %705 = vmatprep.subr.mxu0 0.0
        %706 = vmatpush1.msra.mxu0 0.0
        %707 = vmatprep.subr.mxu0 0.0
        %708 = vmatpush1.msra.mxu0 0.0
        %709 = vmatprep.subr.mxu0 0.0
        %710 = vmatpush1.msra.mxu0 0.0
        %711 = vmatprep.subr.mxu0 0.0
        %712 = vmatpush1.msra.mxu0 0.0
        %713 = vmatprep.subr.mxu0 0.0
        %714 = vmatpush1.msra.mxu0 0.0
        %715 = vmatprep.subr.mxu0 0.0
        %716 = vmatpush1.msra.mxu0 0.0
        %717 = vmatprep.subr.mxu0 0.0
        %718 = vmatpush1.msra.mxu0 0.0
        %719 = vmatprep.subr.mxu0 0.0
        %720 = vmatpush1.msra.mxu0 0.0
        %721 = vmatprep.subr.mxu0 0.0
        %722 = vmatpush1.msra.mxu0 0.0
        %723 = vmatprep.subr.mxu0 0.0
        %724 = vmatpush1.msra.mxu0 0.0
        %725 = vmatprep.subr.mxu0 0.0
        %726 = vmatpush1.msra.mxu0 0.0
        %727 = vmatprep.subr.mxu0 0.0
        %728 = vmatpush1.msra.mxu0 0.0
        %729 = vmatprep.subr.mxu0 0.0
        %730 = vmatpush1.msra.mxu0 0.0
        %731 = vmatprep.subr.mxu0 0.0
        %732 = vmatpush1.msra.mxu0 0.0
        %733 = vmatprep.subr.mxu0 0.0
        %734 = vmatpush1.msra.mxu0 0.0
        %735 = vmatprep.subr.mxu0 0.0
        %736 = vmatpush1.msra.mxu0 0.0
        %737 = vmatprep.subr.mxu0 0.0
        %738 = vmatpush1.msra.mxu0 0.0
        %739 = vmatprep.subr.mxu0 0.0
        %740 = vmatpush1.msra.mxu0 0.0
        %741 = vmatprep.subr.mxu0 0.0
        %742 = vmatpush1.msra.mxu0 0.0
        %743 = vmatprep.subr.mxu0 0.0
        %744 = vmatpush1.msra.mxu0 0.0
        %745 = vmatprep.subr.mxu0 0.0
        %746 = vmatpush1.msra.mxu0 0.0
        %747 = vmatprep.mubr.f32.mxu0 0.0
        %748 = vmatmul.mubr.f32.gmra.mrb[0].mxu0 %v678
        %v749 = vpop.f32.mrb[0].mxu0
        %v750 = vadd.f32 0.0, %v749
        %v751 = vpop.f32.mrb[0].mxu0
        %752 = vmatprep.mubr.f32.mxu0 0.0
        %753 = vmatmul.mubr.f32.gmra.mrb[0].mxu0 %v681
        %v754 = vpop.f32.mrb[0].mxu0
        %v755 = vadd.f32 0.0, %v754
        %v756 = vpop.f32.mrb[0].mxu0
        %757 = vdwg.mxu0
        %758 = vst.msk [vmem:[#allocation2] sm:$0xff] %vm560, %v750
        %759 = vst.msk [vmem:[#allocation2 + $0x8] sm:$0xff] %vm560, %v755
        %760 = vrot.lane.b32.xlu0 %v546, 120
        %v761 = vpop.permute.xlu0 %760
        %762 = vrot.lane.b32.xlu0 %v551, 120
        %v763 = vpop.permute.xlu0 %762
        %764 = vrot.lane.b32.xlu0 %v546, 88
        %v765 = vpop.permute.xlu0 %764
        %766 = vrot.lane.b32.xlu0 %v551, 88
        %v767 = vpop.permute.xlu0 %766
        %v768 = vsel %vm560, %v761, 0
        %v770 = vsel %vm560, %v763, 0
        %v772 = vsel %vm560, %v765, 0
        %v774 = vsel %vm560, %v767, 0
        %776 = vmatprep.subr.mxu0 0.0
        %777 = vmatpush1.xpose.msra.mxu0 %v772
        %778 = vmatprep.subr.mxu0 0.0
        %779 = vmatpush1.xpose.msra.mxu0 %v774
        %780 = vmatprep.subr.mxu0 0.0
        %781 = vmatpush1.xpose.msra.mxu0 0.0
        %782 = vmatprep.subr.mxu0 0.0
        %783 = vmatpush1.xpose.msra.mxu0 0.0
        %784 = vmatprep.subr.mxu0 0.0
        %785 = vmatpush1.xpose.msra.mxu0 0.0
        %786 = vmatprep.subr.mxu0 0.0
        %787 = vmatpush1.xpose.msra.mxu0 0.0
        %788 = vmatprep.subr.mxu0 0.0
        %789 = vmatpush1.xpose.msra.mxu0 0.0
        %790 = vmatprep.subr.mxu0 0.0
        %791 = vmatpush1.xpose.msra.mxu0 0.0
        %792 = vmatprep.subr.mxu0 0.0
        %793 = vmatpush1.xpose.msra.mxu0 0.0
        %794 = vmatprep.subr.mxu0 0.0
        %795 = vmatpush1.xpose.msra.mxu0 0.0
        %796 = vmatprep.subr.mxu0 0.0
        %797 = vmatpush1.xpose.msra.mxu0 0.0
        %798 = vmatprep.subr.mxu0 0.0
        %799 = vmatpush1.xpose.msra.mxu0 0.0
        %800 = vmatprep.subr.mxu0 0.0
        %801 = vmatpush1.xpose.msra.mxu0 0.0
        %802 = vmatprep.subr.mxu0 0.0
        %803 = vmatpush1.xpose.msra.mxu0 0.0
        %804 = vmatprep.subr.mxu0 0.0
        %805 = vmatpush1.xpose.msra.mxu0 0.0
        %806 = vmatprep.subr.mxu0 0.0
        %807 = vmatpush1.xpose.msra.mxu0 0.0
        %808 = vmatprep.subr.mxu0 0.0
        %809 = vmatpush1.xpose.msra.mxu0 0.0
        %810 = vmatprep.subr.mxu0 0.0
        %811 = vmatpush1.xpose.msra.mxu0 0.0
        %812 = vmatprep.subr.mxu0 0.0
        %813 = vmatpush1.xpose.msra.mxu0 0.0
        %814 = vmatprep.subr.mxu0 0.0
        %815 = vmatpush1.xpose.msra.mxu0 0.0
        %816 = vmatprep.subr.mxu0 0.0
        %817 = vmatpush1.xpose.msra.mxu0 0.0
        %818 = vmatprep.subr.mxu0 0.0
        %819 = vmatpush1.xpose.msra.mxu0 0.0
        %820 = vmatprep.subr.mxu0 0.0
        %821 = vmatpush1.xpose.msra.mxu0 0.0
        %822 = vmatprep.subr.mxu0 0.0
        %823 = vmatpush1.xpose.msra.mxu0 0.0
        %824 = vmatprep.subr.mxu0 0.0
        %825 = vmatpush1.xpose.msra.mxu0 0.0
        %826 = vmatprep.subr.mxu0 0.0
        %827 = vmatpush1.xpose.msra.mxu0 0.0
        %828 = vmatprep.subr.mxu0 0.0
        %829 = vmatpush1.xpose.msra.mxu0 0.0
        %830 = vmatprep.subr.mxu0 0.0
        %831 = vmatpush1.xpose.msra.mxu0 0.0
        %832 = vmatprep.subr.mxu0 0.0
        %833 = vmatpush1.xpose.msra.mxu0 0.0
        %834 = vmatprep.subr.mxu0 0.0
        %835 = vmatpush1.xpose.msra.mxu0 0.0
        %836 = vmatprep.subr.mxu0 0.0
        %837 = vmatpush1.xpose.msra.mxu0 0.0
        %838 = vmatprep.subr.mxu0 0.0
        %839 = vmatpush1.xpose.msra.mxu0 0.0
        %840 = vmatprep.mubr.f32.mxu0 0.0
        %841 = vmatmul.mubr.f32.gmra.mrb[0].mxu0 %v768
        %v842 = vpop.f32.mrb[0].mxu0
        %v843 = vadd.f32 0.0, %v842
        %v844 = vpop.f32.mrb[0].mxu0
        %845 = vmatprep.mubr.f32.mxu0 0.0
        %846 = vmatmul.mubr.f32.gmra.mrb[0].mxu0 %v770
        %v847 = vpop.f32.mrb[0].mxu0
        %v848 = vadd.f32 0.0, %v847
        %v849 = vpop.f32.mrb[0].mxu0
        %850 = vdwg.mxu0
        %v851 = vmul.f32 %v843, 0.35355338
        %v852 = vmul.f32 %v848, 0.35355338
        %v853 = vadd.f32 %v851, %v407
        %v854 = vadd.f32 %v852, %v408
        %v855 = vsel %vm648, %v853, -inf
        %856 = vmax.xlane.f32.xlu0 %v855
        %v857 = vpop.xlane.xlu0 %856
        %v858 = vsel %vm648, %v854, -inf
        %859 = vmax.xlane.f32.xlu0 %v858
        %v860 = vpop.xlane.xlu0 %859
        %v861 = vsub.f32 %v853, %v857
        %v862 = vsub.f32 %v854, %v860
        %v863 = vmul.f32 %v861, 1.442695
        %v864 = vpow.pop %v863
        %v865 = vmul.f32 %v862, 1.442695
        %v866 = vpow.pop %v865
        %v867 = vsel %vm648, %v864, 0.0
        %868 = vadd.xlane.f32.xlu0 %v867
        %v869 = vpop.xlane.xlu0 %868
        %v870 = vsel %vm648, %v866, 0.0
        %871 = vadd.xlane.f32.xlu0 %v870
        %v872 = vpop.xlane.xlu0 %871
        %v873 = vrcp.pop %v869
        %v874 = vmul.f32 %v864, %v873
        %v875 = vrcp.pop %v872
        %v876 = vmul.f32 %v866, %v875
        %877 = vrot.lane.b32.xlu0 %v546, 56
        %v878 = vpop.permute.xlu0 %877
        %879 = vrot.lane.b32.xlu0 %v551, 56
        %v880 = vpop.permute.xlu0 %879
        %v884 = vsel %vm648, %v874, 0
        %v887 = vsel %vm648, %v876, 0
        %889 = vmatprep.subr.mxu0 0.0
        %890 = vmatpush1.msra.mxu0 %v878
        %891 = vmatprep.subr.mxu0 0.0
        %892 = vmatpush1.msra.mxu0 %v880
        %893 = vmatprep.subr.mxu0 0.0
        %894 = vmatpush1.msra.mxu0 0.0
        %895 = vmatprep.subr.mxu0 0.0
        %896 = vmatpush1.msra.mxu0 0.0
        %897 = vmatprep.subr.mxu0 0.0
        %898 = vmatpush1.msra.mxu0 0.0
        %899 = vmatprep.subr.mxu0 0.0
        %900 = vmatpush1.msra.mxu0 0.0
        %901 = vmatprep.subr.mxu0 0.0
        %902 = vmatpush1.msra.mxu0 0.0
        %903 = vmatprep.subr.mxu0 0.0
        %904 = vmatpush1.msra.mxu0 0.0
        %905 = vmatprep.subr.mxu0 0.0
        %906 = vmatpush1.msra.mxu0 0.0
        %907 = vmatprep.subr.mxu0 0.0
        %908 = vmatpush1.msra.mxu0 0.0
        %909 = vmatprep.subr.mxu0 0.0
        %910 = vmatpush1.msra.mxu0 0.0
        %911 = vmatprep.subr.mxu0 0.0
        %912 = vmatpush1.msra.mxu0 0.0
        %913 = vmatprep.subr.mxu0 0.0
        %914 = vmatpush1.msra.mxu0 0.0
        %915 = vmatprep.subr.mxu0 0.0
        %916 = vmatpush1.msra.mxu0 0.0
        %917 = vmatprep.subr.mxu0 0.0
        %918 = vmatpush1.msra.mxu0 0.0
        %919 = vmatprep.subr.mxu0 0.0
        %920 = vmatpush1.msra.mxu0 0.0
        %921 = vmatprep.subr.mxu0 0.0
        %922 = vmatpush1.msra.mxu0 0.0
        %923 = vmatprep.subr.mxu0 0.0
        %924 = vmatpush1.msra.mxu0 0.0
        %925 = vmatprep.subr.mxu0 0.0
        %926 = vmatpush1.msra.mxu0 0.0
        %927 = vmatprep.subr.mxu0 0.0
        %928 = vmatpush1.msra.mxu0 0.0
        %929 = vmatprep.subr.mxu0 0.0
        %930 = vmatpush1.msra.mxu0 0.0
        %931 = vmatprep.subr.mxu0 0.0
        %932 = vmatpush1.msra.mxu0 0.0
        %933 = vmatprep.subr.mxu0 0.0
        %934 = vmatpush1.msra.mxu0 0.0
        %935 = vmatprep.subr.mxu0 0.0
        %936 = vmatpush1.msra.mxu0 0.0
        %937 = vmatprep.subr.mxu0 0.0
        %938 = vmatpush1.msra.mxu0 0.0
        %939 = vmatprep.subr.mxu0 0.0
        %940 = vmatpush1.msra.mxu0 0.0
        %941 = vmatprep.subr.mxu0 0.0
        %942 = vmatpush1.msra.mxu0 0.0
        %943 = vmatprep.subr.mxu0 0.0
        %944 = vmatpush1.msra.mxu0 0.0
        %945 = vmatprep.subr.mxu0 0.0
        %946 = vmatpush1.msra.mxu0 0.0
        %947 = vmatprep.subr.mxu0 0.0
        %948 = vmatpush1.msra.mxu0 0.0
        %949 = vmatprep.subr.mxu0 0.0
        %950 = vmatpush1.msra.mxu0 0.0
        %951 = vmatprep.subr.mxu0 0.0
        %952 = vmatpush1.msra.mxu0 0.0
        %953 = vmatprep.mubr.f32.mxu0 0.0
        %954 = vmatmul.mubr.f32.gmra.mrb[0].mxu0 %v884
        %v955 = vpop.f32.mrb[0].mxu0
        %v956 = vadd.f32 0.0, %v955
        %v957 = vpop.f32.mrb[0].mxu0
        %958 = vmatprep.mubr.f32.mxu0 0.0
        %959 = vmatmul.mubr.f32.gmra.mrb[0].mxu0 %v887
        %v960 = vpop.f32.mrb[0].mxu0
        %v961 = vadd.f32 0.0, %v960
        %v962 = vpop.f32.mrb[0].mxu0
        %963 = vdwg.mxu0
        %966 = vrot.lane.b32.xlu0 %v956, 8
        %v967 = vpop.permute.xlu0 %966
        %968 = vrot.lane.b32.xlu0 %v961, 8
        %v969 = vpop.permute.xlu0 %968
        %vm972 = vcmask 130112
        %973 = vst.msk [vmem:[#allocation2] sm:$0xff] %vm972, %v967
        %974 = vst.msk [vmem:[#allocation2 + $0x8] sm:$0xff] %vm972, %v969
        %975 = vrot.lane.b32.xlu0 %v546, 112
        %v976 = vpop.permute.xlu0 %975
        %977 = vrot.lane.b32.xlu0 %v551, 112
        %v978 = vpop.permute.xlu0 %977
        %979 = vrot.lane.b32.xlu0 %v546, 80
        %v980 = vpop.permute.xlu0 %979
        %981 = vrot.lane.b32.xlu0 %v551, 80
        %v982 = vpop.permute.xlu0 %981
        %v983 = vsel %vm560, %v976, 0
        %v985 = vsel %vm560, %v978, 0
        %v987 = vsel %vm560, %v980, 0
        %v989 = vsel %vm560, %v982, 0
        %991 = vmatprep.subr.mxu0 0.0
        %992 = vmatpush1.xpose.msra.mxu0 %v987
        %993 = vmatprep.subr.mxu0 0.0
        %994 = vmatpush1.xpose.msra.mxu0 %v989
        %995 = vmatprep.subr.mxu0 0.0
        %996 = vmatpush1.xpose.msra.mxu0 0.0
        %997 = vmatprep.subr.mxu0 0.0
        %998 = vmatpush1.xpose.msra.mxu0 0.0
        %999 = vmatprep.subr.mxu0 0.0
        %1000 = vmatpush1.xpose.msra.mxu0 0.0
        %1001 = vmatprep.subr.mxu0 0.0
        %1002 = vmatpush1.xpose.msra.mxu0 0.0
        %1003 = vmatprep.subr.mxu0 0.0
        %1004 = vmatpush1.xpose.msra.mxu0 0.0
        %1005 = vmatprep.subr.mxu0 0.0
        %1006 = vmatpush1.xpose.msra.mxu0 0.0
        %1007 = vmatprep.subr.mxu0 0.0
        %1008 = vmatpush1.xpose.msra.mxu0 0.0
        %1009 = vmatprep.subr.mxu0 0.0
        %1010 = vmatpush1.xpose.msra.mxu0 0.0
        %1011 = vmatprep.subr.mxu0 0.0
        %1012 = vmatpush1.xpose.msra.mxu0 0.0
        %1013 = vmatprep.subr.mxu0 0.0
        %1014 = vmatpush1.xpose.msra.mxu0 0.0
        %1015 = vmatprep.subr.mxu0 0.0
        %1016 = vmatpush1.xpose.msra.mxu0 0.0
        %1017 = vmatprep.subr.mxu0 0.0
        %1018 = vmatpush1.xpose.msra.mxu0 0.0
        %1019 = vmatprep.subr.mxu0 0.0
        %1020 = vmatpush1.xpose.msra.mxu0 0.0
        %1021 = vmatprep.subr.mxu0 0.0
        %1022 = vmatpush1.xpose.msra.mxu0 0.0
        %1023 = vmatprep.subr.mxu0 0.0
        %1024 = vmatpush1.xpose.msra.mxu0 0.0
        %1025 = vmatprep.subr.mxu0 0.0
        %1026 = vmatpush1.xpose.msra.mxu0 0.0
        %1027 = vmatprep.subr.mxu0 0.0
        %1028 = vmatpush1.xpose.msra.mxu0 0.0
        %1029 = vmatprep.subr.mxu0 0.0
        %1030 = vmatpush1.xpose.msra.mxu0 0.0
        %1031 = vmatprep.subr.mxu0 0.0
        %1032 = vmatpush1.xpose.msra.mxu0 0.0
        %1033 = vmatprep.subr.mxu0 0.0
        %1034 = vmatpush1.xpose.msra.mxu0 0.0
        %1035 = vmatprep.subr.mxu0 0.0
        %1036 = vmatpush1.xpose.msra.mxu0 0.0
        %1037 = vmatprep.subr.mxu0 0.0
        %1038 = vmatpush1.xpose.msra.mxu0 0.0
        %1039 = vmatprep.subr.mxu0 0.0
        %1040 = vmatpush1.xpose.msra.mxu0 0.0
        %1041 = vmatprep.subr.mxu0 0.0
        %1042 = vmatpush1.xpose.msra.mxu0 0.0
        %1043 = vmatprep.subr.mxu0 0.0
        %1044 = vmatpush1.xpose.msra.mxu0 0.0
        %1045 = vmatprep.subr.mxu0 0.0
        %1046 = vmatpush1.xpose.msra.mxu0 0.0
        %1047 = vmatprep.subr.mxu0 0.0
        %1048 = vmatpush1.xpose.msra.mxu0 0.0
        %1049 = vmatprep.subr.mxu0 0.0
        %1050 = vmatpush1.xpose.msra.mxu0 0.0
        %1051 = vmatprep.subr.mxu0 0.0
        %1052 = vmatpush1.xpose.msra.mxu0 0.0
        %1053 = vmatprep.subr.mxu0 0.0
        %1054 = vmatpush1.xpose.msra.mxu0 0.0
        %1055 = vmatprep.mubr.f32.mxu0 0.0
        %1056 = vmatmul.mubr.f32.gmra.mrb[0].mxu0 %v983
        %v1057 = vpop.f32.mrb[0].mxu0
        %v1058 = vadd.f32 0.0, %v1057
        %v1059 = vpop.f32.mrb[0].mxu0
        %1060 = vmatprep.mubr.f32.mxu0 0.0
        %1061 = vmatmul.mubr.f32.gmra.mrb[0].mxu0 %v985
        %v1062 = vpop.f32.mrb[0].mxu0
        %v1063 = vadd.f32 0.0, %v1062
        %v1064 = vpop.f32.mrb[0].mxu0
        %1065 = vdwg.mxu0
        %v1066 = vmul.f32 %v1058, 0.35355338
        %v1067 = vmul.f32 %v1063, 0.35355338
        %v1068 = vadd.f32 %v1066, %v407
        %v1069 = vadd.f32 %v1067, %v408
        %v1070 = vsel %vm648, %v1068, -inf
        %1071 = vmax.xlane.f32.xlu0 %v1070
        %v1072 = vpop.xlane.xlu0 %1071
        %v1073 = vsel %vm648, %v1069, -inf
        %1074 = vmax.xlane.f32.xlu0 %v1073
        %v1075 = vpop.xlane.xlu0 %1074
        %v1076 = vsub.f32 %v1068, %v1072
        %v1077 = vsub.f32 %v1069, %v1075
        %v1078 = vmul.f32 %v1076, 1.442695
        %v1079 = vpow.pop %v1078
        %v1080 = vmul.f32 %v1077, 1.442695
        %v1081 = vpow.pop %v1080
        %v1082 = vsel %vm648, %v1079, 0.0
        %1083 = vadd.xlane.f32.xlu0 %v1082
        %v1084 = vpop.xlane.xlu0 %1083
        %v1085 = vsel %vm648, %v1081, 0.0
        %1086 = vadd.xlane.f32.xlu0 %v1085
        %v1087 = vpop.xlane.xlu0 %1086
        %v1088 = vrcp.pop %v1084
        %v1089 = vmul.f32 %v1079, %v1088
        %v1090 = vrcp.pop %v1087
        %v1091 = vmul.f32 %v1081, %v1090
        %1092 = vrot.lane.b32.xlu0 %v546, 48
        %v1093 = vpop.permute.xlu0 %1092
        %1094 = vrot.lane.b32.xlu0 %v551, 48
        %v1095 = vpop.permute.xlu0 %1094
        %v1099 = vsel %vm648, %v1089, 0
        %v1102 = vsel %vm648, %v1091, 0
        %1104 = vmatprep.subr.mxu0 0.0
        %1105 = vmatpush1.msra.mxu0 %v1093
        %1106 = vmatprep.subr.mxu0 0.0
        %1107 = vmatpush1.msra.mxu0 %v1095
        %1108 = vmatprep.subr.mxu0 0.0
        %1109 = vmatpush1.msra.mxu0 0.0
        %1110 = vmatprep.subr.mxu0 0.0
        %1111 = vmatpush1.msra.mxu0 0.0
        %1112 = vmatprep.subr.mxu0 0.0
        %1113 = vmatpush1.msra.mxu0 0.0
        %1114 = vmatprep.subr.mxu0 0.0
        %1115 = vmatpush1.msra.mxu0 0.0
        %1116 = vmatprep.subr.mxu0 0.0
        %1117 = vmatpush1.msra.mxu0 0.0
        %1118 = vmatprep.subr.mxu0 0.0
        %1119 = vmatpush1.msra.mxu0 0.0
        %1120 = vmatprep.subr.mxu0 0.0
        %1121 = vmatpush1.msra.mxu0 0.0
        %1122 = vmatprep.subr.mxu0 0.0
        %1123 = vmatpush1.msra.mxu0 0.0
        %1124 = vmatprep.subr.mxu0 0.0
        %1125 = vmatpush1.msra.mxu0 0.0
        %1126 = vmatprep.subr.mxu0 0.0
        %1127 = vmatpush1.msra.mxu0 0.0
        %1128 = vmatprep.subr.mxu0 0.0
        %1129 = vmatpush1.msra.mxu0 0.0
        %1130 = vmatprep.subr.mxu0 0.0
        %1131 = vmatpush1.msra.mxu0 0.0
        %1132 = vmatprep.subr.mxu0 0.0
        %1133 = vmatpush1.msra.mxu0 0.0
        %1134 = vmatprep.subr.mxu0 0.0
        %1135 = vmatpush1.msra.mxu0 0.0
        %1136 = vmatprep.subr.mxu0 0.0
        %1137 = vmatpush1.msra.mxu0 0.0
        %1138 = vmatprep.subr.mxu0 0.0
        %1139 = vmatpush1.msra.mxu0 0.0
        %1140 = vmatprep.subr.mxu0 0.0
        %1141 = vmatpush1.msra.mxu0 0.0
        %1142 = vmatprep.subr.mxu0 0.0
        %1143 = vmatpush1.msra.mxu0 0.0
        %1144 = vmatprep.subr.mxu0 0.0
        %1145 = vmatpush1.msra.mxu0 0.0
        %1146 = vmatprep.subr.mxu0 0.0
        %1147 = vmatpush1.msra.mxu0 0.0
        %1148 = vmatprep.subr.mxu0 0.0
        %1149 = vmatpush1.msra.mxu0 0.0
        %1150 = vmatprep.subr.mxu0 0.0
        %1151 = vmatpush1.msra.mxu0 0.0
        %1152 = vmatprep.subr.mxu0 0.0
        %1153 = vmatpush1.msra.mxu0 0.0
        %1154 = vmatprep.subr.mxu0 0.0
        %1155 = vmatpush1.msra.mxu0 0.0
        %1156 = vmatprep.subr.mxu0 0.0
        %1157 = vmatpush1.msra.mxu0 0.0
        %1158 = vmatprep.subr.mxu0 0.0
        %1159 = vmatpush1.msra.mxu0 0.0
        %1160 = vmatprep.subr.mxu0 0.0
        %1161 = vmatpush1.msra.mxu0 0.0
        %1162 = vmatprep.subr.mxu0 0.0
        %1163 = vmatpush1.msra.mxu0 0.0
        %1164 = vmatprep.subr.mxu0 0.0
        %1165 = vmatpush1.msra.mxu0 0.0
        %1166 = vmatprep.subr.mxu0 0.0
        %1167 = vmatpush1.msra.mxu0 0.0
        %1168 = vmatprep.mubr.f32.mxu0 0.0
        %1169 = vmatmul.mubr.f32.gmra.mrb[0].mxu0 %v1099
        %v1170 = vpop.f32.mrb[0].mxu0
        %v1171 = vadd.f32 0.0, %v1170
        %v1172 = vpop.f32.mrb[0].mxu0
        %1173 = vmatprep.mubr.f32.mxu0 0.0
        %1174 = vmatmul.mubr.f32.gmra.mrb[0].mxu0 %v1102
        %v1175 = vpop.f32.mrb[0].mxu0
        %v1176 = vadd.f32 0.0, %v1175
        %v1177 = vpop.f32.mrb[0].mxu0
        %1178 = vdwg.mxu0
        %1181 = vrot.lane.b32.xlu0 %v1171, 16
        %v1182 = vpop.permute.xlu0 %1181
        %1183 = vrot.lane.b32.xlu0 %v1176, 16
        %v1184 = vpop.permute.xlu0 %1183
        %vm1187 = vcmask 195712
        %1188 = vst.msk [vmem:[#allocation2] sm:$0xff] %vm1187, %v1182
        %1189 = vst.msk [vmem:[#allocation2 + $0x8] sm:$0xff] %vm1187, %v1184
        %1190 = vrot.lane.b32.xlu0 %v546, 104
        %v1191 = vpop.permute.xlu0 %1190
        %1192 = vrot.lane.b32.xlu0 %v551, 104
        %v1193 = vpop.permute.xlu0 %1192
        %1194 = vrot.lane.b32.xlu0 %v546, 72
        %v1195 = vpop.permute.xlu0 %1194
        %1196 = vrot.lane.b32.xlu0 %v551, 72
        %v1197 = vpop.permute.xlu0 %1196
        %v1198 = vsel %vm560, %v1191, 0
        %v1200 = vsel %vm560, %v1193, 0
        %v1202 = vsel %vm560, %v1195, 0
        %v1204 = vsel %vm560, %v1197, 0
        %1206 = vmatprep.subr.mxu0 0.0
        %1207 = vmatpush1.xpose.msra.mxu0 %v1202
        %1208 = vmatprep.subr.mxu0 0.0
        %1209 = vmatpush1.xpose.msra.mxu0 %v1204
        %1210 = vmatprep.subr.mxu0 0.0
        %1211 = vmatpush1.xpose.msra.mxu0 0.0
        %1212 = vmatprep.subr.mxu0 0.0
        %1213 = vmatpush1.xpose.msra.mxu0 0.0
        %1214 = vmatprep.subr.mxu0 0.0
        %1215 = vmatpush1.xpose.msra.mxu0 0.0
        %1216 = vmatprep.subr.mxu0 0.0
        %1217 = vmatpush1.xpose.msra.mxu0 0.0
        %1218 = vmatprep.subr.mxu0 0.0
        %1219 = vmatpush1.xpose.msra.mxu0 0.0
        %1220 = vmatprep.subr.mxu0 0.0
        %1221 = vmatpush1.xpose.msra.mxu0 0.0
        %1222 = vmatprep.subr.mxu0 0.0
        %1223 = vmatpush1.xpose.msra.mxu0 0.0
        %1224 = vmatprep.subr.mxu0 0.0
        %1225 = vmatpush1.xpose.msra.mxu0 0.0
        %1226 = vmatprep.subr.mxu0 0.0
        %1227 = vmatpush1.xpose.msra.mxu0 0.0
        %1228 = vmatprep.subr.mxu0 0.0
        %1229 = vmatpush1.xpose.msra.mxu0 0.0
        %1230 = vmatprep.subr.mxu0 0.0
        %1231 = vmatpush1.xpose.msra.mxu0 0.0
        %1232 = vmatprep.subr.mxu0 0.0
        %1233 = vmatpush1.xpose.msra.mxu0 0.0
        %1234 = vmatprep.subr.mxu0 0.0
        %1235 = vmatpush1.xpose.msra.mxu0 0.0
        %1236 = vmatprep.subr.mxu0 0.0
        %1237 = vmatpush1.xpose.msra.mxu0 0.0
        %1238 = vmatprep.subr.mxu0 0.0
        %1239 = vmatpush1.xpose.msra.mxu0 0.0
        %1240 = vmatprep.subr.mxu0 0.0
        %1241 = vmatpush1.xpose.msra.mxu0 0.0
        %1242 = vmatprep.subr.mxu0 0.0
        %1243 = vmatpush1.xpose.msra.mxu0 0.0
        %1244 = vmatprep.subr.mxu0 0.0
        %1245 = vmatpush1.xpose.msra.mxu0 0.0
        %1246 = vmatprep.subr.mxu0 0.0
        %1247 = vmatpush1.xpose.msra.mxu0 0.0
        %1248 = vmatprep.subr.mxu0 0.0
        %1249 = vmatpush1.xpose.msra.mxu0 0.0
        %1250 = vmatprep.subr.mxu0 0.0
        %1251 = vmatpush1.xpose.msra.mxu0 0.0
        %1252 = vmatprep.subr.mxu0 0.0
        %1253 = vmatpush1.xpose.msra.mxu0 0.0
        %1254 = vmatprep.subr.mxu0 0.0
        %1255 = vmatpush1.xpose.msra.mxu0 0.0
        %1256 = vmatprep.subr.mxu0 0.0
        %1257 = vmatpush1.xpose.msra.mxu0 0.0
        %1258 = vmatprep.subr.mxu0 0.0
        %1259 = vmatpush1.xpose.msra.mxu0 0.0
        %1260 = vmatprep.subr.mxu0 0.0
        %1261 = vmatpush1.xpose.msra.mxu0 0.0
        %1262 = vmatprep.subr.mxu0 0.0
        %1263 = vmatpush1.xpose.msra.mxu0 0.0
        %1264 = vmatprep.subr.mxu0 0.0
        %1265 = vmatpush1.xpose.msra.mxu0 0.0
        %1266 = vmatprep.subr.mxu0 0.0
        %1267 = vmatpush1.xpose.msra.mxu0 0.0
        %1268 = vmatprep.subr.mxu0 0.0
        %1269 = vmatpush1.xpose.msra.mxu0 0.0
        %1270 = vmatprep.mubr.f32.mxu0 0.0
        %1271 = vmatmul.mubr.f32.gmra.mrb[0].mxu0 %v1198
        %v1272 = vpop.f32.mrb[0].mxu0
        %v1273 = vadd.f32 0.0, %v1272
        %v1274 = vpop.f32.mrb[0].mxu0
        %1275 = vmatprep.mubr.f32.mxu0 0.0
        %1276 = vmatmul.mubr.f32.gmra.mrb[0].mxu0 %v1200
        %v1277 = vpop.f32.mrb[0].mxu0
        %v1278 = vadd.f32 0.0, %v1277
        %v1279 = vpop.f32.mrb[0].mxu0
        %1280 = vdwg.mxu0
        %v1281 = vmul.f32 %v1273, 0.35355338
        %v1282 = vmul.f32 %v1278, 0.35355338
        %v1283 = vadd.f32 %v1281, %v407
        %v1284 = vadd.f32 %v1282, %v408
        %v1285 = vsel %vm648, %v1283, -inf
        %1286 = vmax.xlane.f32.xlu0 %v1285
        %v1287 = vpop.xlane.xlu0 %1286
        %v1288 = vsel %vm648, %v1284, -inf
        %1289 = vmax.xlane.f32.xlu0 %v1288
        %v1290 = vpop.xlane.xlu0 %1289
        %v1291 = vsub.f32 %v1283, %v1287
        %v1292 = vsub.f32 %v1284, %v1290
        %v1293 = vmul.f32 %v1291, 1.442695
        %v1294 = vpow.pop %v1293
        %v1295 = vmul.f32 %v1292, 1.442695
        %v1296 = vpow.pop %v1295
        %v1297 = vsel %vm648, %v1294, 0.0
        %1298 = vadd.xlane.f32.xlu0 %v1297
        %v1299 = vpop.xlane.xlu0 %1298
        %v1300 = vsel %vm648, %v1296, 0.0
        %1301 = vadd.xlane.f32.xlu0 %v1300
        %v1302 = vpop.xlane.xlu0 %1301
        %v1303 = vrcp.pop %v1299
        %v1304 = vmul.f32 %v1294, %v1303
        %v1305 = vrcp.pop %v1302
        %v1306 = vmul.f32 %v1296, %v1305
        %1307 = vrot.lane.b32.xlu0 %v546, 40
        %v1308 = vpop.permute.xlu0 %1307
        %1309 = vrot.lane.b32.xlu0 %v551, 40
        %v1310 = vpop.permute.xlu0 %1309
        %v1314 = vsel %vm648, %v1304, 0
        %v1317 = vsel %vm648, %v1306, 0
        %1319 = vmatprep.subr.mxu0 0.0
        %1320 = vmatpush1.msra.mxu0 %v1308
        %1321 = vmatprep.subr.mxu0 0.0
        %1322 = vmatpush1.msra.mxu0 %v1310
        %1323 = vmatprep.subr.mxu0 0.0
        %1324 = vmatpush1.msra.mxu0 0.0
        %1325 = vmatprep.subr.mxu0 0.0
        %1326 = vmatpush1.msra.mxu0 0.0
        %1327 = vmatprep.subr.mxu0 0.0
        %1328 = vmatpush1.msra.mxu0 0.0
        %1329 = vmatprep.subr.mxu0 0.0
        %1330 = vmatpush1.msra.mxu0 0.0
        %1331 = vmatprep.subr.mxu0 0.0
        %1332 = vmatpush1.msra.mxu0 0.0
        %1333 = vmatprep.subr.mxu0 0.0
        %1334 = vmatpush1.msra.mxu0 0.0
        %1335 = vmatprep.subr.mxu0 0.0
        %1336 = vmatpush1.msra.mxu0 0.0
        %1337 = vmatprep.subr.mxu0 0.0
        %1338 = vmatpush1.msra.mxu0 0.0
        %1339 = vmatprep.subr.mxu0 0.0
        %1340 = vmatpush1.msra.mxu0 0.0
        %1341 = vmatprep.subr.mxu0 0.0
        %1342 = vmatpush1.msra.mxu0 0.0
        %1343 = vmatprep.subr.mxu0 0.0
        %1344 = vmatpush1.msra.mxu0 0.0
        %1345 = vmatprep.subr.mxu0 0.0
        %1346 = vmatpush1.msra.mxu0 0.0
        %1347 = vmatprep.subr.mxu0 0.0
        %1348 = vmatpush1.msra.mxu0 0.0
        %1349 = vmatprep.subr.mxu0 0.0
        %1350 = vmatpush1.msra.mxu0 0.0
        %1351 = vmatprep.subr.mxu0 0.0
        %1352 = vmatpush1.msra.mxu0 0.0
        %1353 = vmatprep.subr.mxu0 0.0
        %1354 = vmatpush1.msra.mxu0 0.0
        %1355 = vmatprep.subr.mxu0 0.0
        %1356 = vmatpush1.msra.mxu0 0.0
        %1357 = vmatprep.subr.mxu0 0.0
        %1358 = vmatpush1.msra.mxu0 0.0
        %1359 = vmatprep.subr.mxu0 0.0
        %1360 = vmatpush1.msra.mxu0 0.0
        %1361 = vmatprep.subr.mxu0 0.0
        %1362 = vmatpush1.msra.mxu0 0.0
        %1363 = vmatprep.subr.mxu0 0.0
        %1364 = vmatpush1.msra.mxu0 0.0
        %1365 = vmatprep.subr.mxu0 0.0
        %1366 = vmatpush1.msra.mxu0 0.0
        %1367 = vmatprep.subr.mxu0 0.0
        %1368 = vmatpush1.msra.mxu0 0.0
        %1369 = vmatprep.subr.mxu0 0.0
        %1370 = vmatpush1.msra.mxu0 0.0
        %1371 = vmatprep.subr.mxu0 0.0
        %1372 = vmatpush1.msra.mxu0 0.0
        %1373 = vmatprep.subr.mxu0 0.0
        %1374 = vmatpush1.msra.mxu0 0.0
        %1375 = vmatprep.subr.mxu0 0.0
        %1376 = vmatpush1.msra.mxu0 0.0
        %1377 = vmatprep.subr.mxu0 0.0
        %1378 = vmatpush1.msra.mxu0 0.0
        %1379 = vmatprep.subr.mxu0 0.0
        %1380 = vmatpush1.msra.mxu0 0.0
        %1381 = vmatprep.subr.mxu0 0.0
        %1382 = vmatpush1.msra.mxu0 0.0
        %1383 = vmatprep.mubr.f32.mxu0 0.0
        %1384 = vmatmul.mubr.f32.gmra.mrb[0].mxu0 %v1314
        %v1385 = vpop.f32.mrb[0].mxu0
        %v1386 = vadd.f32 0.0, %v1385
        %v1387 = vpop.f32.mrb[0].mxu0
        %1388 = vmatprep.mubr.f32.mxu0 0.0
        %1389 = vmatmul.mubr.f32.gmra.mrb[0].mxu0 %v1317
        %v1390 = vpop.f32.mrb[0].mxu0
        %v1391 = vadd.f32 0.0, %v1390
        %v1392 = vpop.f32.mrb[0].mxu0
        %1393 = vdwg.mxu0
        %1396 = vrot.lane.b32.xlu0 %v1386, 24
        %v1397 = vpop.permute.xlu0 %1396
        %1398 = vrot.lane.b32.xlu0 %v1391, 24
        %v1399 = vpop.permute.xlu0 %1398
        %vm1402 = vcmask 261312
        %1403 = vst.msk [vmem:[#allocation2] sm:$0xff] %vm1402, %v1397
        %1404 = vst.msk [vmem:[#allocation2 + $0x8] sm:$0xff] %vm1402, %v1399
        %v1405 = vld [vmem:[#allocation2] sm:$0xff]
        %v1406 = vld [vmem:[#allocation2 + $0x8] sm:$0xff]
        %v1407 = vlaneseq
        %v1408 = vshrl.u32 %v1407, 7
        %v1409 = vsub.s32 0, %v1408
        %v1410 = vrot.slane %v398, %v1409
        %v1412 = vsel %vm413, %v1405, 0
        %v1415 = vsel %vm413, %v1406, 0
        %1417 = vmatprep.subr.mxu0 0.0
        %1418 = vmatpush1.msra.mxu0 %v377
        %1419 = vmatprep.subr.mxu0 0.0
        %1420 = vmatpush1.msra.mxu0 %v378
        %1421 = vmatprep.subr.mxu0 0.0
        %1422 = vmatpush1.msra.mxu0 %v379
        %1423 = vmatprep.subr.mxu0 0.0
        %1424 = vmatpush1.msra.mxu0 %v380
        %1425 = vmatprep.subr.mxu0 0.0
        %1426 = vmatpush1.msra.mxu0 0.0
        %1427 = vmatprep.subr.mxu0 0.0
        %1428 = vmatpush1.msra.mxu0 0.0
        %1429 = vmatprep.subr.mxu0 0.0
        %1430 = vmatpush1.msra.mxu0 0.0
        %1431 = vmatprep.subr.mxu0 0.0
        %1432 = vmatpush1.msra.mxu0 0.0
        %1433 = vmatprep.subr.mxu0 0.0
        %1434 = vmatpush1.msra.mxu0 0.0
        %1435 = vmatprep.subr.mxu0 0.0
        %1436 = vmatpush1.msra.mxu0 0.0
        %1437 = vmatprep.subr.mxu0 0.0
        %1438 = vmatpush1.msra.mxu0 0.0
        %1439 = vmatprep.subr.mxu0 0.0
        %1440 = vmatpush1.msra.mxu0 0.0
        %1441 = vmatprep.subr.mxu0 0.0
        %1442 = vmatpush1.msra.mxu0 0.0
        %1443 = vmatprep.subr.mxu0 0.0
        %1444 = vmatpush1.msra.mxu0 0.0
        %1445 = vmatprep.subr.mxu0 0.0
        %1446 = vmatpush1.msra.mxu0 0.0
        %1447 = vmatprep.subr.mxu0 0.0
        %1448 = vmatpush1.msra.mxu0 0.0
        %1449 = vmatprep.subr.mxu0 0.0
        %1450 = vmatpush1.msra.mxu0 0.0
        %1451 = vmatprep.subr.mxu0 0.0
        %1452 = vmatpush1.msra.mxu0 0.0
        %1453 = vmatprep.subr.mxu0 0.0
        %1454 = vmatpush1.msra.mxu0 0.0
        %1455 = vmatprep.subr.mxu0 0.0
        %1456 = vmatpush1.msra.mxu0 0.0
        %1457 = vmatprep.subr.mxu0 0.0
        %1458 = vmatpush1.msra.mxu0 0.0
        %1459 = vmatprep.subr.mxu0 0.0
        %1460 = vmatpush1.msra.mxu0 0.0
        %1461 = vmatprep.subr.mxu0 0.0
        %1462 = vmatpush1.msra.mxu0 0.0
        %1463 = vmatprep.subr.mxu0 0.0
        %1464 = vmatpush1.msra.mxu0 0.0
        %1465 = vmatprep.subr.mxu0 0.0
        %1466 = vmatpush1.msra.mxu0 0.0
        %1467 = vmatprep.subr.mxu0 0.0
        %1468 = vmatpush1.msra.mxu0 0.0
        %1469 = vmatprep.subr.mxu0 0.0
        %1470 = vmatpush1.msra.mxu0 0.0
        %1471 = vmatprep.subr.mxu0 0.0
        %1472 = vmatpush1.msra.mxu0 0.0
        %1473 = vmatprep.subr.mxu0 0.0
        %1474 = vmatpush1.msra.mxu0 0.0
        %1475 = vmatprep.subr.mxu0 0.0
        %1476 = vmatpush1.msra.mxu0 0.0
        %1477 = vmatprep.subr.mxu0 0.0
        %1478 = vmatpush1.msra.mxu0 0.0
        %1479 = vmatprep.subr.mxu0 0.0
        %1480 = vmatpush1.msra.mxu0 0.0
        %1481 = vmatprep.mubr.f32.mxu0 0.0
        %1482 = vmatmul.mubr.f32.gmra.mrb[0].mxu0 %v1412
        %v1483 = vpop.f32.mrb[0].mxu0
        %v1484 = vadd.f32 %v1410, %v1483
        %v1485 = vpop.f32.mrb[0].mxu0
        %1486 = vmatprep.mubr.f32.mxu0 0.0
        %1487 = vmatmul.mubr.f32.gmra.mrb[0].mxu0 %v1415
        %v1488 = vpop.f32.mrb[0].mxu0
        %v1489 = vadd.f32 %v1410, %v1488
        %v1490 = vpop.f32.mrb[0].mxu0
        %1491 = vdwg.mxu0
        %v1492 = vadd.f32 %v371, %v1484
        %v1493 = vadd.f32 %v372, %v1489
        %v1494 = vsel %vm413, %v1492, 0.0
        %1495 = vadd.xlane.f32.xlu0 %v1494
        %v1496 = vpop.xlane.xlu0 %1495
        %v1497 = vsel %vm413, %v1493, 0.0
        %1498 = vadd.xlane.f32.xlu0 %v1497
        %v1499 = vpop.xlane.xlu0 %1498
        %v1500 = vmul.f32 %v1496, %v420
        %v1501 = vmul.f32 %v1499, %v420
        %v1502 = vsub.f32 %v1492, %v1500
        %v1503 = vsub.f32 %v1493, %v1501
        %v1504 = vmul.f32 %v1502, %v1502
        %v1505 = vmul.f32 %v1503, %v1503
        %v1506 = vsel %vm413, %v1504, 0.0
        %1507 = vadd.xlane.f32.xlu0 %v1506
        %v1508 = vpop.xlane.xlu0 %1507
        %v1509 = vsel %vm413, %v1505, 0.0
        %1510 = vadd.xlane.f32.xlu0 %v1509
        %v1511 = vpop.xlane.xlu0 %1510
        %v1512 = vmul.f32 %v1508, %v420
        %v1513 = vmul.f32 %v1511, %v420
        %v1514 = vadd.f32 %v1512, 1e-05
        %v1515 = vadd.f32 %v1513, 1e-05
        %v1516 = vrsqrt.pop %v1514
        %v1517 = vrsqrt.pop %v1515
        %v1518 = vmul.f32 %v1502, %v1516
        %v1519 = vmul.f32 %v1503, %v1517
        %v1520 = vlaneseq
        %v1521 = vshrl.u32 %v1520, 7
        %v1522 = vsub.s32 1, %v1521
        %v1523 = vrot.slane %v403, %v1522
        %v1524 = vmul.f32 %v1518, %v1523
        %v1525 = vmul.f32 %v1519, %v1523
        %v1526 = vlaneseq
        %v1527 = vshrl.u32 %v1526, 7
        %v1528 = vsub.s32 1, %v1527
        %v1529 = vrot.slane %v404, %v1528
        %v1530 = vadd.f32 %v1524, %v1529
        %v1531 = vadd.f32 %v1525, %v1529
        %v1532 = vlaneseq
        %v1533 = vshrl.u32 %v1532, 7
        %v1534 = vsub.s32 0, %v1533
        %v1535 = vrot.slane %v399, %v1534
        %1540 = vrot.lane.b32.xlu0 %v381, 96
        %v1541 = vpop.permute.xlu0 %1540
        %1542 = vrot.lane.b32.xlu0 %v382, 96
        %v1543 = vpop.permute.xlu0 %1542
        %1544 = vrot.lane.b32.xlu0 %v383, 96
        %v1545 = vpop.permute.xlu0 %1544
        %1546 = vrot.lane.b32.xlu0 %v384, 96
        %v1547 = vpop.permute.xlu0 %1546
        %v1553 = vsel %vm413, %v1530, 0
        %v1556 = vsel %vm413, %v1531, 0
        %1558 = vmatprep.subr.mxu0 0.0
        %1559 = vmatpush1.msra.mxu0 %v1541
        %1560 = vmatprep.subr.mxu0 0.0
        %1561 = vmatpush1.msra.mxu0 %v1543
        %1562 = vmatprep.subr.mxu0 0.0
        %1563 = vmatpush1.msra.mxu0 %v1545
        %1564 = vmatprep.subr.mxu0 0.0
        %1565 = vmatpush1.msra.mxu0 %v1547
        %1566 = vmatprep.subr.mxu0 0.0
        %1567 = vmatpush1.msra.mxu0 0.0
        %1568 = vmatprep.subr.mxu0 0.0
        %1569 = vmatpush1.msra.mxu0 0.0
        %1570 = vmatprep.subr.mxu0 0.0
        %1571 = vmatpush1.msra.mxu0 0.0
        %1572 = vmatprep.subr.mxu0 0.0
        %1573 = vmatpush1.msra.mxu0 0.0
        %1574 = vmatprep.subr.mxu0 0.0
        %1575 = vmatpush1.msra.mxu0 0.0
        %1576 = vmatprep.subr.mxu0 0.0
        %1577 = vmatpush1.msra.mxu0 0.0
        %1578 = vmatprep.subr.mxu0 0.0
        %1579 = vmatpush1.msra.mxu0 0.0
        %1580 = vmatprep.subr.mxu0 0.0
        %1581 = vmatpush1.msra.mxu0 0.0
        %1582 = vmatprep.subr.mxu0 0.0
        %1583 = vmatpush1.msra.mxu0 0.0
        %1584 = vmatprep.subr.mxu0 0.0
        %1585 = vmatpush1.msra.mxu0 0.0
        %1586 = vmatprep.subr.mxu0 0.0
        %1587 = vmatpush1.msra.mxu0 0.0
        %1588 = vmatprep.subr.mxu0 0.0
        %1589 = vmatpush1.msra.mxu0 0.0
        %1590 = vmatprep.subr.mxu0 0.0
        %1591 = vmatpush1.msra.mxu0 0.0
        %1592 = vmatprep.subr.mxu0 0.0
        %1593 = vmatpush1.msra.mxu0 0.0
        %1594 = vmatprep.subr.mxu0 0.0
        %1595 = vmatpush1.msra.mxu0 0.0
        %1596 = vmatprep.subr.mxu0 0.0
        %1597 = vmatpush1.msra.mxu0 0.0
        %1598 = vmatprep.subr.mxu0 0.0
        %1599 = vmatpush1.msra.mxu0 0.0
        %1600 = vmatprep.subr.mxu0 0.0
        %1601 = vmatpush1.msra.mxu0 0.0
        %1602 = vmatprep.subr.mxu0 0.0
        %1603 = vmatpush1.msra.mxu0 0.0
        %1604 = vmatprep.subr.mxu0 0.0
        %1605 = vmatpush1.msra.mxu0 0.0
        %1606 = vmatprep.subr.mxu0 0.0
        %1607 = vmatpush1.msra.mxu0 0.0
        %1608 = vmatprep.subr.mxu0 0.0
        %1609 = vmatpush1.msra.mxu0 0.0
        %1610 = vmatprep.subr.mxu0 0.0
        %1611 = vmatpush1.msra.mxu0 0.0
        %1612 = vmatprep.subr.mxu0 0.0
        %1613 = vmatpush1.msra.mxu0 0.0
        %1614 = vmatprep.subr.mxu0 0.0
        %1615 = vmatpush1.msra.mxu0 0.0
        %1616 = vmatprep.subr.mxu0 0.0
        %1617 = vmatpush1.msra.mxu0 0.0
        %1618 = vmatprep.subr.mxu0 0.0
        %1619 = vmatpush1.msra.mxu0 0.0
        %1620 = vmatprep.subr.mxu0 0.0
        %1621 = vmatpush1.msra.mxu0 0.0
        %1622 = vmatprep.mubr.f32.mxu0 0.0
        %1623 = vmatmul.mubr.f32.gmra.mrb[0].mxu0 %v1553
        %v1624 = vpop.f32.mrb[0].mxu0
        %v1625 = vadd.f32 %v1535, %v1624
        %v1626 = vpop.f32.mrb[0].mxu0
        %1627 = vmatprep.mubr.f32.mxu0 0.0
        %1628 = vmatmul.mubr.f32.gmra.mrb[0].mxu0 %v1556
        %v1629 = vpop.f32.mrb[0].mxu0
        %v1630 = vadd.f32 %v1535, %v1629
        %v1631 = vpop.f32.mrb[0].mxu0
        %1632 = vdwg.mxu0
        %v1634 = vsel %vm413, %v373, 0
        %v1637 = vsel %vm413, %v374, 0
        %v1640 = vsel %vm413, %v375, 0
        %v1643 = vsel %vm413, %v376, 0
        %1645 = vmatprep.subr.mxu0 0.0
        %1646 = vmatpush1.msra.mxu0 %v1541
        %1647 = vmatprep.subr.mxu0 0.0
        %1648 = vmatpush1.msra.mxu0 %v1543
        %1649 = vmatprep.subr.mxu0 0.0
        %1650 = vmatpush1.msra.mxu0 %v1545
        %1651 = vmatprep.subr.mxu0 0.0
        %1652 = vmatpush1.msra.mxu0 %v1547
        %1653 = vmatprep.subr.mxu0 0.0
        %1654 = vmatpush1.msra.mxu0 0.0
        %1655 = vmatprep.subr.mxu0 0.0
        %1656 = vmatpush1.msra.mxu0 0.0
        %1657 = vmatprep.subr.mxu0 0.0
        %1658 = vmatpush1.msra.mxu0 0.0
        %1659 = vmatprep.subr.mxu0 0.0
        %1660 = vmatpush1.msra.mxu0 0.0
        %1661 = vmatprep.subr.mxu0 0.0
        %1662 = vmatpush1.msra.mxu0 0.0
        %1663 = vmatprep.subr.mxu0 0.0
        %1664 = vmatpush1.msra.mxu0 0.0
        %1665 = vmatprep.subr.mxu0 0.0
        %1666 = vmatpush1.msra.mxu0 0.0
        %1667 = vmatprep.subr.mxu0 0.0
        %1668 = vmatpush1.msra.mxu0 0.0
        %1669 = vmatprep.subr.mxu0 0.0
        %1670 = vmatpush1.msra.mxu0 0.0
        %1671 = vmatprep.subr.mxu0 0.0
        %1672 = vmatpush1.msra.mxu0 0.0
        %1673 = vmatprep.subr.mxu0 0.0
        %1674 = vmatpush1.msra.mxu0 0.0
        %1675 = vmatprep.subr.mxu0 0.0
        %1676 = vmatpush1.msra.mxu0 0.0
        %1677 = vmatprep.subr.mxu0 0.0
        %1678 = vmatpush1.msra.mxu0 0.0
        %1679 = vmatprep.subr.mxu0 0.0
        %1680 = vmatpush1.msra.mxu0 0.0
        %1681 = vmatprep.subr.mxu0 0.0
        %1682 = vmatpush1.msra.mxu0 0.0
        %1683 = vmatprep.subr.mxu0 0.0
        %1684 = vmatpush1.msra.mxu0 0.0
        %1685 = vmatprep.subr.mxu0 0.0
        %1686 = vmatpush1.msra.mxu0 0.0
        %1687 = vmatprep.subr.mxu0 0.0
        %1688 = vmatpush1.msra.mxu0 0.0
        %1689 = vmatprep.subr.mxu0 0.0
        %1690 = vmatpush1.msra.mxu0 0.0
        %1691 = vmatprep.subr.mxu0 0.0
        %1692 = vmatpush1.msra.mxu0 0.0
        %1693 = vmatprep.subr.mxu0 0.0
        %1694 = vmatpush1.msra.mxu0 0.0
        %1695 = vmatprep.subr.mxu0 0.0
        %1696 = vmatpush1.msra.mxu0 0.0
        %1697 = vmatprep.subr.mxu0 0.0
        %1698 = vmatpush1.msra.mxu0 0.0
        %1699 = vmatprep.subr.mxu0 0.0
        %1700 = vmatpush1.msra.mxu0 0.0
        %1701 = vmatprep.subr.mxu0 0.0
        %1702 = vmatpush1.msra.mxu0 0.0
        %1703 = vmatprep.subr.mxu0 0.0
        %1704 = vmatpush1.msra.mxu0 0.0
        %1705 = vmatprep.subr.mxu0 0.0
        %1706 = vmatpush1.msra.mxu0 0.0
        %1707 = vmatprep.subr.mxu0 0.0
        %1708 = vmatpush1.msra.mxu0 0.0
        %1709 = vmatprep.mubr.f32.mxu0 0.0
        %1710 = vmatmul.mubr.f32.gmra.mrb[0].mxu0 %v1634
        %v1711 = vpop.f32.mrb[0].mxu0
        %v1712 = vadd.f32 %v1535, %v1711
        %v1713 = vpop.f32.mrb[0].mxu0
        %1714 = vmatprep.mubr.f32.mxu0 0.0
        %1715 = vmatmul.mubr.f32.gmra.mrb[0].mxu0 %v1637
        %v1716 = vpop.f32.mrb[0].mxu0
        %v1717 = vadd.f32 %v1535, %v1716
        %v1718 = vpop.f32.mrb[0].mxu0
        %1719 = vmatprep.mubr.f32.mxu0 0.0
        %1720 = vmatmul.mubr.f32.gmra.mrb[0].mxu0 %v1640
        %v1721 = vpop.f32.mrb[0].mxu0
        %v1722 = vadd.f32 %v1535, %v1721
        %v1723 = vpop.f32.mrb[0].mxu0
        %1724 = vmatprep.mubr.f32.mxu0 0.0
        %1725 = vmatmul.mubr.f32.gmra.mrb[0].mxu0 %v1643
        %v1726 = vpop.f32.mrb[0].mxu0
        %v1727 = vadd.f32 %v1535, %v1726
        %v1728 = vpop.f32.mrb[0].mxu0
        %1729 = vdwg.mxu0
        %1734 = vrot.lane.b32.xlu0 %v1712, 96
        %v1735 = vpop.permute.xlu0 %1734
        %1736 = vrot.lane.b32.xlu0 %v1717, 96
        %v1737 = vpop.permute.xlu0 %1736
        %1738 = vrot.lane.b32.xlu0 %v1722, 96
        %v1739 = vpop.permute.xlu0 %1738
        %1740 = vrot.lane.b32.xlu0 %v1727, 96
        %v1741 = vpop.permute.xlu0 %1740
        %v1743 = vsel %vm560, %v1625, 0
        %v1746 = vsel %vm560, %v1630, 0
        %v1748 = vsel %vm560, %v1735, 0
        %v1750 = vsel %vm560, %v1737, 0
        %v1752 = vsel %vm560, %v1739, 0
        %v1754 = vsel %vm560, %v1741, 0
        %1756 = vmatprep.subr.mxu0 0.0
        %1757 = vmatpush1.xpose.msra.mxu0 %v1748
        %1758 = vmatprep.subr.mxu0 0.0
        %1759 = vmatpush1.xpose.msra.mxu0 %v1750
        %1760 = vmatprep.subr.mxu0 0.0
        %1761 = vmatpush1.xpose.msra.mxu0 %v1752
        %1762 = vmatprep.subr.mxu0 0.0
        %1763 = vmatpush1.xpose.msra.mxu0 %v1754
        %1764 = vmatprep.subr.mxu0 0.0
        %1765 = vmatpush1.xpose.msra.mxu0 0.0
        %1766 = vmatprep.subr.mxu0 0.0
        %1767 = vmatpush1.xpose.msra.mxu0 0.0
        %1768 = vmatprep.subr.mxu0 0.0
        %1769 = vmatpush1.xpose.msra.mxu0 0.0
        %1770 = vmatprep.subr.mxu0 0.0
        %1771 = vmatpush1.xpose.msra.mxu0 0.0
        %1772 = vmatprep.subr.mxu0 0.0
        %1773 = vmatpush1.xpose.msra.mxu0 0.0
        %1774 = vmatprep.subr.mxu0 0.0
        %1775 = vmatpush1.xpose.msra.mxu0 0.0
        %1776 = vmatprep.subr.mxu0 0.0
        %1777 = vmatpush1.xpose.msra.mxu0 0.0
        %1778 = vmatprep.subr.mxu0 0.0
        %1779 = vmatpush1.xpose.msra.mxu0 0.0
        %1780 = vmatprep.subr.mxu0 0.0
        %1781 = vmatpush1.xpose.msra.mxu0 0.0
        %1782 = vmatprep.subr.mxu0 0.0
        %1783 = vmatpush1.xpose.msra.mxu0 0.0
        %1784 = vmatprep.subr.mxu0 0.0
        %1785 = vmatpush1.xpose.msra.mxu0 0.0
        %1786 = vmatprep.subr.mxu0 0.0
        %1787 = vmatpush1.xpose.msra.mxu0 0.0
        %1788 = vmatprep.subr.mxu0 0.0
        %1789 = vmatpush1.xpose.msra.mxu0 0.0
        %1790 = vmatprep.subr.mxu0 0.0
        %1791 = vmatpush1.xpose.msra.mxu0 0.0
        %1792 = vmatprep.subr.mxu0 0.0
        %1793 = vmatpush1.xpose.msra.mxu0 0.0
        %1794 = vmatprep.subr.mxu0 0.0
        %1795 = vmatpush1.xpose.msra.mxu0 0.0
        %1796 = vmatprep.subr.mxu0 0.0
        %1797 = vmatpush1.xpose.msra.mxu0 0.0
        %1798 = vmatprep.subr.mxu0 0.0
        %1799 = vmatpush1.xpose.msra.mxu0 0.0
        %1800 = vmatprep.subr.mxu0 0.0
        %1801 = vmatpush1.xpose.msra.mxu0 0.0
        %1802 = vmatprep.subr.mxu0 0.0
        %1803 = vmatpush1.xpose.msra.mxu0 0.0
        %1804 = vmatprep.subr.mxu0 0.0
        %1805 = vmatpush1.xpose.msra.mxu0 0.0
        %1806 = vmatprep.subr.mxu0 0.0
        %1807 = vmatpush1.xpose.msra.mxu0 0.0
        %1808 = vmatprep.subr.mxu0 0.0
        %1809 = vmatpush1.xpose.msra.mxu0 0.0
        %1810 = vmatprep.subr.mxu0 0.0
        %1811 = vmatpush1.xpose.msra.mxu0 0.0
        %1812 = vmatprep.subr.mxu0 0.0
        %1813 = vmatpush1.xpose.msra.mxu0 0.0
        %1814 = vmatprep.subr.mxu0 0.0
        %1815 = vmatpush1.xpose.msra.mxu0 0.0
        %1816 = vmatprep.subr.mxu0 0.0
        %1817 = vmatpush1.xpose.msra.mxu0 0.0
        %1818 = vmatprep.subr.mxu0 0.0
        %1819 = vmatpush1.xpose.msra.mxu0 0.0
        %1820 = vmatprep.mubr.f32.mxu0 0.0
        %1821 = vmatmul.mubr.f32.gmra.mrb[0].mxu0 %v1743
        %v1822 = vpop.f32.mrb[0].mxu0
        %v1823 = vadd.f32 0.0, %v1822
        %v1824 = vpop.f32.mrb[0].mxu0
        %1825 = vmatprep.mubr.f32.mxu0 0.0
        %1826 = vmatmul.mubr.f32.gmra.mrb[0].mxu0 %v1746
        %v1827 = vpop.f32.mrb[0].mxu0
        %v1828 = vadd.f32 0.0, %v1827
        %v1829 = vpop.f32.mrb[0].mxu0
        %1830 = vdwg.mxu0
        %v1831 = vmul.f32 %v1823, 0.35355338
        %v1832 = vmul.f32 %v1828, 0.35355338
        %v1833 = vadd.f32 %v1831, %v411
        %v1834 = vadd.f32 %v1832, %v412
        %v1835 = vsel %vm413, %v1833, -inf
        %1836 = vmax.xlane.f32.xlu0 %v1835
        %v1837 = vpop.xlane.xlu0 %1836
        %v1838 = vsel %vm413, %v1834, -inf
        %1839 = vmax.xlane.f32.xlu0 %v1838
        %v1840 = vpop.xlane.xlu0 %1839
        %v1841 = vsub.f32 %v1833, %v1837
        %v1842 = vsub.f32 %v1834, %v1840
        %v1843 = vmul.f32 %v1841, 1.442695
        %v1844 = vpow.pop %v1843
        %v1845 = vmul.f32 %v1842, 1.442695
        %v1846 = vpow.pop %v1845
        %v1847 = vsel %vm413, %v1844, 0.0
        %1848 = vadd.xlane.f32.xlu0 %v1847
        %v1849 = vpop.xlane.xlu0 %1848
        %v1850 = vsel %vm413, %v1846, 0.0
        %1851 = vadd.xlane.f32.xlu0 %v1850
        %v1852 = vpop.xlane.xlu0 %1851
        %v1853 = vrcp.pop %v1849
        %v1854 = vmul.f32 %v1844, %v1853
        %v1855 = vrcp.pop %v1852
        %v1856 = vmul.f32 %v1846, %v1855
        %1857 = vrot.lane.b32.xlu0 %v1712, 64
        %v1858 = vpop.permute.xlu0 %1857
        %1859 = vrot.lane.b32.xlu0 %v1717, 64
        %v1860 = vpop.permute.xlu0 %1859
        %1861 = vrot.lane.b32.xlu0 %v1722, 64
        %v1862 = vpop.permute.xlu0 %1861
        %1863 = vrot.lane.b32.xlu0 %v1727, 64
        %v1864 = vpop.permute.xlu0 %1863
        %v1870 = vsel %vm413, %v1854, 0
        %v1873 = vsel %vm413, %v1856, 0
        %1875 = vmatprep.subr.mxu0 0.0
        %1876 = vmatpush1.msra.mxu0 %v1858
        %1877 = vmatprep.subr.mxu0 0.0
        %1878 = vmatpush1.msra.mxu0 %v1860
        %1879 = vmatprep.subr.mxu0 0.0
        %1880 = vmatpush1.msra.mxu0 %v1862
        %1881 = vmatprep.subr.mxu0 0.0
        %1882 = vmatpush1.msra.mxu0 %v1864
        %1883 = vmatprep.subr.mxu0 0.0
        %1884 = vmatpush1.msra.mxu0 0.0
        %1885 = vmatprep.subr.mxu0 0.0
        %1886 = vmatpush1.msra.mxu0 0.0
        %1887 = vmatprep.subr.mxu0 0.0
        %1888 = vmatpush1.msra.mxu0 0.0
        %1889 = vmatprep.subr.mxu0 0.0
        %1890 = vmatpush1.msra.mxu0 0.0
        %1891 = vmatprep.subr.mxu0 0.0
        %1892 = vmatpush1.msra.mxu0 0.0
        %1893 = vmatprep.subr.mxu0 0.0
        %1894 = vmatpush1.msra.mxu0 0.0
        %1895 = vmatprep.subr.mxu0 0.0
        %1896 = vmatpush1.msra.mxu0 0.0
        %1897 = vmatprep.subr.mxu0 0.0
        %1898 = vmatpush1.msra.mxu0 0.0
        %1899 = vmatprep.subr.mxu0 0.0
        %1900 = vmatpush1.msra.mxu0 0.0
        %1901 = vmatprep.subr.mxu0 0.0
        %1902 = vmatpush1.msra.mxu0 0.0
        %1903 = vmatprep.subr.mxu0 0.0
        %1904 = vmatpush1.msra.mxu0 0.0
        %1905 = vmatprep.subr.mxu0 0.0
        %1906 = vmatpush1.msra.mxu0 0.0
        %1907 = vmatprep.subr.mxu0 0.0
        %1908 = vmatpush1.msra.mxu0 0.0
        %1909 = vmatprep.subr.mxu0 0.0
        %1910 = vmatpush1.msra.mxu0 0.0
        %1911 = vmatprep.subr.mxu0 0.0
        %1912 = vmatpush1.msra.mxu0 0.0
        %1913 = vmatprep.subr.mxu0 0.0
        %1914 = vmatpush1.msra.mxu0 0.0
        %1915 = vmatprep.subr.mxu0 0.0
        %1916 = vmatpush1.msra.mxu0 0.0
        %1917 = vmatprep.subr.mxu0 0.0
        %1918 = vmatpush1.msra.mxu0 0.0
        %1919 = vmatprep.subr.mxu0 0.0
        %1920 = vmatpush1.msra.mxu0 0.0
        %1921 = vmatprep.subr.mxu0 0.0
        %1922 = vmatpush1.msra.mxu0 0.0
        %1923 = vmatprep.subr.mxu0 0.0
        %1924 = vmatpush1.msra.mxu0 0.0
        %1925 = vmatprep.subr.mxu0 0.0
        %1926 = vmatpush1.msra.mxu0 0.0
        %1927 = vmatprep.subr.mxu0 0.0
        %1928 = vmatpush1.msra.mxu0 0.0
        %1929 = vmatprep.subr.mxu0 0.0
        %1930 = vmatpush1.msra.mxu0 0.0
        %1931 = vmatprep.subr.mxu0 0.0
        %1932 = vmatpush1.msra.mxu0 0.0
        %1933 = vmatprep.subr.mxu0 0.0
        %1934 = vmatpush1.msra.mxu0 0.0
        %1935 = vmatprep.subr.mxu0 0.0
        %1936 = vmatpush1.msra.mxu0 0.0
        %1937 = vmatprep.subr.mxu0 0.0
        %1938 = vmatpush1.msra.mxu0 0.0
        %1939 = vmatprep.mubr.f32.mxu0 0.0
        %1940 = vmatmul.mubr.f32.gmra.mrb[0].mxu0 %v1870
        %v1941 = vpop.f32.mrb[0].mxu0
        %v1942 = vadd.f32 0.0, %v1941
        %v1943 = vpop.f32.mrb[0].mxu0
        %1944 = vmatprep.mubr.f32.mxu0 0.0
        %1945 = vmatmul.mubr.f32.gmra.mrb[0].mxu0 %v1873
        %v1946 = vpop.f32.mrb[0].mxu0
        %v1947 = vadd.f32 0.0, %v1946
        %v1948 = vpop.f32.mrb[0].mxu0
        %1949 = vdwg.mxu0
        %1950 = vst.msk [vmem:[#allocation2] sm:$0xff] %vm560, %v1942
        %1951 = vst.msk [vmem:[#allocation2 + $0x8] sm:$0xff] %vm560, %v1947
        %1952 = vrot.lane.b32.xlu0 %v1625, 120
        %v1953 = vpop.permute.xlu0 %1952
        %1954 = vrot.lane.b32.xlu0 %v1630, 120
        %v1955 = vpop.permute.xlu0 %1954
        %1956 = vrot.lane.b32.xlu0 %v1712, 88
        %v1957 = vpop.permute.xlu0 %1956
        %1958 = vrot.lane.b32.xlu0 %v1717, 88
        %v1959 = vpop.permute.xlu0 %1958
        %1960 = vrot.lane.b32.xlu0 %v1722, 88
        %v1961 = vpop.permute.xlu0 %1960
        %1962 = vrot.lane.b32.xlu0 %v1727, 88
        %v1963 = vpop.permute.xlu0 %1962
        %v1964 = vsel %vm560, %v1953, 0
        %v1966 = vsel %vm560, %v1955, 0
        %v1968 = vsel %vm560, %v1957, 0
        %v1970 = vsel %vm560, %v1959, 0
        %v1972 = vsel %vm560, %v1961, 0
        %v1974 = vsel %vm560, %v1963, 0
        %1976 = vmatprep.subr.mxu0 0.0
        %1977 = vmatpush1.xpose.msra.mxu0 %v1968
        %1978 = vmatprep.subr.mxu0 0.0
        %1979 = vmatpush1.xpose.msra.mxu0 %v1970
        %1980 = vmatprep.subr.mxu0 0.0
        %1981 = vmatpush1.xpose.msra.mxu0 %v1972
        %1982 = vmatprep.subr.mxu0 0.0
        %1983 = vmatpush1.xpose.msra.mxu0 %v1974
        %1984 = vmatprep.subr.mxu0 0.0
        %1985 = vmatpush1.xpose.msra.mxu0 0.0
        %1986 = vmatprep.subr.mxu0 0.0
        %1987 = vmatpush1.xpose.msra.mxu0 0.0
        %1988 = vmatprep.subr.mxu0 0.0
        %1989 = vmatpush1.xpose.msra.mxu0 0.0
        %1990 = vmatprep.subr.mxu0 0.0
        %1991 = vmatpush1.xpose.msra.mxu0 0.0
        %1992 = vmatprep.subr.mxu0 0.0
        %1993 = vmatpush1.xpose.msra.mxu0 0.0
        %1994 = vmatprep.subr.mxu0 0.0
        %1995 = vmatpush1.xpose.msra.mxu0 0.0
        %1996 = vmatprep.subr.mxu0 0.0
        %1997 = vmatpush1.xpose.msra.mxu0 0.0
        %1998 = vmatprep.subr.mxu0 0.0
        %1999 = vmatpush1.xpose.msra.mxu0 0.0
        %2000 = vmatprep.subr.mxu0 0.0
        %2001 = vmatpush1.xpose.msra.mxu0 0.0
        %2002 = vmatprep.subr.mxu0 0.0
        %2003 = vmatpush1.xpose.msra.mxu0 0.0
        %2004 = vmatprep.subr.mxu0 0.0
        %2005 = vmatpush1.xpose.msra.mxu0 0.0
        %2006 = vmatprep.subr.mxu0 0.0
        %2007 = vmatpush1.xpose.msra.mxu0 0.0
        %2008 = vmatprep.subr.mxu0 0.0
        %2009 = vmatpush1.xpose.msra.mxu0 0.0
        %2010 = vmatprep.subr.mxu0 0.0
        %2011 = vmatpush1.xpose.msra.mxu0 0.0
        %2012 = vmatprep.subr.mxu0 0.0
        %2013 = vmatpush1.xpose.msra.mxu0 0.0
        %2014 = vmatprep.subr.mxu0 0.0
        %2015 = vmatpush1.xpose.msra.mxu0 0.0
        %2016 = vmatprep.subr.mxu0 0.0
        %2017 = vmatpush1.xpose.msra.mxu0 0.0
        %2018 = vmatprep.subr.mxu0 0.0
        %2019 = vmatpush1.xpose.msra.mxu0 0.0
        %2020 = vmatprep.subr.mxu0 0.0
        %2021 = vmatpush1.xpose.msra.mxu0 0.0
        %2022 = vmatprep.subr.mxu0 0.0
        %2023 = vmatpush1.xpose.msra.mxu0 0.0
        %2024 = vmatprep.subr.mxu0 0.0
        %2025 = vmatpush1.xpose.msra.mxu0 0.0
        %2026 = vmatprep.subr.mxu0 0.0
        %2027 = vmatpush1.xpose.msra.mxu0 0.0
        %2028 = vmatprep.subr.mxu0 0.0
        %2029 = vmatpush1.xpose.msra.mxu0 0.0
        %2030 = vmatprep.subr.mxu0 0.0
        %2031 = vmatpush1.xpose.msra.mxu0 0.0
        %2032 = vmatprep.subr.mxu0 0.0
        %2033 = vmatpush1.xpose.msra.mxu0 0.0
        %2034 = vmatprep.subr.mxu0 0.0
        %2035 = vmatpush1.xpose.msra.mxu0 0.0
        %2036 = vmatprep.subr.mxu0 0.0
        %2037 = vmatpush1.xpose.msra.mxu0 0.0
        %2038 = vmatprep.subr.mxu0 0.0
        %2039 = vmatpush1.xpose.msra.mxu0 0.0
        %2040 = vmatprep.mubr.f32.mxu0 0.0
        %2041 = vmatmul.mubr.f32.gmra.mrb[0].mxu0 %v1964
        %v2042 = vpop.f32.mrb[0].mxu0
        %v2043 = vadd.f32 0.0, %v2042
        %v2044 = vpop.f32.mrb[0].mxu0
        %2045 = vmatprep.mubr.f32.mxu0 0.0
        %2046 = vmatmul.mubr.f32.gmra.mrb[0].mxu0 %v1966
        %v2047 = vpop.f32.mrb[0].mxu0
        %v2048 = vadd.f32 0.0, %v2047
        %v2049 = vpop.f32.mrb[0].mxu0
        %2050 = vdwg.mxu0
        %v2051 = vmul.f32 %v2043, 0.35355338
        %v2052 = vmul.f32 %v2048, 0.35355338
        %v2053 = vadd.f32 %v2051, %v411
        %v2054 = vadd.f32 %v2052, %v412
        %v2055 = vsel %vm413, %v2053, -inf
        %2056 = vmax.xlane.f32.xlu0 %v2055
        %v2057 = vpop.xlane.xlu0 %2056
        %v2058 = vsel %vm413, %v2054, -inf
        %2059 = vmax.xlane.f32.xlu0 %v2058
        %v2060 = vpop.xlane.xlu0 %2059
        %v2061 = vsub.f32 %v2053, %v2057
        %v2062 = vsub.f32 %v2054, %v2060
        %v2063 = vmul.f32 %v2061, 1.442695
        %v2064 = vpow.pop %v2063
        %v2065 = vmul.f32 %v2062, 1.442695
        %v2066 = vpow.pop %v2065
        %v2067 = vsel %vm413, %v2064, 0.0
        %2068 = vadd.xlane.f32.xlu0 %v2067
        %v2069 = vpop.xlane.xlu0 %2068
        %v2070 = vsel %vm413, %v2066, 0.0
        %2071 = vadd.xlane.f32.xlu0 %v2070
        %v2072 = vpop.xlane.xlu0 %2071
        %v2073 = vrcp.pop %v2069
        %v2074 = vmul.f32 %v2064, %v2073
        %v2075 = vrcp.pop %v2072
        %v2076 = vmul.f32 %v2066, %v2075
        %2077 = vrot.lane.b32.xlu0 %v1712, 56
        %v2078 = vpop.permute.xlu0 %2077
        %2079 = vrot.lane.b32.xlu0 %v1717, 56
        %v2080 = vpop.permute.xlu0 %2079
        %2081 = vrot.lane.b32.xlu0 %v1722, 56
        %v2082 = vpop.permute.xlu0 %2081
        %2083 = vrot.lane.b32.xlu0 %v1727, 56
        %v2084 = vpop.permute.xlu0 %2083
        %v2090 = vsel %vm413, %v2074, 0
        %v2093 = vsel %vm413, %v2076, 0
        %2095 = vmatprep.subr.mxu0 0.0
        %2096 = vmatpush1.msra.mxu0 %v2078
        %2097 = vmatprep.subr.mxu0 0.0
        %2098 = vmatpush1.msra.mxu0 %v2080
        %2099 = vmatprep.subr.mxu0 0.0
        %2100 = vmatpush1.msra.mxu0 %v2082
        %2101 = vmatprep.subr.mxu0 0.0
        %2102 = vmatpush1.msra.mxu0 %v2084
        %2103 = vmatprep.subr.mxu0 0.0
        %2104 = vmatpush1.msra.mxu0 0.0
        %2105 = vmatprep.subr.mxu0 0.0
        %2106 = vmatpush1.msra.mxu0 0.0
        %2107 = vmatprep.subr.mxu0 0.0
        %2108 = vmatpush1.msra.mxu0 0.0
        %2109 = vmatprep.subr.mxu0 0.0
        %2110 = vmatpush1.msra.mxu0 0.0
        %2111 = vmatprep.subr.mxu0 0.0
        %2112 = vmatpush1.msra.mxu0 0.0
        %2113 = vmatprep.subr.mxu0 0.0
        %2114 = vmatpush1.msra.mxu0 0.0
        %2115 = vmatprep.subr.mxu0 0.0
        %2116 = vmatpush1.msra.mxu0 0.0
        %2117 = vmatprep.subr.mxu0 0.0
        %2118 = vmatpush1.msra.mxu0 0.0
        %2119 = vmatprep.subr.mxu0 0.0
        %2120 = vmatpush1.msra.mxu0 0.0
        %2121 = vmatprep.subr.mxu0 0.0
        %2122 = vmatpush1.msra.mxu0 0.0
        %2123 = vmatprep.subr.mxu0 0.0
        %2124 = vmatpush1.msra.mxu0 0.0
        %2125 = vmatprep.subr.mxu0 0.0
        %2126 = vmatpush1.msra.mxu0 0.0
        %2127 = vmatprep.subr.mxu0 0.0
        %2128 = vmatpush1.msra.mxu0 0.0
        %2129 = vmatprep.subr.mxu0 0.0
        %2130 = vmatpush1.msra.mxu0 0.0
        %2131 = vmatprep.subr.mxu0 0.0
        %2132 = vmatpush1.msra.mxu0 0.0
        %2133 = vmatprep.subr.mxu0 0.0
        %2134 = vmatpush1.msra.mxu0 0.0
        %2135 = vmatprep.subr.mxu0 0.0
        %2136 = vmatpush1.msra.mxu0 0.0
        %2137 = vmatprep.subr.mxu0 0.0
        %2138 = vmatpush1.msra.mxu0 0.0
        %2139 = vmatprep.subr.mxu0 0.0
        %2140 = vmatpush1.msra.mxu0 0.0
        %2141 = vmatprep.subr.mxu0 0.0
        %2142 = vmatpush1.msra.mxu0 0.0
        %2143 = vmatprep.subr.mxu0 0.0
        %2144 = vmatpush1.msra.mxu0 0.0
        %2145 = vmatprep.subr.mxu0 0.0
        %2146 = vmatpush1.msra.mxu0 0.0
        %2147 = vmatprep.subr.mxu0 0.0
        %2148 = vmatpush1.msra.mxu0 0.0
        %2149 = vmatprep.subr.mxu0 0.0
        %2150 = vmatpush1.msra.mxu0 0.0
        %2151 = vmatprep.subr.mxu0 0.0
        %2152 = vmatpush1.msra.mxu0 0.0
        %2153 = vmatprep.subr.mxu0 0.0
        %2154 = vmatpush1.msra.mxu0 0.0
        %2155 = vmatprep.subr.mxu0 0.0
        %2156 = vmatpush1.msra.mxu0 0.0
        %2157 = vmatprep.subr.mxu0 0.0
        %2158 = vmatpush1.msra.mxu0 0.0
        %2159 = vmatprep.mubr.f32.mxu0 0.0
        %2160 = vmatmul.mubr.f32.gmra.mrb[0].mxu0 %v2090
        %v2161 = vpop.f32.mrb[0].mxu0
        %v2162 = vadd.f32 0.0, %v2161
        %v2163 = vpop.f32.mrb[0].mxu0
        %2164 = vmatprep.mubr.f32.mxu0 0.0
        %2165 = vmatmul.mubr.f32.gmra.mrb[0].mxu0 %v2093
        %v2166 = vpop.f32.mrb[0].mxu0
        %v2167 = vadd.f32 0.0, %v2166
        %v2168 = vpop.f32.mrb[0].mxu0
        %2169 = vdwg.mxu0
        %2172 = vrot.lane.b32.xlu0 %v2162, 8
        %v2173 = vpop.permute.xlu0 %2172
        %2174 = vrot.lane.b32.xlu0 %v2167, 8
        %v2175 = vpop.permute.xlu0 %2174
        %2178 = vst.msk [vmem:[#allocation2] sm:$0xff] %vm972, %v2173
        %2179 = vst.msk [vmem:[#allocation2 + $0x8] sm:$0xff] %vm972, %v2175
        %2180 = vrot.lane.b32.xlu0 %v1625, 112
        %v2181 = vpop.permute.xlu0 %2180
        %2182 = vrot.lane.b32.xlu0 %v1630, 112
        %v2183 = vpop.permute.xlu0 %2182
        %2184 = vrot.lane.b32.xlu0 %v1712, 80
        %v2185 = vpop.permute.xlu0 %2184
        %2186 = vrot.lane.b32.xlu0 %v1717, 80
        %v2187 = vpop.permute.xlu0 %2186
        %2188 = vrot.lane.b32.xlu0 %v1722, 80
        %v2189 = vpop.permute.xlu0 %2188
        %2190 = vrot.lane.b32.xlu0 %v1727, 80
        %v2191 = vpop.permute.xlu0 %2190
        %v2192 = vsel %vm560, %v2181, 0
        %v2194 = vsel %vm560, %v2183, 0
        %v2196 = vsel %vm560, %v2185, 0
        %v2198 = vsel %vm560, %v2187, 0
        %v2200 = vsel %vm560, %v2189, 0
        %v2202 = vsel %vm560, %v2191, 0
        %2204 = vmatprep.subr.mxu0 0.0
        %2205 = vmatpush1.xpose.msra.mxu0 %v2196
        %2206 = vmatprep.subr.mxu0 0.0
        %2207 = vmatpush1.xpose.msra.mxu0 %v2198
        %2208 = vmatprep.subr.mxu0 0.0
        %2209 = vmatpush1.xpose.msra.mxu0 %v2200
        %2210 = vmatprep.subr.mxu0 0.0
        %2211 = vmatpush1.xpose.msra.mxu0 %v2202
        %2212 = vmatprep.subr.mxu0 0.0
        %2213 = vmatpush1.xpose.msra.mxu0 0.0
        %2214 = vmatprep.subr.mxu0 0.0
        %2215 = vmatpush1.xpose.msra.mxu0 0.0
        %2216 = vmatprep.subr.mxu0 0.0
        %2217 = vmatpush1.xpose.msra.mxu0 0.0
        %2218 = vmatprep.subr.mxu0 0.0
        %2219 = vmatpush1.xpose.msra.mxu0 0.0
        %2220 = vmatprep.subr.mxu0 0.0
        %2221 = vmatpush1.xpose.msra.mxu0 0.0
        %2222 = vmatprep.subr.mxu0 0.0
        %2223 = vmatpush1.xpose.msra.mxu0 0.0
        %2224 = vmatprep.subr.mxu0 0.0
        %2225 = vmatpush1.xpose.msra.mxu0 0.0
        %2226 = vmatprep.subr.mxu0 0.0
        %2227 = vmatpush1.xpose.msra.mxu0 0.0
        %2228 = vmatprep.subr.mxu0 0.0
        %2229 = vmatpush1.xpose.msra.mxu0 0.0
        %2230 = vmatprep.subr.mxu0 0.0
        %2231 = vmatpush1.xpose.msra.mxu0 0.0
        %2232 = vmatprep.subr.mxu0 0.0
        %2233 = vmatpush1.xpose.msra.mxu0 0.0
        %2234 = vmatprep.subr.mxu0 0.0
        %2235 = vmatpush1.xpose.msra.mxu0 0.0
        %2236 = vmatprep.subr.mxu0 0.0
        %2237 = vmatpush1.xpose.msra.mxu0 0.0
        %2238 = vmatprep.subr.mxu0 0.0
        %2239 = vmatpush1.xpose.msra.mxu0 0.0
        %2240 = vmatprep.subr.mxu0 0.0
        %2241 = vmatpush1.xpose.msra.mxu0 0.0
        %2242 = vmatprep.subr.mxu0 0.0
        %2243 = vmatpush1.xpose.msra.mxu0 0.0
        %2244 = vmatprep.subr.mxu0 0.0
        %2245 = vmatpush1.xpose.msra.mxu0 0.0
        %2246 = vmatprep.subr.mxu0 0.0
        %2247 = vmatpush1.xpose.msra.mxu0 0.0
        %2248 = vmatprep.subr.mxu0 0.0
        %2249 = vmatpush1.xpose.msra.mxu0 0.0
        %2250 = vmatprep.subr.mxu0 0.0
        %2251 = vmatpush1.xpose.msra.mxu0 0.0
        %2252 = vmatprep.subr.mxu0 0.0
        %2253 = vmatpush1.xpose.msra.mxu0 0.0
        %2254 = vmatprep.subr.mxu0 0.0
        %2255 = vmatpush1.xpose.msra.mxu0 0.0
        %2256 = vmatprep.subr.mxu0 0.0
        %2257 = vmatpush1.xpose.msra.mxu0 0.0
        %2258 = vmatprep.subr.mxu0 0.0
        %2259 = vmatpush1.xpose.msra.mxu0 0.0
        %2260 = vmatprep.subr.mxu0 0.0
        %2261 = vmatpush1.xpose.msra.mxu0 0.0
        %2262 = vmatprep.subr.mxu0 0.0
        %2263 = vmatpush1.xpose.msra.mxu0 0.0
        %2264 = vmatprep.subr.mxu0 0.0
        %2265 = vmatpush1.xpose.msra.mxu0 0.0
        %2266 = vmatprep.subr.mxu0 0.0
        %2267 = vmatpush1.xpose.msra.mxu0 0.0
        %2268 = vmatprep.mubr.f32.mxu0 0.0
        %2269 = vmatmul.mubr.f32.gmra.mrb[0].mxu0 %v2192
        %v2270 = vpop.f32.mrb[0].mxu0
        %v2271 = vadd.f32 0.0, %v2270
        %v2272 = vpop.f32.mrb[0].mxu0
        %2273 = vmatprep.mubr.f32.mxu0 0.0
        %2274 = vmatmul.mubr.f32.gmra.mrb[0].mxu0 %v2194
        %v2275 = vpop.f32.mrb[0].mxu0
        %v2276 = vadd.f32 0.0, %v2275
        %v2277 = vpop.f32.mrb[0].mxu0
        %2278 = vdwg.mxu0
        %v2279 = vmul.f32 %v2271, 0.35355338
        %v2280 = vmul.f32 %v2276, 0.35355338
        %v2281 = vadd.f32 %v2279, %v411
        %v2282 = vadd.f32 %v2280, %v412
        %v2283 = vsel %vm413, %v2281, -inf
        %2284 = vmax.xlane.f32.xlu0 %v2283
        %v2285 = vpop.xlane.xlu0 %2284
        %v2286 = vsel %vm413, %v2282, -inf
        %2287 = vmax.xlane.f32.xlu0 %v2286
        %v2288 = vpop.xlane.xlu0 %2287
        %v2289 = vsub.f32 %v2281, %v2285
        %v2290 = vsub.f32 %v2282, %v2288
        %v2291 = vmul.f32 %v2289, 1.442695
        %v2292 = vpow.pop %v2291
        %v2293 = vmul.f32 %v2290, 1.442695
        %v2294 = vpow.pop %v2293
        %v2295 = vsel %vm413, %v2292, 0.0
        %2296 = vadd.xlane.f32.xlu0 %v2295
        %v2297 = vpop.xlane.xlu0 %2296
        %v2298 = vsel %vm413, %v2294, 0.0
        %2299 = vadd.xlane.f32.xlu0 %v2298
        %v2300 = vpop.xlane.xlu0 %2299
        %v2301 = vrcp.pop %v2297
        %v2302 = vmul.f32 %v2292, %v2301
        %v2303 = vrcp.pop %v2300
        %v2304 = vmul.f32 %v2294, %v2303
        %2305 = vrot.lane.b32.xlu0 %v1712, 48
        %v2306 = vpop.permute.xlu0 %2305
        %2307 = vrot.lane.b32.xlu0 %v1717, 48
        %v2308 = vpop.permute.xlu0 %2307
        %2309 = vrot.lane.b32.xlu0 %v1722, 48
        %v2310 = vpop.permute.xlu0 %2309
        %2311 = vrot.lane.b32.xlu0 %v1727, 48
        %v2312 = vpop.permute.xlu0 %2311
        %v2318 = vsel %vm413, %v2302, 0
        %v2321 = vsel %vm413, %v2304, 0
        %2323 = vmatprep.subr.mxu0 0.0
        %2324 = vmatpush1.msra.mxu0 %v2306
        %2325 = vmatprep.subr.mxu0 0.0
        %2326 = vmatpush1.msra.mxu0 %v2308
        %2327 = vmatprep.subr.mxu0 0.0
        %2328 = vmatpush1.msra.mxu0 %v2310
        %2329 = vmatprep.subr.mxu0 0.0
        %2330 = vmatpush1.msra.mxu0 %v2312
        %2331 = vmatprep.subr.mxu0 0.0
        %2332 = vmatpush1.msra.mxu0 0.0
        %2333 = vmatprep.subr.mxu0 0.0
        %2334 = vmatpush1.msra.mxu0 0.0
        %2335 = vmatprep.subr.mxu0 0.0
        %2336 = vmatpush1.msra.mxu0 0.0
        %2337 = vmatprep.subr.mxu0 0.0
        %2338 = vmatpush1.msra.mxu0 0.0
        %2339 = vmatprep.subr.mxu0 0.0
        %2340 = vmatpush1.msra.mxu0 0.0
        %2341 = vmatprep.subr.mxu0 0.0
        %2342 = vmatpush1.msra.mxu0 0.0
        %2343 = vmatprep.subr.mxu0 0.0
        %2344 = vmatpush1.msra.mxu0 0.0
        %2345 = vmatprep.subr.mxu0 0.0
        %2346 = vmatpush1.msra.mxu0 0.0
        %2347 = vmatprep.subr.mxu0 0.0
        %2348 = vmatpush1.msra.mxu0 0.0
        %2349 = vmatprep.subr.mxu0 0.0
        %2350 = vmatpush1.msra.mxu0 0.0
        %2351 = vmatprep.subr.mxu0 0.0
        %2352 = vmatpush1.msra.mxu0 0.0
        %2353 = vmatprep.subr.mxu0 0.0
        %2354 = vmatpush1.msra.mxu0 0.0
        %2355 = vmatprep.subr.mxu0 0.0
        %2356 = vmatpush1.msra.mxu0 0.0
        %2357 = vmatprep.subr.mxu0 0.0
        %2358 = vmatpush1.msra.mxu0 0.0
        %2359 = vmatprep.subr.mxu0 0.0
        %2360 = vmatpush1.msra.mxu0 0.0
        %2361 = vmatprep.subr.mxu0 0.0
        %2362 = vmatpush1.msra.mxu0 0.0
        %2363 = vmatprep.subr.mxu0 0.0
        %2364 = vmatpush1.msra.mxu0 0.0
        %2365 = vmatprep.subr.mxu0 0.0
        %2366 = vmatpush1.msra.mxu0 0.0
        %2367 = vmatprep.subr.mxu0 0.0
        %2368 = vmatpush1.msra.mxu0 0.0
        %2369 = vmatprep.subr.mxu0 0.0
        %2370 = vmatpush1.msra.mxu0 0.0
        %2371 = vmatprep.subr.mxu0 0.0
        %2372 = vmatpush1.msra.mxu0 0.0
        %2373 = vmatprep.subr.mxu0 0.0
        %2374 = vmatpush1.msra.mxu0 0.0
        %2375 = vmatprep.subr.mxu0 0.0
        %2376 = vmatpush1.msra.mxu0 0.0
        %2377 = vmatprep.subr.mxu0 0.0
        %2378 = vmatpush1.msra.mxu0 0.0
        %2379 = vmatprep.subr.mxu0 0.0
        %2380 = vmatpush1.msra.mxu0 0.0
        %2381 = vmatprep.subr.mxu0 0.0
        %2382 = vmatpush1.msra.mxu0 0.0
        %2383 = vmatprep.subr.mxu0 0.0
        %2384 = vmatpush1.msra.mxu0 0.0
        %2385 = vmatprep.subr.mxu0 0.0
        %2386 = vmatpush1.msra.mxu0 0.0
        %2387 = vmatprep.mubr.f32.mxu0 0.0
        %2388 = vmatmul.mubr.f32.gmra.mrb[0].mxu0 %v2318
        %v2389 = vpop.f32.mrb[0].mxu0
        %v2390 = vadd.f32 0.0, %v2389
        %v2391 = vpop.f32.mrb[0].mxu0
        %2392 = vmatprep.mubr.f32.mxu0 0.0
        %2393 = vmatmul.mubr.f32.gmra.mrb[0].mxu0 %v2321
        %v2394 = vpop.f32.mrb[0].mxu0
        %v2395 = vadd.f32 0.0, %v2394
        %v2396 = vpop.f32.mrb[0].mxu0
        %2397 = vdwg.mxu0
        %2400 = vrot.lane.b32.xlu0 %v2390, 16
        %v2401 = vpop.permute.xlu0 %2400
        %2402 = vrot.lane.b32.xlu0 %v2395, 16
        %v2403 = vpop.permute.xlu0 %2402
        %2406 = vst.msk [vmem:[#allocation2] sm:$0xff] %vm1187, %v2401
        %2407 = vst.msk [vmem:[#allocation2 + $0x8] sm:$0xff] %vm1187, %v2403
        %2408 = vrot.lane.b32.xlu0 %v1625, 104
        %v2409 = vpop.permute.xlu0 %2408
        %2410 = vrot.lane.b32.xlu0 %v1630, 104
        %v2411 = vpop.permute.xlu0 %2410
        %2412 = vrot.lane.b32.xlu0 %v1712, 72
        %v2413 = vpop.permute.xlu0 %2412
        %2414 = vrot.lane.b32.xlu0 %v1717, 72
        %v2415 = vpop.permute.xlu0 %2414
        %2416 = vrot.lane.b32.xlu0 %v1722, 72
        %v2417 = vpop.permute.xlu0 %2416
        %2418 = vrot.lane.b32.xlu0 %v1727, 72
        %v2419 = vpop.permute.xlu0 %2418
        %v2420 = vsel %vm560, %v2409, 0
        %v2422 = vsel %vm560, %v2411, 0
        %v2424 = vsel %vm560, %v2413, 0
        %v2426 = vsel %vm560, %v2415, 0
        %v2428 = vsel %vm560, %v2417, 0
        %v2430 = vsel %vm560, %v2419, 0
        %2432 = vmatprep.subr.mxu0 0.0
        %2433 = vmatpush1.xpose.msra.mxu0 %v2424
        %2434 = vmatprep.subr.mxu0 0.0
        %2435 = vmatpush1.xpose.msra.mxu0 %v2426
        %2436 = vmatprep.subr.mxu0 0.0
        %2437 = vmatpush1.xpose.msra.mxu0 %v2428
        %2438 = vmatprep.subr.mxu0 0.0
        %2439 = vmatpush1.xpose.msra.mxu0 %v2430
        %2440 = vmatprep.subr.mxu0 0.0
        %2441 = vmatpush1.xpose.msra.mxu0 0.0
        %2442 = vmatprep.subr.mxu0 0.0
        %2443 = vmatpush1.xpose.msra.mxu0 0.0
        %2444 = vmatprep.subr.mxu0 0.0
        %2445 = vmatpush1.xpose.msra.mxu0 0.0
        %2446 = vmatprep.subr.mxu0 0.0
        %2447 = vmatpush1.xpose.msra.mxu0 0.0
        %2448 = vmatprep.subr.mxu0 0.0
        %2449 = vmatpush1.xpose.msra.mxu0 0.0
        %2450 = vmatprep.subr.mxu0 0.0
        %2451 = vmatpush1.xpose.msra.mxu0 0.0
        %2452 = vmatprep.subr.mxu0 0.0
        %2453 = vmatpush1.xpose.msra.mxu0 0.0
        %2454 = vmatprep.subr.mxu0 0.0
        %2455 = vmatpush1.xpose.msra.mxu0 0.0
        %2456 = vmatprep.subr.mxu0 0.0
        %2457 = vmatpush1.xpose.msra.mxu0 0.0
        %2458 = vmatprep.subr.mxu0 0.0
        %2459 = vmatpush1.xpose.msra.mxu0 0.0
        %2460 = vmatprep.subr.mxu0 0.0
        %2461 = vmatpush1.xpose.msra.mxu0 0.0
        %2462 = vmatprep.subr.mxu0 0.0
        %2463 = vmatpush1.xpose.msra.mxu0 0.0
        %2464 = vmatprep.subr.mxu0 0.0
        %2465 = vmatpush1.xpose.msra.mxu0 0.0
        %2466 = vmatprep.subr.mxu0 0.0
        %2467 = vmatpush1.xpose.msra.mxu0 0.0
        %2468 = vmatprep.subr.mxu0 0.0
        %2469 = vmatpush1.xpose.msra.mxu0 0.0
        %2470 = vmatprep.subr.mxu0 0.0
        %2471 = vmatpush1.xpose.msra.mxu0 0.0
        %2472 = vmatprep.subr.mxu0 0.0
        %2473 = vmatpush1.xpose.msra.mxu0 0.0
        %2474 = vmatprep.subr.mxu0 0.0
        %2475 = vmatpush1.xpose.msra.mxu0 0.0
        %2476 = vmatprep.subr.mxu0 0.0
        %2477 = vmatpush1.xpose.msra.mxu0 0.0
        %2478 = vmatprep.subr.mxu0 0.0
        %2479 = vmatpush1.xpose.msra.mxu0 0.0
        %2480 = vmatprep.subr.mxu0 0.0
        %2481 = vmatpush1.xpose.msra.mxu0 0.0
        %2482 = vmatprep.subr.mxu0 0.0
        %2483 = vmatpush1.xpose.msra.mxu0 0.0
        %2484 = vmatprep.subr.mxu0 0.0
        %2485 = vmatpush1.xpose.msra.mxu0 0.0
        %2486 = vmatprep.subr.mxu0 0.0
        %2487 = vmatpush1.xpose.msra.mxu0 0.0
        %2488 = vmatprep.subr.mxu0 0.0
        %2489 = vmatpush1.xpose.msra.mxu0 0.0
        %2490 = vmatprep.subr.mxu0 0.0
        %2491 = vmatpush1.xpose.msra.mxu0 0.0
        %2492 = vmatprep.subr.mxu0 0.0
        %2493 = vmatpush1.xpose.msra.mxu0 0.0
        %2494 = vmatprep.subr.mxu0 0.0
        %2495 = vmatpush1.xpose.msra.mxu0 0.0
        %2496 = vmatprep.mubr.f32.mxu0 0.0
        %2497 = vmatmul.mubr.f32.gmra.mrb[0].mxu0 %v2420
        %v2498 = vpop.f32.mrb[0].mxu0
        %v2499 = vadd.f32 0.0, %v2498
        %v2500 = vpop.f32.mrb[0].mxu0
        %2501 = vmatprep.mubr.f32.mxu0 0.0
        %2502 = vmatmul.mubr.f32.gmra.mrb[0].mxu0 %v2422
        %v2503 = vpop.f32.mrb[0].mxu0
        %v2504 = vadd.f32 0.0, %v2503
        %v2505 = vpop.f32.mrb[0].mxu0
        %2506 = vdwg.mxu0
        %v2507 = vmul.f32 %v2499, 0.35355338
        %v2508 = vmul.f32 %v2504, 0.35355338
        %v2509 = vadd.f32 %v2507, %v411
        %v2510 = vadd.f32 %v2508, %v412
        %v2511 = vsel %vm413, %v2509, -inf
        %2512 = vmax.xlane.f32.xlu0 %v2511
        %v2513 = vpop.xlane.xlu0 %2512
        %v2514 = vsel %vm413, %v2510, -inf
        %2515 = vmax.xlane.f32.xlu0 %v2514
        %v2516 = vpop.xlane.xlu0 %2515
        %v2517 = vsub.f32 %v2509, %v2513
        %v2518 = vsub.f32 %v2510, %v2516
        %v2519 = vmul.f32 %v2517, 1.442695
        %v2520 = vpow.pop %v2519
        %v2521 = vmul.f32 %v2518, 1.442695
        %v2522 = vpow.pop %v2521
        %v2523 = vsel %vm413, %v2520, 0.0
        %2524 = vadd.xlane.f32.xlu0 %v2523
        %v2525 = vpop.xlane.xlu0 %2524
        %v2526 = vsel %vm413, %v2522, 0.0
        %2527 = vadd.xlane.f32.xlu0 %v2526
        %v2528 = vpop.xlane.xlu0 %2527
        %v2529 = vrcp.pop %v2525
        %v2530 = vmul.f32 %v2520, %v2529
        %v2531 = vrcp.pop %v2528
        %v2532 = vmul.f32 %v2522, %v2531
        %2533 = vrot.lane.b32.xlu0 %v1712, 40
        %v2534 = vpop.permute.xlu0 %2533
        %2535 = vrot.lane.b32.xlu0 %v1717, 40
        %v2536 = vpop.permute.xlu0 %2535
        %2537 = vrot.lane.b32.xlu0 %v1722, 40
        %v2538 = vpop.permute.xlu0 %2537
        %2539 = vrot.lane.b32.xlu0 %v1727, 40
        %v2540 = vpop.permute.xlu0 %2539
        %v2546 = vsel %vm413, %v2530, 0
        %v2549 = vsel %vm413, %v2532, 0
        %2551 = vmatprep.subr.mxu0 0.0
        %2552 = vmatpush1.msra.mxu0 %v2534
        %2553 = vmatprep.subr.mxu0 0.0
        %2554 = vmatpush1.msra.mxu0 %v2536
        %2555 = vmatprep.subr.mxu0 0.0
        %2556 = vmatpush1.msra.mxu0 %v2538
        %2557 = vmatprep.subr.mxu0 0.0
        %2558 = vmatpush1.msra.mxu0 %v2540
        %2559 = vmatprep.subr.mxu0 0.0
        %2560 = vmatpush1.msra.mxu0 0.0
        %2561 = vmatprep.subr.mxu0 0.0
        %2562 = vmatpush1.msra.mxu0 0.0
        %2563 = vmatprep.subr.mxu0 0.0
        %2564 = vmatpush1.msra.mxu0 0.0
        %2565 = vmatprep.subr.mxu0 0.0
        %2566 = vmatpush1.msra.mxu0 0.0
        %2567 = vmatprep.subr.mxu0 0.0
        %2568 = vmatpush1.msra.mxu0 0.0
        %2569 = vmatprep.subr.mxu0 0.0
        %2570 = vmatpush1.msra.mxu0 0.0
        %2571 = vmatprep.subr.mxu0 0.0
        %2572 = vmatpush1.msra.mxu0 0.0
        %2573 = vmatprep.subr.mxu0 0.0
        %2574 = vmatpush1.msra.mxu0 0.0
        %2575 = vmatprep.subr.mxu0 0.0
        %2576 = vmatpush1.msra.mxu0 0.0
        %2577 = vmatprep.subr.mxu0 0.0
        %2578 = vmatpush1.msra.mxu0 0.0
        %2579 = vmatprep.subr.mxu0 0.0
        %2580 = vmatpush1.msra.mxu0 0.0
        %2581 = vmatprep.subr.mxu0 0.0
        %2582 = vmatpush1.msra.mxu0 0.0
        %2583 = vmatprep.subr.mxu0 0.0
        %2584 = vmatpush1.msra.mxu0 0.0
        %2585 = vmatprep.subr.mxu0 0.0
        %2586 = vmatpush1.msra.mxu0 0.0
        %2587 = vmatprep.subr.mxu0 0.0
        %2588 = vmatpush1.msra.mxu0 0.0
        %2589 = vmatprep.subr.mxu0 0.0
        %2590 = vmatpush1.msra.mxu0 0.0
        %2591 = vmatprep.subr.mxu0 0.0
        %2592 = vmatpush1.msra.mxu0 0.0
        %2593 = vmatprep.subr.mxu0 0.0
        %2594 = vmatpush1.msra.mxu0 0.0
        %2595 = vmatprep.subr.mxu0 0.0
        %2596 = vmatpush1.msra.mxu0 0.0
        %2597 = vmatprep.subr.mxu0 0.0
        %2598 = vmatpush1.msra.mxu0 0.0
        %2599 = vmatprep.subr.mxu0 0.0
        %2600 = vmatpush1.msra.mxu0 0.0
        %2601 = vmatprep.subr.mxu0 0.0
        %2602 = vmatpush1.msra.mxu0 0.0
        %2603 = vmatprep.subr.mxu0 0.0
        %2604 = vmatpush1.msra.mxu0 0.0
        %2605 = vmatprep.subr.mxu0 0.0
        %2606 = vmatpush1.msra.mxu0 0.0
        %2607 = vmatprep.subr.mxu0 0.0
        %2608 = vmatpush1.msra.mxu0 0.0
        %2609 = vmatprep.subr.mxu0 0.0
        %2610 = vmatpush1.msra.mxu0 0.0
        %2611 = vmatprep.subr.mxu0 0.0
        %2612 = vmatpush1.msra.mxu0 0.0
        %2613 = vmatprep.subr.mxu0 0.0
        %2614 = vmatpush1.msra.mxu0 0.0
        %2615 = vmatprep.mubr.f32.mxu0 0.0
        %2616 = vmatmul.mubr.f32.gmra.mrb[0].mxu0 %v2546
        %v2617 = vpop.f32.mrb[0].mxu0
        %v2618 = vadd.f32 0.0, %v2617
        %v2619 = vpop.f32.mrb[0].mxu0
        %2620 = vmatprep.mubr.f32.mxu0 0.0
        %2621 = vmatmul.mubr.f32.gmra.mrb[0].mxu0 %v2549
        %v2622 = vpop.f32.mrb[0].mxu0
        %v2623 = vadd.f32 0.0, %v2622
        %v2624 = vpop.f32.mrb[0].mxu0
        %2625 = vdwg.mxu0
        %2628 = vrot.lane.b32.xlu0 %v2618, 24
        %v2629 = vpop.permute.xlu0 %2628
        %2630 = vrot.lane.b32.xlu0 %v2623, 24
        %v2631 = vpop.permute.xlu0 %2630
        %2634 = vst.msk [vmem:[#allocation2] sm:$0xff] %vm1402, %v2629
        %2635 = vst.msk [vmem:[#allocation2 + $0x8] sm:$0xff] %vm1402, %v2631
        %v2636 = vld [vmem:[#allocation2] sm:$0xff]
        %v2637 = vld [vmem:[#allocation2 + $0x8] sm:$0xff]
        %v2638 = vlaneseq
        %v2639 = vshrl.u32 %v2638, 7
        %v2640 = vsub.s32 0, %v2639
        %v2641 = vrot.slane %v400, %v2640
        %v2643 = vsel %vm413, %v2636, 0
        %v2646 = vsel %vm413, %v2637, 0
        %2648 = vmatprep.subr.mxu0 0.0
        %2649 = vmatpush1.msra.mxu0 %v381
        %2650 = vmatprep.subr.mxu0 0.0
        %2651 = vmatpush1.msra.mxu0 %v382
        %2652 = vmatprep.subr.mxu0 0.0
        %2653 = vmatpush1.msra.mxu0 %v383
        %2654 = vmatprep.subr.mxu0 0.0
        %2655 = vmatpush1.msra.mxu0 %v384
        %2656 = vmatprep.subr.mxu0 0.0
        %2657 = vmatpush1.msra.mxu0 0.0
        %2658 = vmatprep.subr.mxu0 0.0
        %2659 = vmatpush1.msra.mxu0 0.0
        %2660 = vmatprep.subr.mxu0 0.0
        %2661 = vmatpush1.msra.mxu0 0.0
        %2662 = vmatprep.subr.mxu0 0.0
        %2663 = vmatpush1.msra.mxu0 0.0
        %2664 = vmatprep.subr.mxu0 0.0
        %2665 = vmatpush1.msra.mxu0 0.0
        %2666 = vmatprep.subr.mxu0 0.0
        %2667 = vmatpush1.msra.mxu0 0.0
        %2668 = vmatprep.subr.mxu0 0.0
        %2669 = vmatpush1.msra.mxu0 0.0
        %2670 = vmatprep.subr.mxu0 0.0
        %2671 = vmatpush1.msra.mxu0 0.0
        %2672 = vmatprep.subr.mxu0 0.0
        %2673 = vmatpush1.msra.mxu0 0.0
        %2674 = vmatprep.subr.mxu0 0.0
        %2675 = vmatpush1.msra.mxu0 0.0
        %2676 = vmatprep.subr.mxu0 0.0
        %2677 = vmatpush1.msra.mxu0 0.0
        %2678 = vmatprep.subr.mxu0 0.0
        %2679 = vmatpush1.msra.mxu0 0.0
        %2680 = vmatprep.subr.mxu0 0.0
        %2681 = vmatpush1.msra.mxu0 0.0
        %2682 = vmatprep.subr.mxu0 0.0
        %2683 = vmatpush1.msra.mxu0 0.0
        %2684 = vmatprep.subr.mxu0 0.0
        %2685 = vmatpush1.msra.mxu0 0.0
        %2686 = vmatprep.subr.mxu0 0.0
        %2687 = vmatpush1.msra.mxu0 0.0
        %2688 = vmatprep.subr.mxu0 0.0
        %2689 = vmatpush1.msra.mxu0 0.0
        %2690 = vmatprep.subr.mxu0 0.0
        %2691 = vmatpush1.msra.mxu0 0.0
        %2692 = vmatprep.subr.mxu0 0.0
        %2693 = vmatpush1.msra.mxu0 0.0
        %2694 = vmatprep.subr.mxu0 0.0
        %2695 = vmatpush1.msra.mxu0 0.0
        %2696 = vmatprep.subr.mxu0 0.0
        %2697 = vmatpush1.msra.mxu0 0.0
        %2698 = vmatprep.subr.mxu0 0.0
        %2699 = vmatpush1.msra.mxu0 0.0
        %2700 = vmatprep.subr.mxu0 0.0
        %2701 = vmatpush1.msra.mxu0 0.0
        %2702 = vmatprep.subr.mxu0 0.0
        %2703 = vmatpush1.msra.mxu0 0.0
        %2704 = vmatprep.subr.mxu0 0.0
        %2705 = vmatpush1.msra.mxu0 0.0
        %2706 = vmatprep.subr.mxu0 0.0
        %2707 = vmatpush1.msra.mxu0 0.0
        %2708 = vmatprep.subr.mxu0 0.0
        %2709 = vmatpush1.msra.mxu0 0.0
        %2710 = vmatprep.subr.mxu0 0.0
        %2711 = vmatpush1.msra.mxu0 0.0
        %2712 = vmatprep.mubr.f32.mxu0 0.0
        %2713 = vmatmul.mubr.f32.gmra.mrb[0].mxu0 %v2643
        %v2714 = vpop.f32.mrb[0].mxu0
        %v2715 = vadd.f32 %v2641, %v2714
        %v2716 = vpop.f32.mrb[0].mxu0
        %2717 = vmatprep.mubr.f32.mxu0 0.0
        %2718 = vmatmul.mubr.f32.gmra.mrb[0].mxu0 %v2646
        %v2719 = vpop.f32.mrb[0].mxu0
        %v2720 = vadd.f32 %v2641, %v2719
        %v2721 = vpop.f32.mrb[0].mxu0
        %2722 = vdwg.mxu0
        %v2723 = vadd.f32 %v1492, %v2715
        %v2724 = vadd.f32 %v1493, %v2720
        %v2725 = vsel %vm413, %v2723, 0.0
        %2726 = vadd.xlane.f32.xlu0 %v2725
        %v2727 = vpop.xlane.xlu0 %2726
        %v2728 = vsel %vm413, %v2724, 0.0
        %2729 = vadd.xlane.f32.xlu0 %v2728
        %v2730 = vpop.xlane.xlu0 %2729
        %v2731 = vmul.f32 %v2727, %v420
        %v2732 = vmul.f32 %v2730, %v420
        %v2733 = vsub.f32 %v2723, %v2731
        %v2734 = vsub.f32 %v2724, %v2732
        %v2735 = vmul.f32 %v2733, %v2733
        %v2736 = vmul.f32 %v2734, %v2734
        %v2737 = vsel %vm413, %v2735, 0.0
        %2738 = vadd.xlane.f32.xlu0 %v2737
        %v2739 = vpop.xlane.xlu0 %2738
        %v2740 = vsel %vm413, %v2736, 0.0
        %2741 = vadd.xlane.f32.xlu0 %v2740
        %v2742 = vpop.xlane.xlu0 %2741
        %v2743 = vmul.f32 %v2739, %v420
        %v2744 = vmul.f32 %v2742, %v420
        %v2745 = vadd.f32 %v2743, 1e-05
        %v2746 = vadd.f32 %v2744, 1e-05
        %v2747 = vrsqrt.pop %v2745
        %v2748 = vrsqrt.pop %v2746
        %v2749 = vmul.f32 %v2733, %v2747
        %v2750 = vmul.f32 %v2734, %v2748
        %v2751 = vlaneseq
        %v2752 = vshrl.u32 %v2751, 7
        %v2753 = vsub.s32 2, %v2752
        %v2754 = vrot.slane %v403, %v2753
        %v2755 = vmul.f32 %v2749, %v2754
        %v2756 = vmul.f32 %v2750, %v2754
        %v2757 = vlaneseq
        %v2758 = vshrl.u32 %v2757, 7
        %v2759 = vsub.s32 2, %v2758
        %v2760 = vrot.slane %v404, %v2759
        %v2761 = vadd.f32 %v2755, %v2760
        %v2762 = vadd.f32 %v2756, %v2760
        %v2763 = vlaneseq
        %v2764 = vshrl.u32 %v2763, 7
        %v2765 = vsub.s32 0, %v2764
        %v2766 = vrot.slane %v401, %v2765
        %2771 = vrot.lane.b32.xlu0 %v393, 96
        %v2772 = vpop.permute.xlu0 %2771
        %2773 = vrot.lane.b32.xlu0 %v394, 96
        %v2774 = vpop.permute.xlu0 %2773
        %2775 = vrot.lane.b32.xlu0 %v395, 96
        %v2776 = vpop.permute.xlu0 %2775
        %2777 = vrot.lane.b32.xlu0 %v396, 96
        %v2778 = vpop.permute.xlu0 %2777
        %v2784 = vsel %vm413, %v2761, 0
        %v2787 = vsel %vm413, %v2762, 0
        %2789 = vmatprep.subr.mxu0 0.0
        %2790 = vmatpush1.msra.mxu0 %v2772
        %2791 = vmatprep.subr.mxu0 0.0
        %2792 = vmatpush1.msra.mxu0 %v2774
        %2793 = vmatprep.subr.mxu0 0.0
        %2794 = vmatpush1.msra.mxu0 %v2776
        %2795 = vmatprep.subr.mxu0 0.0
        %2796 = vmatpush1.msra.mxu0 %v2778
        %2797 = vmatprep.subr.mxu0 0.0
        %2798 = vmatpush1.msra.mxu0 0.0
        %2799 = vmatprep.subr.mxu0 0.0
        %2800 = vmatpush1.msra.mxu0 0.0
        %2801 = vmatprep.subr.mxu0 0.0
        %2802 = vmatpush1.msra.mxu0 0.0
        %2803 = vmatprep.subr.mxu0 0.0
        %2804 = vmatpush1.msra.mxu0 0.0
        %2805 = vmatprep.subr.mxu0 0.0
        %2806 = vmatpush1.msra.mxu0 0.0
        %2807 = vmatprep.subr.mxu0 0.0
        %2808 = vmatpush1.msra.mxu0 0.0
        %2809 = vmatprep.subr.mxu0 0.0
        %2810 = vmatpush1.msra.mxu0 0.0
        %2811 = vmatprep.subr.mxu0 0.0
        %2812 = vmatpush1.msra.mxu0 0.0
        %2813 = vmatprep.subr.mxu0 0.0
        %2814 = vmatpush1.msra.mxu0 0.0
        %2815 = vmatprep.subr.mxu0 0.0
        %2816 = vmatpush1.msra.mxu0 0.0
        %2817 = vmatprep.subr.mxu0 0.0
        %2818 = vmatpush1.msra.mxu0 0.0
        %2819 = vmatprep.subr.mxu0 0.0
        %2820 = vmatpush1.msra.mxu0 0.0
        %2821 = vmatprep.subr.mxu0 0.0
        %2822 = vmatpush1.msra.mxu0 0.0
        %2823 = vmatprep.subr.mxu0 0.0
        %2824 = vmatpush1.msra.mxu0 0.0
        %2825 = vmatprep.subr.mxu0 0.0
        %2826 = vmatpush1.msra.mxu0 0.0
        %2827 = vmatprep.subr.mxu0 0.0
        %2828 = vmatpush1.msra.mxu0 0.0
        %2829 = vmatprep.subr.mxu0 0.0
        %2830 = vmatpush1.msra.mxu0 0.0
        %2831 = vmatprep.subr.mxu0 0.0
        %2832 = vmatpush1.msra.mxu0 0.0
        %2833 = vmatprep.subr.mxu0 0.0
        %2834 = vmatpush1.msra.mxu0 0.0
        %2835 = vmatprep.subr.mxu0 0.0
        %2836 = vmatpush1.msra.mxu0 0.0
        %2837 = vmatprep.subr.mxu0 0.0
        %2838 = vmatpush1.msra.mxu0 0.0
        %2839 = vmatprep.subr.mxu0 0.0
        %2840 = vmatpush1.msra.mxu0 0.0
        %2841 = vmatprep.subr.mxu0 0.0
        %2842 = vmatpush1.msra.mxu0 0.0
        %2843 = vmatprep.subr.mxu0 0.0
        %2844 = vmatpush1.msra.mxu0 0.0
        %2845 = vmatprep.subr.mxu0 0.0
        %2846 = vmatpush1.msra.mxu0 0.0
        %2847 = vmatprep.subr.mxu0 0.0
        %2848 = vmatpush1.msra.mxu0 0.0
        %2849 = vmatprep.subr.mxu0 0.0
        %2850 = vmatpush1.msra.mxu0 0.0
        %2851 = vmatprep.subr.mxu0 0.0
        %2852 = vmatpush1.msra.mxu0 0.0
        %2853 = vmatprep.mubr.f32.mxu0 0.0
        %2854 = vmatmul.mubr.f32.gmra.mrb[0].mxu0 %v2784
        %v2855 = vpop.f32.mrb[0].mxu0
        %v2856 = vadd.f32 %v2766, %v2855
        %v2857 = vpop.f32.mrb[0].mxu0
        %2858 = vmatprep.mubr.f32.mxu0 0.0
        %2859 = vmatmul.mubr.f32.gmra.mrb[0].mxu0 %v2787
        %v2860 = vpop.f32.mrb[0].mxu0
        %v2861 = vadd.f32 %v2766, %v2860
        %v2862 = vpop.f32.mrb[0].mxu0
        %2863 = vdwg.mxu0
        %v2864 = vmax.f32 %v2856, 0.0
        %v2865 = vmax.f32 %v2861, 0.0
        %v2866 = vlaneseq
        %v2867 = vshrl.u32 %v2866, 7
        %v2868 = vsub.s32 0, %v2867
        %v2869 = vrot.slane %v402, %v2868
        %vm2870 = vcmask 523264
        %v2872 = vsel %vm2870, %v2864, 0
        %v2875 = vsel %vm2870, %v2865, 0
        %2877 = vmatprep.subr.mxu0 0.0
        %2878 = vmatpush1.msra.mxu0 %v385
        %2879 = vmatprep.subr.mxu0 0.0
        %2880 = vmatpush1.msra.mxu0 %v386
        %2881 = vmatprep.subr.mxu0 0.0
        %2882 = vmatpush1.msra.mxu0 %v387
        %2883 = vmatprep.subr.mxu0 0.0
        %2884 = vmatpush1.msra.mxu0 %v388
        %2885 = vmatprep.subr.mxu0 0.0
        %2886 = vmatpush1.msra.mxu0 %v389
        %2887 = vmatprep.subr.mxu0 0.0
        %2888 = vmatpush1.msra.mxu0 %v390
        %2889 = vmatprep.subr.mxu0 0.0
        %2890 = vmatpush1.msra.mxu0 %v391
        %2891 = vmatprep.subr.mxu0 0.0
        %2892 = vmatpush1.msra.mxu0 %v392
        %2893 = vmatprep.subr.mxu0 0.0
        %2894 = vmatpush1.msra.mxu0 0.0
        %2895 = vmatprep.subr.mxu0 0.0
        %2896 = vmatpush1.msra.mxu0 0.0
        %2897 = vmatprep.subr.mxu0 0.0
        %2898 = vmatpush1.msra.mxu0 0.0
        %2899 = vmatprep.subr.mxu0 0.0
        %2900 = vmatpush1.msra.mxu0 0.0
        %2901 = vmatprep.subr.mxu0 0.0
        %2902 = vmatpush1.msra.mxu0 0.0
        %2903 = vmatprep.subr.mxu0 0.0
        %2904 = vmatpush1.msra.mxu0 0.0
        %2905 = vmatprep.subr.mxu0 0.0
        %2906 = vmatpush1.msra.mxu0 0.0
        %2907 = vmatprep.subr.mxu0 0.0
        %2908 = vmatpush1.msra.mxu0 0.0
        %2909 = vmatprep.subr.mxu0 0.0
        %2910 = vmatpush1.msra.mxu0 0.0
        %2911 = vmatprep.subr.mxu0 0.0
        %2912 = vmatpush1.msra.mxu0 0.0
        %2913 = vmatprep.subr.mxu0 0.0
        %2914 = vmatpush1.msra.mxu0 0.0
        %2915 = vmatprep.subr.mxu0 0.0
        %2916 = vmatpush1.msra.mxu0 0.0
        %2917 = vmatprep.subr.mxu0 0.0
        %2918 = vmatpush1.msra.mxu0 0.0
        %2919 = vmatprep.subr.mxu0 0.0
        %2920 = vmatpush1.msra.mxu0 0.0
        %2921 = vmatprep.subr.mxu0 0.0
        %2922 = vmatpush1.msra.mxu0 0.0
        %2923 = vmatprep.subr.mxu0 0.0
        %2924 = vmatpush1.msra.mxu0 0.0
        %2925 = vmatprep.subr.mxu0 0.0
        %2926 = vmatpush1.msra.mxu0 0.0
        %2927 = vmatprep.subr.mxu0 0.0
        %2928 = vmatpush1.msra.mxu0 0.0
        %2929 = vmatprep.subr.mxu0 0.0
        %2930 = vmatpush1.msra.mxu0 0.0
        %2931 = vmatprep.subr.mxu0 0.0
        %2932 = vmatpush1.msra.mxu0 0.0
        %2933 = vmatprep.subr.mxu0 0.0
        %2934 = vmatpush1.msra.mxu0 0.0
        %2935 = vmatprep.subr.mxu0 0.0
        %2936 = vmatpush1.msra.mxu0 0.0
        %2937 = vmatprep.subr.mxu0 0.0
        %2938 = vmatpush1.msra.mxu0 0.0
        %2939 = vmatprep.subr.mxu0 0.0
        %2940 = vmatpush1.msra.mxu0 0.0
        %2941 = vmatprep.mubr.f32.mxu0 0.0
        %2942 = vmatmul.mubr.f32.gmra.mrb[0].mxu0 %v2872
        %v2943 = vpop.f32.mrb[0].mxu0
        %v2944 = vadd.f32 %v2869, %v2943
        %v2945 = vpop.f32.mrb[0].mxu0
        %2946 = vmatprep.mubr.f32.mxu0 0.0
        %2947 = vmatmul.mubr.f32.gmra.mrb[0].mxu0 %v2875
        %v2948 = vpop.f32.mrb[0].mxu0
        %v2949 = vadd.f32 %v2869, %v2948
        %v2950 = vpop.f32.mrb[0].mxu0
        %2951 = vdwg.mxu0
        %v2952 = vadd.f32 %v2723, %v2944
        %v2953 = vadd.f32 %v2724, %v2949
        %2954 = vst.msk [vmem:[%s355] sm:$0xff] %vm413, %v2952
        %2955 = vst.msk [vmem:[%s355 + $0x8] sm:$0xff] %vm413, %v2953
        %s2956 = sand.u32 %s180, 1
        %s2957 = scalar_lea.sflag [#allocation5], %s2956
        %s2958 = sand.u32 %s180, 1
        %s2959 = smul.addr %s2958, 16
        %s2960 = scalar_lea.vmem [#allocation9], %s2959
        // Predicated region
        $region57: #{tpu_custom_call.1} parent=43 // pred_check
          %p2961 = pneg %p190
        $region58: #{tpu_custom_call.1} parent=43 // pred_check_branch
          %2963 = sbr.rel (%p2961) target = $region60
        $region59: #{tpu_custom_call.1} parent=43 // pred_region
          %s2964 = smul.u32 2, %s26
          %s2966 = ssub.s32 256, 256
          %2967 = vsyncadd %s2957, %s2966
          %s2968 = smul.addr %s2964, 128
          %s2969 = scalar_lea.hbm %s6, %s2968
          %s2970 = sshll.u32 %s2960, 4
          %s2971 = int_to_ptr.vmem [resolvable:$true] %s2970
          %2976 = dma.vmem_to_hbm [thread:$0]  %s2971, 256, %s2969, %s2957, 128, 128, 8
        $region60: #{tpu_custom_call.1} parent=43 // pred_fallthru
          _
      $region44: #{tpu_custom_call.1} parent=5 // pred_fallthru
        _
      %p2977 = scmp.le.s32.totalorder 2, %s21
      // Predicated region
      $region61: #{tpu_custom_call.1} parent=5 // pred_check
        %p2978 = pneg %p2977
      $region62: #{tpu_custom_call.1} parent=5 // pred_check_branch
        %2980 = sbr.rel (%p2978) target = $region64
      $region63: #{tpu_custom_call.1} parent=5 // pred_region
        %s2981 = ssub.s32 %s21, 2
        // Predicated region
        $region65: #{tpu_custom_call.1} parent=63 // pred_check
          %p2982 = pneg %p196
        $region66: #{tpu_custom_call.1} parent=63 // pred_check_branch
          %2984 = sbr.rel (%p2982) target = $region68
        $region67: #{tpu_custom_call.1} parent=63 // pred_region
          %s2985 = sand.u32 %s181, 1
          %s2986 = scalar_lea.sflag [#allocation5], %s2985
          %s2987 = sand.u32 %s181, 1
          %s2988 = smul.addr %s2987, 16
          %s2989 = scalar_lea.vmem [#allocation9], %s2988
          %2990 = dma.done %s2986, 256
        $region68: #{tpu_custom_call.1} parent=63 // pred_fallthru
          _
      $region64: #{tpu_custom_call.1} parent=5 // pred_fallthru
        _
    $region6: #{tpu_custom_call.1} parent=1 // loop_footer
      %s25 = sadd.s32 1, %s21
    $region7: #{tpu_custom_call.1} parent=1 // loop_footer_branch
      %20 = sbr.rel target = $region3
    $region8: #{tpu_custom_call.1} parent=1 // loop_exit
      _
    %2991 = vsyncpa [#allocation4], 1
    %s2992 = scalar_lea.sflag [#allocation4], 1
    %2993 = vsyncpa %s2992, 1
    %2994 = vsyncpa [#allocation7], 1
    %s2995 = scalar_lea.sflag [#allocation7], 1
    %2996 = vsyncpa %s2995, 1
    %2997 = vsyncpa [#allocation5], 1
    %s2998 = scalar_lea.sflag [#allocation5], 1
    %2999 = vsyncpa %s2998, 1

</llo_original>
